<compile_context>
chip_gen: v5e
topology: v5e:2x2
jax: 0.10.0
libtpu: 0.0.40
codegen_flags: <defaults>
</compile_context>

<pallas_src>
import jax
import jax.numpy as jnp
from jax import lax
from jax.experimental import pallas as pl
from jax.experimental.pallas import tpu as pltpu

EMBED_DIM = 256                       # multiple of 128 -> lane-dense output
BLOCK_ROWS = 4096                     # xyz points per grid step (mult. of 128)
VMEM_BUDGET_BYTES = 16 * 1024 * 1024  # conservative cap (fits v7x 64 MiB part)


# ---------------------------------------------------------------------------
# Pallas kernel: one (3, TM) tile of points -> (TM, D) embeddings
# ---------------------------------------------------------------------------
def decode_xyz_pos_embed_kernel(xt_ref, w_ref, b_ref, o_ref):
    # xt_ref: (3, TM)  lane-dense transposed points
    # w_ref : (3, D)   weight (stored as weight.T of nn.Linear)
    # b_ref : (1, D)   bias
    # o_ref : (TM, D)  lane-dense output
    # out[m, d] = sum_k xt[k, m] * w[k, d] + b[0, d]
    acc = lax.dot_general(
        xt_ref[...], w_ref[...],
        dimension_numbers=(((0,), (0,)), ((), ())),
        preferred_element_type=jnp.float32,
    )
    o_ref[...] = (acc + b_ref[...].astype(jnp.float32)).astype(o_ref.dtype)


def _round_up(x, m):
    return (x + m - 1) // m * m


# ---------------------------------------------------------------------------
# wrapper
# ---------------------------------------------------------------------------
def decode_xyz_pos_embed_forward(unseen_xyz, w_pos, b_pos,
                                 block_rows=BLOCK_ROWS):
    """unseen_xyz: (..., 3); w_pos: (3, D); b_pos: (1, D)."""
    lead = unseen_xyz.shape[:-1]
    assert unseen_xyz.shape[-1] == 3
    D = w_pos.shape[1]
    out_dtype = unseen_xyz.dtype
    itemsize = jnp.dtype(out_dtype).itemsize

    # Transposed (3, M) input -> lane-dense input DMA.  The transpose touches
    # only 12*M bytes (~1% of the output writeback traffic).
    x_t = unseen_xyz.reshape(-1, 3).T          # (3, M)
    M = x_t.shape[1]

    # Tile size: as large as a conservative VMEM budget allows (double-
    # buffered output dominates), always a multiple of 128 so both the
    # (3, block_rows) input block and the (block_rows, D) output block are
    # lane/sublane aligned; never larger than the 128-rounded problem size.
    max_rows = max(128, (VMEM_BUDGET_BYTES // (2 * 4 * D)) // 128 * 128)
    block_rows = min(block_rows, max_rows, _round_up(M, 128))
    n_blk = pl.cdiv(M, block_rows)

    cost = pl.CostEstimate(
        flops=2 * M * 3 * D,
        transcendentals=0,
        bytes_accessed=M * D * itemsize + 3 * M * itemsize + 4 * D * (3 + 1),
    )

    # No pad / slice: Pallas masks the partial last block (OOB reads return
    # padding and OOB writes are discarded; the padded rows are never read).
    out = pl.pallas_call(
        decode_xyz_pos_embed_kernel,
        out_shape=jax.ShapeDtypeStruct((M, D), out_dtype),
        grid=(n_blk,),
        in_specs=[
            pl.BlockSpec((3, block_rows), lambda i: (0, i)),
            pl.BlockSpec((3, D), lambda i: (0, 0)),
            pl.BlockSpec((1, D), lambda i: (0, 0)),
        ],
        out_specs=pl.BlockSpec((block_rows, D), lambda i: (i, 0)),
        compiler_params=pltpu.CompilerParams(
            dimension_semantics=("parallel",)),
        cost_estimate=cost,
    )(x_t, w_pos, b_pos)

    return out.reshape(*lead, D)


# ---------------------------------------------------------------------------
# deterministic parameter init (nn.Linear(3, embed_dim) shapes, stored
# transposed: w_pos = weight.T with shape (3, D), b_pos shape (1, D))
# ---------------------------------------------------------------------------
def init_params(key, embed_dim=EMBED_DIM):
    kw, kb = jax.random.split(key, 2)
    std = 0.02
    return dict(
        w_pos=std * jax.random.normal(kw, (3, embed_dim), jnp.float32),
        b_pos=std * jax.random.normal(kb, (1, embed_dim), jnp.float32),
    )


# ---------------------------------------------------------------------------
# pure-JAX reference for a silent correctness check
# ---------------------------------------------------------------------------
def reference_forward(unseen_xyz, w_pos, b_pos):
    return unseen_xyz @ w_pos + b_pos[0]


if __name__ == "__main__":
    key = jax.random.PRNGKey(0)
    kp, kx = jax.random.split(key, 2)
    params = init_params(kp)

    B, N = 2, 1024                       # (B, N, 3) unseen query points
    unseen_xyz = jax.random.normal(kx, (B, N, 3), jnp.float32)

    out = decode_xyz_pos_embed_forward(unseen_xyz,
                                       params["w_pos"], params["b_pos"])
    out = jax.block_until_ready(out)

    ref = reference_forward(unseen_xyz, params["w_pos"], params["b_pos"])
    assert out.shape == (B, N, EMBED_DIM), out.shape
    assert jnp.allclose(out, ref, atol=1e-5, rtol=1e-5), \
        float(jnp.max(jnp.abs(out - ref)))
    print("KERNEL_OK")
</pallas_src>

<mosaic_0001>
module attributes {stable_mosaic.version = 11 : i64} {
  func.func @decode_xyz_pos_embed_kernel(%arg0: i32, %arg1: memref<3x2048xf32, #tpu.memory_space<vmem>>, %arg2: memref<3x256xf32, #tpu.memory_space<vmem>>, %arg3: memref<1x256xf32, #tpu.memory_space<vmem>>, %arg4: memref<2048x256xf32, #tpu.memory_space<vmem>>) attributes {dimension_semantics = [#tpu.dimension_semantics<parallel>], iteration_bounds = array<i64: 1>, scalar_prefetch = 0 : i64, scratch_operands = 0 : i64, tpu.core_type = #tpu.core_type<tc>, window_params = [{transform_indices = @transform_0, window_bounds = array<i64: 3, 2048>}, {pipeline_mode = #tpu.pipeline_mode<synchronous>, transform_indices = @transform_1, window_bounds = array<i64: 3, 256>}, {pipeline_mode = #tpu.pipeline_mode<synchronous>, transform_indices = @transform_2, window_bounds = array<i64: 1, 256>}, {transform_indices = @transform_3, window_bounds = array<i64: 2048, 256>}]} {
    %c0 = arith.constant 0 : index
    %c0_0 = arith.constant 0 : index
    %0 = vector.load %arg1[%c0, %c0_0] : memref<3x2048xf32, #tpu.memory_space<vmem>>, vector<3x2048xf32>
    %c0_1 = arith.constant 0 : index
    %c0_2 = arith.constant 0 : index
    %1 = vector.load %arg2[%c0_1, %c0_2] : memref<3x256xf32, #tpu.memory_space<vmem>>, vector<3x256xf32>
    %cst = arith.constant dense<0.000000e+00> : vector<2048x256xf32>
    %2 = tpu.matmul %0, %1, %cst {dimension_numbers = #tpu.dot_dimension_numbers<[0], [0], [1], [1], [0, 1, 1, 1], [], []>} : vector<3x2048xf32>, vector<3x256xf32>, vector<2048x256xf32> -> vector<2048x256xf32>
    %c0_3 = arith.constant 0 : index
    %c0_4 = arith.constant 0 : index
    %3 = vector.load %arg3[%c0_3, %c0_4] : memref<1x256xf32, #tpu.memory_space<vmem>>, vector<1x256xf32>
    %4 = vector.broadcast %3 : vector<1x256xf32> to vector<2048x256xf32>
    %5 = arith.addf %2, %4 : vector<2048x256xf32>
    %c0_5 = arith.constant 0 : index
    %c0_6 = arith.constant 0 : index
    %6 = vector.load %arg4[%c0_5, %c0_6] : memref<2048x256xf32, #tpu.memory_space<vmem>>, vector<2048x256xf32>
    tpu.vector_store %arg4[%c0_5, %c0_6], %5 {strides = array<i32>} : memref<2048x256xf32, #tpu.memory_space<vmem>>, vector<2048x256xf32>,
    return
  }
  func.func @transform_0(%arg0: i32) -> (i32, i32) {
    %c0_i32 = arith.constant 0 : i32
    %c0_i32_0 = arith.constant 0 : i32
    return %c0_i32, %arg0 : i32, i32
  }
  func.func @transform_1(%arg0: i32) -> (i32, i32) {
    %c0_i32 = arith.constant 0 : i32
    %c0_i32_0 = arith.constant 0 : i32
    %c0_i32_1 = arith.constant 0 : i32
    return %c0_i32, %c0_i32_0 : i32, i32
  }
  func.func @transform_2(%arg0: i32) -> (i32, i32) {
    %c0_i32 = arith.constant 0 : i32
    %c0_i32_0 = arith.constant 0 : i32
    %c0_i32_1 = arith.constant 0 : i32
    return %c0_i32, %c0_i32_0 : i32, i32
  }
  func.func @transform_3(%arg0: i32) -> (i32, i32) {
    %c0_i32 = arith.constant 0 : i32
    %c0_i32_0 = arith.constant 0 : i32
    return %arg0, %c0_i32 : i32, i32
  }
}

</mosaic_0001>

<llo_original>
// kernel: tpu_custom_call.1
$region0: #{tpu_custom_call.1}
  #allocation0 [shape = 'u32[]', space=smem, size = 0x4, offset = 0x4, fixed_abs, tag = 'smem constant byte address 0x4 - core index']
  #allocation1 [shape = 'u32[72,128]{1,0:T(1,128)}', space=vmem, size = 0x9000, scoped, tag = 'internal scratch']
  %s0 = inlined_call_operand.hbm [shape: f32[3,2048], index: 0, kind: input, shape index: {}]
  %s1 = inlined_call_operand.hbm [shape: f32[3,256], index: 1, kind: input, shape index: {}]
  %s2 = inlined_call_operand.hbm [shape: f32[1,256], index: 2, kind: input, shape index: {}]
  %s3 = inlined_call_operand.hbm [shape: f32[2048,256], index: 3, kind: output, shape index: {}]
  %s4 = sld [smem:[#allocation0]]
  $region34: #{tpu_custom_call.1} parent=0
    _
  %s6 = ssub.s32 1, %s4
  %s7 = scalar_select 0, %s6, %s4
  $region1: #{tpu_custom_call.1} parent=0
    #allocation2 [shape = 'u8[32768]{0}', space=vmem, size = 0x8000, scoped, tag = 'input window, operand 0, single buffered']
    #allocation3 [shape = 's32[1]{0}', space=sflag, size = 0x4, scoped, tag = 'scoped memory for tpu_custom_call.1']
    #allocation4 [shape = 's32[1]{0}', space=sflag, size = 0x4, scoped, tag = 'scoped memory for tpu_custom_call.1']
    #allocation5 [shape = 'u8[4096]{0}', space=vmem, size = 0x1000, scoped, tag = 'input window, operand 1, single buffered']
    #allocation6 [shape = 's32[1]{0}', space=sflag, size = 0x4, scoped, tag = 'scoped memory for tpu_custom_call.1']
    #allocation7 [shape = 'u8[1024]{0}', space=vmem, size = 0x400, scoped, tag = 'input window, operand 2, single buffered']
    #allocation8 [shape = 'u8[2097152]{0}', space=vmem, size = 0x200000, scoped, tag = 'output window, operand 0, single buffered']
    %8 = vsyncpa [#allocation3], 0
    %9 = vsyncpa [#allocation6], 0
    %10 = vsyncpa [#allocation4], 0
    // Predicated region
    $region2: #{tpu_custom_call.1} parent=1 // pred_check
      _
    $region3: #{tpu_custom_call.1} parent=1 // pred_check_branch
      %12 = sbr.rel (0) target = $region5
    $region4: #{tpu_custom_call.1} parent=1 // pred_region
      %14 = vsyncadd [#allocation3], 0
      %s16 = sshll.u32 %s0, 4
      %s17 = int_to_ptr.hbm [resolvable:$true] %s16
      %s18 = sshll.u32 [#allocation2], 4
      %s19 = int_to_ptr.vmem [resolvable:$true] %s18
      %21 = dma.hbm_to_vmem [thread:$0]  %s17, 1024, %s19, [#allocation3]
    $region5: #{tpu_custom_call.1} parent=1 // pred_fallthru
      _
    // Predicated region
    $region6: #{tpu_custom_call.1} parent=1 // pred_check
      _
    $region7: #{tpu_custom_call.1} parent=1 // pred_check_branch
      %23 = sbr.rel (0) target = $region9
    $region8: #{tpu_custom_call.1} parent=1 // pred_region
      %25 = vsyncadd [#allocation6], 0
      %s27 = sshll.u32 %s1, 4
      %s28 = int_to_ptr.hbm [resolvable:$true] %s27
      %s29 = sshll.u32 [#allocation5], 4
      %s30 = int_to_ptr.vmem [resolvable:$true] %s29
      %32 = dma.hbm_to_vmem [thread:$0]  %s28, 128, %s30, [#allocation6]
    $region9: #{tpu_custom_call.1} parent=1 // pred_fallthru
      _
    // Predicated region
    $region10: #{tpu_custom_call.1} parent=1 // pred_check
      _
    $region11: #{tpu_custom_call.1} parent=1 // pred_check_branch
      %34 = sbr.rel (0) target = $region13
    $region12: #{tpu_custom_call.1} parent=1 // pred_region
      %36 = vsyncadd [#allocation6], 0
      %s38 = sshll.u32 %s2, 4
      %s39 = int_to_ptr.hbm [resolvable:$true] %s38
      %s40 = sshll.u32 [#allocation7], 4
      %s41 = int_to_ptr.vmem [resolvable:$true] %s40
      %43 = dma.hbm_to_vmem [thread:$0]  %s39, 32, %s41, [#allocation6]
    $region13: #{tpu_custom_call.1} parent=1 // pred_fallthru
      _
    // Predicated region
    $region14: #{tpu_custom_call.1} parent=1 // pred_check
      _
    $region15: #{tpu_custom_call.1} parent=1 // pred_check_branch
      %45 = sbr.rel (0) target = $region17
    $region16: #{tpu_custom_call.1} parent=1 // pred_region
      %47 = dma.done [#allocation3], 1024
    $region17: #{tpu_custom_call.1} parent=1 // pred_fallthru
      _
    // Predicated region
    $region18: #{tpu_custom_call.1} parent=1 // pred_check
      _
    $region19: #{tpu_custom_call.1} parent=1 // pred_check_branch
      %49 = sbr.rel (0) target = $region21
    $region20: #{tpu_custom_call.1} parent=1 // pred_region
      %51 = dma.done [#allocation6], 128
    $region21: #{tpu_custom_call.1} parent=1 // pred_fallthru
      _
    // Predicated region
    $region22: #{tpu_custom_call.1} parent=1 // pred_check
      _
    $region23: #{tpu_custom_call.1} parent=1 // pred_check_branch
      %53 = sbr.rel (0) target = $region25
    $region24: #{tpu_custom_call.1} parent=1 // pred_region
      %55 = dma.done [#allocation6], 32
    $region25: #{tpu_custom_call.1} parent=1 // pred_fallthru
      _
    %v56 = vld [vmem:[#allocation2] sm:$0x77]
    %v57 = vld [vmem:[#allocation2 + $0x8] sm:$0x77]
    %v58 = vld [vmem:[#allocation2 + $0x10] sm:$0x77]
    %v59 = vld [vmem:[#allocation2 + $0x18] sm:$0x77]
    %v60 = vld [vmem:[#allocation2 + $0x20] sm:$0x77]
    %v61 = vld [vmem:[#allocation2 + $0x28] sm:$0x77]
    %v62 = vld [vmem:[#allocation2 + $0x30] sm:$0x77]
    %v63 = vld [vmem:[#allocation2 + $0x38] sm:$0x77]
    %v64 = vld [vmem:[#allocation5] sm:$0x77]
    %v65 = vld [vmem:[#allocation7] sm:$0x3]
    %v67 = vperm.slane %v65, 0
    %v68 = vperm.slane %v65, 1
    %79 = vst [vmem:[#allocation1] ss:$2 sm:$0xff] %v56
    %s80 = scalar_lea.vmem [#allocation1], 16
    %81 = vst [vmem:[%s80] ss:$2 sm:$0xff] %v57
    %s82 = scalar_lea.vmem [#allocation1], 32
    %83 = vst [vmem:[%s82] ss:$2 sm:$0xff] %v58
    %s84 = scalar_lea.vmem [#allocation1], 48
    %85 = vst [vmem:[%s84] ss:$2 sm:$0xff] %v59
    %v86 = vld.sshfl [vmem:[#allocation1] sm:$0xff pattern:$0x75316420]
    %v87 = vld.sshfl [vmem:[#allocation1 + $0x8] sm:$0xff pattern:$0x75316420]
    %v88 = vld.sshfl [vmem:[#allocation1 + $0x10] sm:$0xff pattern:$0x75316420]
    %v89 = vld.sshfl [vmem:[#allocation1 + $0x18] sm:$0xff pattern:$0x75316420]
    %v90 = vld.sshfl [vmem:[#allocation1 + $0x20] sm:$0xff pattern:$0x75316420]
    %v91 = vld.sshfl [vmem:[#allocation1 + $0x28] sm:$0xff pattern:$0x75316420]
    %v92 = vld.sshfl [vmem:[#allocation1 + $0x30] sm:$0xff pattern:$0x75316420]
    %v93 = vld.sshfl [vmem:[#allocation1 + $0x38] sm:$0xff pattern:$0x75316420]
    %94 = vst [vmem:[#allocation1] ss:$2 sm:$0xff] %v60
    %95 = vst [vmem:[%s80] ss:$2 sm:$0xff] %v61
    %96 = vst [vmem:[%s82] ss:$2 sm:$0xff] %v62
    %97 = vst [vmem:[%s84] ss:$2 sm:$0xff] %v63
    %v98 = vld.sshfl [vmem:[#allocation1] sm:$0xff pattern:$0x75316420]
    %v99 = vld.sshfl [vmem:[#allocation1 + $0x8] sm:$0xff pattern:$0x75316420]
    %v100 = vld.sshfl [vmem:[#allocation1 + $0x10] sm:$0xff pattern:$0x75316420]
    %v101 = vld.sshfl [vmem:[#allocation1 + $0x18] sm:$0xff pattern:$0x75316420]
    %v102 = vld.sshfl [vmem:[#allocation1 + $0x20] sm:$0xff pattern:$0x75316420]
    %v103 = vld.sshfl [vmem:[#allocation1 + $0x28] sm:$0xff pattern:$0x75316420]
    %v104 = vld.sshfl [vmem:[#allocation1 + $0x30] sm:$0xff pattern:$0x75316420]
    %v105 = vld.sshfl [vmem:[#allocation1 + $0x38] sm:$0xff pattern:$0x75316420]
    %122 = vxpose.xlu0.b32.start [1/16] %v86, 128
    %123 = vxpose.xlu0.b32.cont [2/16] 0.0, 128
    %124 = vxpose.xlu0.b32.cont [3/16] 0.0, 128
    %125 = vxpose.xlu0.b32.cont [4/16] 0.0, 128
    %126 = vxpose.xlu0.b32.cont [5/16] 0.0, 128
    %127 = vxpose.xlu0.b32.cont [6/16] 0.0, 128
    %128 = vxpose.xlu0.b32.cont [7/16] 0.0, 128
    %129 = vxpose.xlu0.b32.cont [8/16] 0.0, 128
    %130 = vxpose.xlu0.b32.cont [9/16] 0.0, 128
    %131 = vxpose.xlu0.b32.cont [10/16] 0.0, 128
    %132 = vxpose.xlu0.b32.cont [11/16] 0.0, 128
    %133 = vxpose.xlu0.b32.cont [12/16] 0.0, 128
    %134 = vxpose.xlu0.b32.cont [13/16] 0.0, 128
    %135 = vxpose.xlu0.b32.cont [14/16] 0.0, 128
    %136 = vxpose.xlu0.b32.cont [15/16] 0.0, 128
    %137 = vxpose.xlu0.b32.end [16/16] 0.0, 128
    %v138 = vpop.trf.xlu0
    %v139 = vpop.trf.xlu0
    %v140 = vpop.trf.xlu0
    %v141 = vpop.trf.xlu0
    %v142 = vpop.trf.xlu0
    %v143 = vpop.trf.xlu0
    %v144 = vpop.trf.xlu0
    %v145 = vpop.trf.xlu0
    %v146 = vpop.trf.xlu0
    %v147 = vpop.trf.xlu0
    %v148 = vpop.trf.xlu0
    %v149 = vpop.trf.xlu0
    %v150 = vpop.trf.xlu0
    %v151 = vpop.trf.xlu0
    %v152 = vpop.trf.xlu0
    %v153 = vpop.trf.xlu0
    %154 = vxpose.xlu0.b32.start [1/16] %v87, 128
    %155 = vxpose.xlu0.b32.cont [2/16] 0.0, 128
    %156 = vxpose.xlu0.b32.cont [3/16] 0.0, 128
    %157 = vxpose.xlu0.b32.cont [4/16] 0.0, 128
    %158 = vxpose.xlu0.b32.cont [5/16] 0.0, 128
    %159 = vxpose.xlu0.b32.cont [6/16] 0.0, 128
    %160 = vxpose.xlu0.b32.cont [7/16] 0.0, 128
    %161 = vxpose.xlu0.b32.cont [8/16] 0.0, 128
    %162 = vxpose.xlu0.b32.cont [9/16] 0.0, 128
    %163 = vxpose.xlu0.b32.cont [10/16] 0.0, 128
    %164 = vxpose.xlu0.b32.cont [11/16] 0.0, 128
    %165 = vxpose.xlu0.b32.cont [12/16] 0.0, 128
    %166 = vxpose.xlu0.b32.cont [13/16] 0.0, 128
    %167 = vxpose.xlu0.b32.cont [14/16] 0.0, 128
    %168 = vxpose.xlu0.b32.cont [15/16] 0.0, 128
    %169 = vxpose.xlu0.b32.end [16/16] 0.0, 128
    %v170 = vpop.trf.xlu0
    %v171 = vpop.trf.xlu0
    %v172 = vpop.trf.xlu0
    %v173 = vpop.trf.xlu0
    %v174 = vpop.trf.xlu0
    %v175 = vpop.trf.xlu0
    %v176 = vpop.trf.xlu0
    %v177 = vpop.trf.xlu0
    %v178 = vpop.trf.xlu0
    %v179 = vpop.trf.xlu0
    %v180 = vpop.trf.xlu0
    %v181 = vpop.trf.xlu0
    %v182 = vpop.trf.xlu0
    %v183 = vpop.trf.xlu0
    %v184 = vpop.trf.xlu0
    %v185 = vpop.trf.xlu0
    %186 = vxpose.xlu0.b32.start [1/16] %v88, 128
    %187 = vxpose.xlu0.b32.cont [2/16] 0.0, 128
    %188 = vxpose.xlu0.b32.cont [3/16] 0.0, 128
    %189 = vxpose.xlu0.b32.cont [4/16] 0.0, 128
    %190 = vxpose.xlu0.b32.cont [5/16] 0.0, 128
    %191 = vxpose.xlu0.b32.cont [6/16] 0.0, 128
    %192 = vxpose.xlu0.b32.cont [7/16] 0.0, 128
    %193 = vxpose.xlu0.b32.cont [8/16] 0.0, 128
    %194 = vxpose.xlu0.b32.cont [9/16] 0.0, 128
    %195 = vxpose.xlu0.b32.cont [10/16] 0.0, 128
    %196 = vxpose.xlu0.b32.cont [11/16] 0.0, 128
    %197 = vxpose.xlu0.b32.cont [12/16] 0.0, 128
    %198 = vxpose.xlu0.b32.cont [13/16] 0.0, 128
    %199 = vxpose.xlu0.b32.cont [14/16] 0.0, 128
    %200 = vxpose.xlu0.b32.cont [15/16] 0.0, 128
    %201 = vxpose.xlu0.b32.end [16/16] 0.0, 128
    %v202 = vpop.trf.xlu0
    %v203 = vpop.trf.xlu0
    %v204 = vpop.trf.xlu0
    %v205 = vpop.trf.xlu0
    %v206 = vpop.trf.xlu0
    %v207 = vpop.trf.xlu0
    %v208 = vpop.trf.xlu0
    %v209 = vpop.trf.xlu0
    %v210 = vpop.trf.xlu0
    %v211 = vpop.trf.xlu0
    %v212 = vpop.trf.xlu0
    %v213 = vpop.trf.xlu0
    %v214 = vpop.trf.xlu0
    %v215 = vpop.trf.xlu0
    %v216 = vpop.trf.xlu0
    %v217 = vpop.trf.xlu0
    %218 = vxpose.xlu0.b32.start [1/16] %v89, 128
    %219 = vxpose.xlu0.b32.cont [2/16] 0.0, 128
    %220 = vxpose.xlu0.b32.cont [3/16] 0.0, 128
    %221 = vxpose.xlu0.b32.cont [4/16] 0.0, 128
    %222 = vxpose.xlu0.b32.cont [5/16] 0.0, 128
    %223 = vxpose.xlu0.b32.cont [6/16] 0.0, 128
    %224 = vxpose.xlu0.b32.cont [7/16] 0.0, 128
    %225 = vxpose.xlu0.b32.cont [8/16] 0.0, 128
    %226 = vxpose.xlu0.b32.cont [9/16] 0.0, 128
    %227 = vxpose.xlu0.b32.cont [10/16] 0.0, 128
    %228 = vxpose.xlu0.b32.cont [11/16] 0.0, 128
    %229 = vxpose.xlu0.b32.cont [12/16] 0.0, 128
    %230 = vxpose.xlu0.b32.cont [13/16] 0.0, 128
    %231 = vxpose.xlu0.b32.cont [14/16] 0.0, 128
    %232 = vxpose.xlu0.b32.cont [15/16] 0.0, 128
    %233 = vxpose.xlu0.b32.end [16/16] 0.0, 128
    %v234 = vpop.trf.xlu0
    %v235 = vpop.trf.xlu0
    %v236 = vpop.trf.xlu0
    %v237 = vpop.trf.xlu0
    %v238 = vpop.trf.xlu0
    %v239 = vpop.trf.xlu0
    %v240 = vpop.trf.xlu0
    %v241 = vpop.trf.xlu0
    %v242 = vpop.trf.xlu0
    %v243 = vpop.trf.xlu0
    %v244 = vpop.trf.xlu0
    %v245 = vpop.trf.xlu0
    %v246 = vpop.trf.xlu0
    %v247 = vpop.trf.xlu0
    %v248 = vpop.trf.xlu0
    %v249 = vpop.trf.xlu0
    %250 = vxpose.xlu0.b32.start [1/16] %v90, 128
    %251 = vxpose.xlu0.b32.cont [2/16] 0.0, 128
    %252 = vxpose.xlu0.b32.cont [3/16] 0.0, 128
    %253 = vxpose.xlu0.b32.cont [4/16] 0.0, 128
    %254 = vxpose.xlu0.b32.cont [5/16] 0.0, 128
    %255 = vxpose.xlu0.b32.cont [6/16] 0.0, 128
    %256 = vxpose.xlu0.b32.cont [7/16] 0.0, 128
    %257 = vxpose.xlu0.b32.cont [8/16] 0.0, 128
    %258 = vxpose.xlu0.b32.cont [9/16] 0.0, 128
    %259 = vxpose.xlu0.b32.cont [10/16] 0.0, 128
    %260 = vxpose.xlu0.b32.cont [11/16] 0.0, 128
    %261 = vxpose.xlu0.b32.cont [12/16] 0.0, 128
    %262 = vxpose.xlu0.b32.cont [13/16] 0.0, 128
    %263 = vxpose.xlu0.b32.cont [14/16] 0.0, 128
    %264 = vxpose.xlu0.b32.cont [15/16] 0.0, 128
    %265 = vxpose.xlu0.b32.end [16/16] 0.0, 128
    %v266 = vpop.trf.xlu0
    %v267 = vpop.trf.xlu0
    %v268 = vpop.trf.xlu0
    %v269 = vpop.trf.xlu0
    %v270 = vpop.trf.xlu0
    %v271 = vpop.trf.xlu0
    %v272 = vpop.trf.xlu0
    %v273 = vpop.trf.xlu0
    %v274 = vpop.trf.xlu0
    %v275 = vpop.trf.xlu0
    %v276 = vpop.trf.xlu0
    %v277 = vpop.trf.xlu0
    %v278 = vpop.trf.xlu0
    %v279 = vpop.trf.xlu0
    %v280 = vpop.trf.xlu0
    %v281 = vpop.trf.xlu0
    %282 = vxpose.xlu0.b32.start [1/16] %v91, 128
    %283 = vxpose.xlu0.b32.cont [2/16] 0.0, 128
    %284 = vxpose.xlu0.b32.cont [3/16] 0.0, 128
    %285 = vxpose.xlu0.b32.cont [4/16] 0.0, 128
    %286 = vxpose.xlu0.b32.cont [5/16] 0.0, 128
    %287 = vxpose.xlu0.b32.cont [6/16] 0.0, 128
    %288 = vxpose.xlu0.b32.cont [7/16] 0.0, 128
    %289 = vxpose.xlu0.b32.cont [8/16] 0.0, 128
    %290 = vxpose.xlu0.b32.cont [9/16] 0.0, 128
    %291 = vxpose.xlu0.b32.cont [10/16] 0.0, 128
    %292 = vxpose.xlu0.b32.cont [11/16] 0.0, 128
    %293 = vxpose.xlu0.b32.cont [12/16] 0.0, 128
    %294 = vxpose.xlu0.b32.cont [13/16] 0.0, 128
    %295 = vxpose.xlu0.b32.cont [14/16] 0.0, 128
    %296 = vxpose.xlu0.b32.cont [15/16] 0.0, 128
    %297 = vxpose.xlu0.b32.end [16/16] 0.0, 128
    %v298 = vpop.trf.xlu0
    %v299 = vpop.trf.xlu0
    %v300 = vpop.trf.xlu0
    %v301 = vpop.trf.xlu0
    %v302 = vpop.trf.xlu0
    %v303 = vpop.trf.xlu0
    %v304 = vpop.trf.xlu0
    %v305 = vpop.trf.xlu0
    %v306 = vpop.trf.xlu0
    %v307 = vpop.trf.xlu0
    %v308 = vpop.trf.xlu0
    %v309 = vpop.trf.xlu0
    %v310 = vpop.trf.xlu0
    %v311 = vpop.trf.xlu0
    %v312 = vpop.trf.xlu0
    %v313 = vpop.trf.xlu0
    %314 = vxpose.xlu0.b32.start [1/16] %v92, 128
    %315 = vxpose.xlu0.b32.cont [2/16] 0.0, 128
    %316 = vxpose.xlu0.b32.cont [3/16] 0.0, 128
    %317 = vxpose.xlu0.b32.cont [4/16] 0.0, 128
    %318 = vxpose.xlu0.b32.cont [5/16] 0.0, 128
    %319 = vxpose.xlu0.b32.cont [6/16] 0.0, 128
    %320 = vxpose.xlu0.b32.cont [7/16] 0.0, 128
    %321 = vxpose.xlu0.b32.cont [8/16] 0.0, 128
    %322 = vxpose.xlu0.b32.cont [9/16] 0.0, 128
    %323 = vxpose.xlu0.b32.cont [10/16] 0.0, 128
    %324 = vxpose.xlu0.b32.cont [11/16] 0.0, 128
    %325 = vxpose.xlu0.b32.cont [12/16] 0.0, 128
    %326 = vxpose.xlu0.b32.cont [13/16] 0.0, 128
    %327 = vxpose.xlu0.b32.cont [14/16] 0.0, 128
    %328 = vxpose.xlu0.b32.cont [15/16] 0.0, 128
    %329 = vxpose.xlu0.b32.end [16/16] 0.0, 128
    %v330 = vpop.trf.xlu0
    %v331 = vpop.trf.xlu0
    %v332 = vpop.trf.xlu0
    %v333 = vpop.trf.xlu0
    %v334 = vpop.trf.xlu0
    %v335 = vpop.trf.xlu0
    %v336 = vpop.trf.xlu0
    %v337 = vpop.trf.xlu0
    %v338 = vpop.trf.xlu0
    %v339 = vpop.trf.xlu0
    %v340 = vpop.trf.xlu0
    %v341 = vpop.trf.xlu0
    %v342 = vpop.trf.xlu0
    %v343 = vpop.trf.xlu0
    %v344 = vpop.trf.xlu0
    %v345 = vpop.trf.xlu0
    %346 = vxpose.xlu0.b32.start [1/16] %v93, 128
    %347 = vxpose.xlu0.b32.cont [2/16] 0.0, 128
    %348 = vxpose.xlu0.b32.cont [3/16] 0.0, 128
    %349 = vxpose.xlu0.b32.cont [4/16] 0.0, 128
    %350 = vxpose.xlu0.b32.cont [5/16] 0.0, 128
    %351 = vxpose.xlu0.b32.cont [6/16] 0.0, 128
    %352 = vxpose.xlu0.b32.cont [7/16] 0.0, 128
    %353 = vxpose.xlu0.b32.cont [8/16] 0.0, 128
    %354 = vxpose.xlu0.b32.cont [9/16] 0.0, 128
    %355 = vxpose.xlu0.b32.cont [10/16] 0.0, 128
    %356 = vxpose.xlu0.b32.cont [11/16] 0.0, 128
    %357 = vxpose.xlu0.b32.cont [12/16] 0.0, 128
    %358 = vxpose.xlu0.b32.cont [13/16] 0.0, 128
    %359 = vxpose.xlu0.b32.cont [14/16] 0.0, 128
    %360 = vxpose.xlu0.b32.cont [15/16] 0.0, 128
    %361 = vxpose.xlu0.b32.end [16/16] 0.0, 128
    %v362 = vpop.trf.xlu0
    %v363 = vpop.trf.xlu0
    %v364 = vpop.trf.xlu0
    %v365 = vpop.trf.xlu0
    %v366 = vpop.trf.xlu0
    %v367 = vpop.trf.xlu0
    %v368 = vpop.trf.xlu0
    %v369 = vpop.trf.xlu0
    %v370 = vpop.trf.xlu0
    %v371 = vpop.trf.xlu0
    %v372 = vpop.trf.xlu0
    %v373 = vpop.trf.xlu0
    %v374 = vpop.trf.xlu0
    %v375 = vpop.trf.xlu0
    %v376 = vpop.trf.xlu0
    %v377 = vpop.trf.xlu0
    %378 = vxpose.xlu0.b32.start [1/16] %v98, 128
    %379 = vxpose.xlu0.b32.cont [2/16] 0.0, 128
    %380 = vxpose.xlu0.b32.cont [3/16] 0.0, 128
    %381 = vxpose.xlu0.b32.cont [4/16] 0.0, 128
    %382 = vxpose.xlu0.b32.cont [5/16] 0.0, 128
    %383 = vxpose.xlu0.b32.cont [6/16] 0.0, 128
    %384 = vxpose.xlu0.b32.cont [7/16] 0.0, 128
    %385 = vxpose.xlu0.b32.cont [8/16] 0.0, 128
    %386 = vxpose.xlu0.b32.cont [9/16] 0.0, 128
    %387 = vxpose.xlu0.b32.cont [10/16] 0.0, 128
    %388 = vxpose.xlu0.b32.cont [11/16] 0.0, 128
    %389 = vxpose.xlu0.b32.cont [12/16] 0.0, 128
    %390 = vxpose.xlu0.b32.cont [13/16] 0.0, 128
    %391 = vxpose.xlu0.b32.cont [14/16] 0.0, 128
    %392 = vxpose.xlu0.b32.cont [15/16] 0.0, 128
    %393 = vxpose.xlu0.b32.end [16/16] 0.0, 128
    %v394 = vpop.trf.xlu0
    %v395 = vpop.trf.xlu0
    %v396 = vpop.trf.xlu0
    %v397 = vpop.trf.xlu0
    %v398 = vpop.trf.xlu0
    %v399 = vpop.trf.xlu0
    %v400 = vpop.trf.xlu0
    %v401 = vpop.trf.xlu0
    %v402 = vpop.trf.xlu0
    %v403 = vpop.trf.xlu0
    %v404 = vpop.trf.xlu0
    %v405 = vpop.trf.xlu0
    %v406 = vpop.trf.xlu0
    %v407 = vpop.trf.xlu0
    %v408 = vpop.trf.xlu0
    %v409 = vpop.trf.xlu0
    %410 = vxpose.xlu0.b32.start [1/16] %v99, 128
    %411 = vxpose.xlu0.b32.cont [2/16] 0.0, 128
    %412 = vxpose.xlu0.b32.cont [3/16] 0.0, 128
    %413 = vxpose.xlu0.b32.cont [4/16] 0.0, 128
    %414 = vxpose.xlu0.b32.cont [5/16] 0.0, 128
    %415 = vxpose.xlu0.b32.cont [6/16] 0.0, 128
    %416 = vxpose.xlu0.b32.cont [7/16] 0.0, 128
    %417 = vxpose.xlu0.b32.cont [8/16] 0.0, 128
    %418 = vxpose.xlu0.b32.cont [9/16] 0.0, 128
    %419 = vxpose.xlu0.b32.cont [10/16] 0.0, 128
    %420 = vxpose.xlu0.b32.cont [11/16] 0.0, 128
    %421 = vxpose.xlu0.b32.cont [12/16] 0.0, 128
    %422 = vxpose.xlu0.b32.cont [13/16] 0.0, 128
    %423 = vxpose.xlu0.b32.cont [14/16] 0.0, 128
    %424 = vxpose.xlu0.b32.cont [15/16] 0.0, 128
    %425 = vxpose.xlu0.b32.end [16/16] 0.0, 128
    %v426 = vpop.trf.xlu0
    %v427 = vpop.trf.xlu0
    %v428 = vpop.trf.xlu0
    %v429 = vpop.trf.xlu0
    %v430 = vpop.trf.xlu0
    %v431 = vpop.trf.xlu0
    %v432 = vpop.trf.xlu0
    %v433 = vpop.trf.xlu0
    %v434 = vpop.trf.xlu0
    %v435 = vpop.trf.xlu0
    %v436 = vpop.trf.xlu0
    %v437 = vpop.trf.xlu0
    %v438 = vpop.trf.xlu0
    %v439 = vpop.trf.xlu0
    %v440 = vpop.trf.xlu0
    %v441 = vpop.trf.xlu0
    %442 = vxpose.xlu0.b32.start [1/16] %v100, 128
    %443 = vxpose.xlu0.b32.cont [2/16] 0.0, 128
    %444 = vxpose.xlu0.b32.cont [3/16] 0.0, 128
    %445 = vxpose.xlu0.b32.cont [4/16] 0.0, 128
    %446 = vxpose.xlu0.b32.cont [5/16] 0.0, 128
    %447 = vxpose.xlu0.b32.cont [6/16] 0.0, 128
    %448 = vxpose.xlu0.b32.cont [7/16] 0.0, 128
    %449 = vxpose.xlu0.b32.cont [8/16] 0.0, 128
    %450 = vxpose.xlu0.b32.cont [9/16] 0.0, 128
    %451 = vxpose.xlu0.b32.cont [10/16] 0.0, 128
    %452 = vxpose.xlu0.b32.cont [11/16] 0.0, 128
    %453 = vxpose.xlu0.b32.cont [12/16] 0.0, 128
    %454 = vxpose.xlu0.b32.cont [13/16] 0.0, 128
    %455 = vxpose.xlu0.b32.cont [14/16] 0.0, 128
    %456 = vxpose.xlu0.b32.cont [15/16] 0.0, 128
    %457 = vxpose.xlu0.b32.end [16/16] 0.0, 128
    %v458 = vpop.trf.xlu0
    %v459 = vpop.trf.xlu0
    %v460 = vpop.trf.xlu0
    %v461 = vpop.trf.xlu0
    %v462 = vpop.trf.xlu0
    %v463 = vpop.trf.xlu0
    %v464 = vpop.trf.xlu0
    %v465 = vpop.trf.xlu0
    %v466 = vpop.trf.xlu0
    %v467 = vpop.trf.xlu0
    %v468 = vpop.trf.xlu0
    %v469 = vpop.trf.xlu0
    %v470 = vpop.trf.xlu0
    %v471 = vpop.trf.xlu0
    %v472 = vpop.trf.xlu0
    %v473 = vpop.trf.xlu0
    %474 = vxpose.xlu0.b32.start [1/16] %v101, 128
    %475 = vxpose.xlu0.b32.cont [2/16] 0.0, 128
    %476 = vxpose.xlu0.b32.cont [3/16] 0.0, 128
    %477 = vxpose.xlu0.b32.cont [4/16] 0.0, 128
    %478 = vxpose.xlu0.b32.cont [5/16] 0.0, 128
    %479 = vxpose.xlu0.b32.cont [6/16] 0.0, 128
    %480 = vxpose.xlu0.b32.cont [7/16] 0.0, 128
    %481 = vxpose.xlu0.b32.cont [8/16] 0.0, 128
    %482 = vxpose.xlu0.b32.cont [9/16] 0.0, 128
    %483 = vxpose.xlu0.b32.cont [10/16] 0.0, 128
    %484 = vxpose.xlu0.b32.cont [11/16] 0.0, 128
    %485 = vxpose.xlu0.b32.cont [12/16] 0.0, 128
    %486 = vxpose.xlu0.b32.cont [13/16] 0.0, 128
    %487 = vxpose.xlu0.b32.cont [14/16] 0.0, 128
    %488 = vxpose.xlu0.b32.cont [15/16] 0.0, 128
    %489 = vxpose.xlu0.b32.end [16/16] 0.0, 128
    %v490 = vpop.trf.xlu0
    %v491 = vpop.trf.xlu0
    %v492 = vpop.trf.xlu0
    %v493 = vpop.trf.xlu0
    %v494 = vpop.trf.xlu0
    %v495 = vpop.trf.xlu0
    %v496 = vpop.trf.xlu0
    %v497 = vpop.trf.xlu0
    %v498 = vpop.trf.xlu0
    %v499 = vpop.trf.xlu0
    %v500 = vpop.trf.xlu0
    %v501 = vpop.trf.xlu0
    %v502 = vpop.trf.xlu0
    %v503 = vpop.trf.xlu0
    %v504 = vpop.trf.xlu0
    %v505 = vpop.trf.xlu0
    %506 = vxpose.xlu0.b32.start [1/16] %v102, 128
    %507 = vxpose.xlu0.b32.cont [2/16] 0.0, 128
    %508 = vxpose.xlu0.b32.cont [3/16] 0.0, 128
    %509 = vxpose.xlu0.b32.cont [4/16] 0.0, 128
    %510 = vxpose.xlu0.b32.cont [5/16] 0.0, 128
    %511 = vxpose.xlu0.b32.cont [6/16] 0.0, 128
    %512 = vxpose.xlu0.b32.cont [7/16] 0.0, 128
    %513 = vxpose.xlu0.b32.cont [8/16] 0.0, 128
    %514 = vxpose.xlu0.b32.cont [9/16] 0.0, 128
    %515 = vxpose.xlu0.b32.cont [10/16] 0.0, 128
    %516 = vxpose.xlu0.b32.cont [11/16] 0.0, 128
    %517 = vxpose.xlu0.b32.cont [12/16] 0.0, 128
    %518 = vxpose.xlu0.b32.cont [13/16] 0.0, 128
    %519 = vxpose.xlu0.b32.cont [14/16] 0.0, 128
    %520 = vxpose.xlu0.b32.cont [15/16] 0.0, 128
    %521 = vxpose.xlu0.b32.end [16/16] 0.0, 128
    %v522 = vpop.trf.xlu0
    %v523 = vpop.trf.xlu0
    %v524 = vpop.trf.xlu0
    %v525 = vpop.trf.xlu0
    %v526 = vpop.trf.xlu0
    %v527 = vpop.trf.xlu0
    %v528 = vpop.trf.xlu0
    %v529 = vpop.trf.xlu0
    %v530 = vpop.trf.xlu0
    %v531 = vpop.trf.xlu0
    %v532 = vpop.trf.xlu0
    %v533 = vpop.trf.xlu0
    %v534 = vpop.trf.xlu0
    %v535 = vpop.trf.xlu0
    %v536 = vpop.trf.xlu0
    %v537 = vpop.trf.xlu0
    %538 = vxpose.xlu0.b32.start [1/16] %v103, 128
    %539 = vxpose.xlu0.b32.cont [2/16] 0.0, 128
    %540 = vxpose.xlu0.b32.cont [3/16] 0.0, 128
    %541 = vxpose.xlu0.b32.cont [4/16] 0.0, 128
    %542 = vxpose.xlu0.b32.cont [5/16] 0.0, 128
    %543 = vxpose.xlu0.b32.cont [6/16] 0.0, 128
    %544 = vxpose.xlu0.b32.cont [7/16] 0.0, 128
    %545 = vxpose.xlu0.b32.cont [8/16] 0.0, 128
    %546 = vxpose.xlu0.b32.cont [9/16] 0.0, 128
    %547 = vxpose.xlu0.b32.cont [10/16] 0.0, 128
    %548 = vxpose.xlu0.b32.cont [11/16] 0.0, 128
    %549 = vxpose.xlu0.b32.cont [12/16] 0.0, 128
    %550 = vxpose.xlu0.b32.cont [13/16] 0.0, 128
    %551 = vxpose.xlu0.b32.cont [14/16] 0.0, 128
    %552 = vxpose.xlu0.b32.cont [15/16] 0.0, 128
    %553 = vxpose.xlu0.b32.end [16/16] 0.0, 128
    %v554 = vpop.trf.xlu0
    %v555 = vpop.trf.xlu0
    %v556 = vpop.trf.xlu0
    %v557 = vpop.trf.xlu0
    %v558 = vpop.trf.xlu0
    %v559 = vpop.trf.xlu0
    %v560 = vpop.trf.xlu0
    %v561 = vpop.trf.xlu0
    %v562 = vpop.trf.xlu0
    %v563 = vpop.trf.xlu0
    %v564 = vpop.trf.xlu0
    %v565 = vpop.trf.xlu0
    %v566 = vpop.trf.xlu0
    %v567 = vpop.trf.xlu0
    %v568 = vpop.trf.xlu0
    %v569 = vpop.trf.xlu0
    %570 = vxpose.xlu0.b32.start [1/16] %v104, 128
    %571 = vxpose.xlu0.b32.cont [2/16] 0.0, 128
    %572 = vxpose.xlu0.b32.cont [3/16] 0.0, 128
    %573 = vxpose.xlu0.b32.cont [4/16] 0.0, 128
    %574 = vxpose.xlu0.b32.cont [5/16] 0.0, 128
    %575 = vxpose.xlu0.b32.cont [6/16] 0.0, 128
    %576 = vxpose.xlu0.b32.cont [7/16] 0.0, 128
    %577 = vxpose.xlu0.b32.cont [8/16] 0.0, 128
    %578 = vxpose.xlu0.b32.cont [9/16] 0.0, 128
    %579 = vxpose.xlu0.b32.cont [10/16] 0.0, 128
    %580 = vxpose.xlu0.b32.cont [11/16] 0.0, 128
    %581 = vxpose.xlu0.b32.cont [12/16] 0.0, 128
    %582 = vxpose.xlu0.b32.cont [13/16] 0.0, 128
    %583 = vxpose.xlu0.b32.cont [14/16] 0.0, 128
    %584 = vxpose.xlu0.b32.cont [15/16] 0.0, 128
    %585 = vxpose.xlu0.b32.end [16/16] 0.0, 128
    %v586 = vpop.trf.xlu0
    %v587 = vpop.trf.xlu0
    %v588 = vpop.trf.xlu0
    %v589 = vpop.trf.xlu0
    %v590 = vpop.trf.xlu0
    %v591 = vpop.trf.xlu0
    %v592 = vpop.trf.xlu0
    %v593 = vpop.trf.xlu0
    %v594 = vpop.trf.xlu0
    %v595 = vpop.trf.xlu0
    %v596 = vpop.trf.xlu0
    %v597 = vpop.trf.xlu0
    %v598 = vpop.trf.xlu0
    %v599 = vpop.trf.xlu0
    %v600 = vpop.trf.xlu0
    %v601 = vpop.trf.xlu0
    %602 = vxpose.xlu0.b32.start [1/16] %v105, 128
    %603 = vxpose.xlu0.b32.cont [2/16] 0.0, 128
    %604 = vxpose.xlu0.b32.cont [3/16] 0.0, 128
    %605 = vxpose.xlu0.b32.cont [4/16] 0.0, 128
    %606 = vxpose.xlu0.b32.cont [5/16] 0.0, 128
    %607 = vxpose.xlu0.b32.cont [6/16] 0.0, 128
    %608 = vxpose.xlu0.b32.cont [7/16] 0.0, 128
    %609 = vxpose.xlu0.b32.cont [8/16] 0.0, 128
    %610 = vxpose.xlu0.b32.cont [9/16] 0.0, 128
    %611 = vxpose.xlu0.b32.cont [10/16] 0.0, 128
    %612 = vxpose.xlu0.b32.cont [11/16] 0.0, 128
    %613 = vxpose.xlu0.b32.cont [12/16] 0.0, 128
    %614 = vxpose.xlu0.b32.cont [13/16] 0.0, 128
    %615 = vxpose.xlu0.b32.cont [14/16] 0.0, 128
    %616 = vxpose.xlu0.b32.cont [15/16] 0.0, 128
    %617 = vxpose.xlu0.b32.end [16/16] 0.0, 128
    %v618 = vpop.trf.xlu0
    %v619 = vpop.trf.xlu0
    %v620 = vpop.trf.xlu0
    %v621 = vpop.trf.xlu0
    %v622 = vpop.trf.xlu0
    %v623 = vpop.trf.xlu0
    %v624 = vpop.trf.xlu0
    %v625 = vpop.trf.xlu0
    %v626 = vpop.trf.xlu0
    %v627 = vpop.trf.xlu0
    %v628 = vpop.trf.xlu0
    %v629 = vpop.trf.xlu0
    %v630 = vpop.trf.xlu0
    %v631 = vpop.trf.xlu0
    %v632 = vpop.trf.xlu0
    %v633 = vpop.trf.xlu0
    %635 = vst [vmem:[#allocation1] ss:$2 sm:$0xff] %v64
    %v636 = vld.sshfl [vmem:[#allocation1] sm:$0xff pattern:$0x75316420]
    %v637 = vld.sshfl [vmem:[#allocation1 + $0x8] sm:$0xff pattern:$0x75316420]
    %vm638 = vcmask 23552
    %v640 = vsel %vm638, %v138, 0
    %v643 = vsel %vm638, %v139, 0
    %v646 = vsel %vm638, %v140, 0
    %v649 = vsel %vm638, %v141, 0
    %v652 = vsel %vm638, %v142, 0
    %v655 = vsel %vm638, %v143, 0
    %v658 = vsel %vm638, %v144, 0
    %v661 = vsel %vm638, %v145, 0
    %v664 = vsel %vm638, %v146, 0
    %v667 = vsel %vm638, %v147, 0
    %v670 = vsel %vm638, %v148, 0
    %v673 = vsel %vm638, %v149, 0
    %v676 = vsel %vm638, %v150, 0
    %v679 = vsel %vm638, %v151, 0
    %v682 = vsel %vm638, %v152, 0
    %v685 = vsel %vm638, %v153, 0
    %v688 = vsel %vm638, %v170, 0
    %v691 = vsel %vm638, %v171, 0
    %v694 = vsel %vm638, %v172, 0
    %v697 = vsel %vm638, %v173, 0
    %v700 = vsel %vm638, %v174, 0
    %v703 = vsel %vm638, %v175, 0
    %v706 = vsel %vm638, %v176, 0
    %v709 = vsel %vm638, %v177, 0
    %v712 = vsel %vm638, %v178, 0
    %v715 = vsel %vm638, %v179, 0
    %v718 = vsel %vm638, %v180, 0
    %v721 = vsel %vm638, %v181, 0
    %v724 = vsel %vm638, %v182, 0
    %v727 = vsel %vm638, %v183, 0
    %v730 = vsel %vm638, %v184, 0
    %v733 = vsel %vm638, %v185, 0
    %v736 = vsel %vm638, %v202, 0
    %v739 = vsel %vm638, %v203, 0
    %v742 = vsel %vm638, %v204, 0
    %v745 = vsel %vm638, %v205, 0
    %v748 = vsel %vm638, %v206, 0
    %v751 = vsel %vm638, %v207, 0
    %v754 = vsel %vm638, %v208, 0
    %v757 = vsel %vm638, %v209, 0
    %v760 = vsel %vm638, %v210, 0
    %v763 = vsel %vm638, %v211, 0
    %v766 = vsel %vm638, %v212, 0
    %v769 = vsel %vm638, %v213, 0
    %v772 = vsel %vm638, %v214, 0
    %v775 = vsel %vm638, %v215, 0
    %v778 = vsel %vm638, %v216, 0
    %v781 = vsel %vm638, %v217, 0
    %v784 = vsel %vm638, %v234, 0
    %v787 = vsel %vm638, %v235, 0
    %v790 = vsel %vm638, %v236, 0
    %v793 = vsel %vm638, %v237, 0
    %v796 = vsel %vm638, %v238, 0
    %v799 = vsel %vm638, %v239, 0
    %v802 = vsel %vm638, %v240, 0
    %v805 = vsel %vm638, %v241, 0
    %v808 = vsel %vm638, %v242, 0
    %v811 = vsel %vm638, %v243, 0
    %v814 = vsel %vm638, %v244, 0
    %v817 = vsel %vm638, %v245, 0
    %v820 = vsel %vm638, %v246, 0
    %v823 = vsel %vm638, %v247, 0
    %v826 = vsel %vm638, %v248, 0
    %v829 = vsel %vm638, %v249, 0
    %v832 = vsel %vm638, %v266, 0
    %v835 = vsel %vm638, %v267, 0
    %v838 = vsel %vm638, %v268, 0
    %v841 = vsel %vm638, %v269, 0
    %v844 = vsel %vm638, %v270, 0
    %v847 = vsel %vm638, %v271, 0
    %v850 = vsel %vm638, %v272, 0
    %v853 = vsel %vm638, %v273, 0
    %v856 = vsel %vm638, %v274, 0
    %v859 = vsel %vm638, %v275, 0
    %v862 = vsel %vm638, %v276, 0
    %v865 = vsel %vm638, %v277, 0
    %v868 = vsel %vm638, %v278, 0
    %v871 = vsel %vm638, %v279, 0
    %v874 = vsel %vm638, %v280, 0
    %v877 = vsel %vm638, %v281, 0
    %v880 = vsel %vm638, %v298, 0
    %v883 = vsel %vm638, %v299, 0
    %v886 = vsel %vm638, %v300, 0
    %v889 = vsel %vm638, %v301, 0
    %v892 = vsel %vm638, %v302, 0
    %v895 = vsel %vm638, %v303, 0
    %v898 = vsel %vm638, %v304, 0
    %v901 = vsel %vm638, %v305, 0
    %v904 = vsel %vm638, %v306, 0
    %v907 = vsel %vm638, %v307, 0
    %v910 = vsel %vm638, %v308, 0
    %v913 = vsel %vm638, %v309, 0
    %v916 = vsel %vm638, %v310, 0
    %v919 = vsel %vm638, %v311, 0
    %v922 = vsel %vm638, %v312, 0
    %v925 = vsel %vm638, %v313, 0
    %v928 = vsel %vm638, %v330, 0
    %v931 = vsel %vm638, %v331, 0
    %v934 = vsel %vm638, %v332, 0
    %v937 = vsel %vm638, %v333, 0
    %v940 = vsel %vm638, %v334, 0
    %v943 = vsel %vm638, %v335, 0
    %v946 = vsel %vm638, %v336, 0
    %v949 = vsel %vm638, %v337, 0
    %v952 = vsel %vm638, %v338, 0
    %v955 = vsel %vm638, %v339, 0
    %v958 = vsel %vm638, %v340, 0
    %v961 = vsel %vm638, %v341, 0
    %v964 = vsel %vm638, %v342, 0
    %v967 = vsel %vm638, %v343, 0
    %v970 = vsel %vm638, %v344, 0
    %v973 = vsel %vm638, %v345, 0
    %v976 = vsel %vm638, %v362, 0
    %v979 = vsel %vm638, %v363, 0
    %v982 = vsel %vm638, %v364, 0
    %v985 = vsel %vm638, %v365, 0
    %v988 = vsel %vm638, %v366, 0
    %v991 = vsel %vm638, %v367, 0
    %v994 = vsel %vm638, %v368, 0
    %v997 = vsel %vm638, %v369, 0
    %v1000 = vsel %vm638, %v370, 0
    %v1003 = vsel %vm638, %v371, 0
    %v1006 = vsel %vm638, %v372, 0
    %v1009 = vsel %vm638, %v373, 0
    %v1012 = vsel %vm638, %v374, 0
    %v1015 = vsel %vm638, %v375, 0
    %v1018 = vsel %vm638, %v376, 0
    %v1021 = vsel %vm638, %v377, 0
    %v1024 = vsel %vm638, %v394, 0
    %v1027 = vsel %vm638, %v395, 0
    %v1030 = vsel %vm638, %v396, 0
    %v1033 = vsel %vm638, %v397, 0
    %v1036 = vsel %vm638, %v398, 0
    %v1039 = vsel %vm638, %v399, 0
    %v1042 = vsel %vm638, %v400, 0
    %v1045 = vsel %vm638, %v401, 0
    %v1048 = vsel %vm638, %v402, 0
    %v1051 = vsel %vm638, %v403, 0
    %v1054 = vsel %vm638, %v404, 0
    %v1057 = vsel %vm638, %v405, 0
    %v1060 = vsel %vm638, %v406, 0
    %v1063 = vsel %vm638, %v407, 0
    %v1066 = vsel %vm638, %v408, 0
    %v1069 = vsel %vm638, %v409, 0
    %v1072 = vsel %vm638, %v426, 0
    %v1075 = vsel %vm638, %v427, 0
    %v1078 = vsel %vm638, %v428, 0
    %v1081 = vsel %vm638, %v429, 0
    %v1084 = vsel %vm638, %v430, 0
    %v1087 = vsel %vm638, %v431, 0
    %v1090 = vsel %vm638, %v432, 0
    %v1093 = vsel %vm638, %v433, 0
    %v1096 = vsel %vm638, %v434, 0
    %v1099 = vsel %vm638, %v435, 0
    %v1102 = vsel %vm638, %v436, 0
    %v1105 = vsel %vm638, %v437, 0
    %v1108 = vsel %vm638, %v438, 0
    %v1111 = vsel %vm638, %v439, 0
    %v1114 = vsel %vm638, %v440, 0
    %v1117 = vsel %vm638, %v441, 0
    %v1120 = vsel %vm638, %v458, 0
    %v1123 = vsel %vm638, %v459, 0
    %v1126 = vsel %vm638, %v460, 0
    %v1129 = vsel %vm638, %v461, 0
    %v1132 = vsel %vm638, %v462, 0
    %v1135 = vsel %vm638, %v463, 0
    %v1138 = vsel %vm638, %v464, 0
    %v1141 = vsel %vm638, %v465, 0
    %v1144 = vsel %vm638, %v466, 0
    %v1147 = vsel %vm638, %v467, 0
    %v1150 = vsel %vm638, %v468, 0
    %v1153 = vsel %vm638, %v469, 0
    %v1156 = vsel %vm638, %v470, 0
    %v1159 = vsel %vm638, %v471, 0
    %v1162 = vsel %vm638, %v472, 0
    %v1165 = vsel %vm638, %v473, 0
    %v1168 = vsel %vm638, %v490, 0
    %v1171 = vsel %vm638, %v491, 0
    %v1174 = vsel %vm638, %v492, 0
    %v1177 = vsel %vm638, %v493, 0
    %v1180 = vsel %vm638, %v494, 0
    %v1183 = vsel %vm638, %v495, 0
    %v1186 = vsel %vm638, %v496, 0
    %v1189 = vsel %vm638, %v497, 0
    %v1192 = vsel %vm638, %v498, 0
    %v1195 = vsel %vm638, %v499, 0
    %v1198 = vsel %vm638, %v500, 0
    %v1201 = vsel %vm638, %v501, 0
    %v1204 = vsel %vm638, %v502, 0
    %v1207 = vsel %vm638, %v503, 0
    %v1210 = vsel %vm638, %v504, 0
    %v1213 = vsel %vm638, %v505, 0
    %v1216 = vsel %vm638, %v522, 0
    %v1219 = vsel %vm638, %v523, 0
    %v1222 = vsel %vm638, %v524, 0
    %v1225 = vsel %vm638, %v525, 0
    %v1228 = vsel %vm638, %v526, 0
    %v1231 = vsel %vm638, %v527, 0
    %v1234 = vsel %vm638, %v528, 0
    %v1237 = vsel %vm638, %v529, 0
    %v1240 = vsel %vm638, %v530, 0
    %v1243 = vsel %vm638, %v531, 0
    %v1246 = vsel %vm638, %v532, 0
    %v1249 = vsel %vm638, %v533, 0
    %v1252 = vsel %vm638, %v534, 0
    %v1255 = vsel %vm638, %v535, 0
    %v1258 = vsel %vm638, %v536, 0
    %v1261 = vsel %vm638, %v537, 0
    %v1264 = vsel %vm638, %v554, 0
    %v1267 = vsel %vm638, %v555, 0
    %v1270 = vsel %vm638, %v556, 0
    %v1273 = vsel %vm638, %v557, 0
    %v1276 = vsel %vm638, %v558, 0
    %v1279 = vsel %vm638, %v559, 0
    %v1282 = vsel %vm638, %v560, 0
    %v1285 = vsel %vm638, %v561, 0
    %v1288 = vsel %vm638, %v562, 0
    %v1291 = vsel %vm638, %v563, 0
    %v1294 = vsel %vm638, %v564, 0
    %v1297 = vsel %vm638, %v565, 0
    %v1300 = vsel %vm638, %v566, 0
    %v1303 = vsel %vm638, %v567, 0
    %v1306 = vsel %vm638, %v568, 0
    %v1309 = vsel %vm638, %v569, 0
    %v1312 = vsel %vm638, %v586, 0
    %v1315 = vsel %vm638, %v587, 0
    %v1318 = vsel %vm638, %v588, 0
    %v1321 = vsel %vm638, %v589, 0
    %v1324 = vsel %vm638, %v590, 0
    %v1327 = vsel %vm638, %v591, 0
    %v1330 = vsel %vm638, %v592, 0
    %v1333 = vsel %vm638, %v593, 0
    %v1336 = vsel %vm638, %v594, 0
    %v1339 = vsel %vm638, %v595, 0
    %v1342 = vsel %vm638, %v596, 0
    %v1345 = vsel %vm638, %v597, 0
    %v1348 = vsel %vm638, %v598, 0
    %v1351 = vsel %vm638, %v599, 0
    %v1354 = vsel %vm638, %v600, 0
    %v1357 = vsel %vm638, %v601, 0
    %v1360 = vsel %vm638, %v618, 0
    %v1363 = vsel %vm638, %v619, 0
    %v1366 = vsel %vm638, %v620, 0
    %v1369 = vsel %vm638, %v621, 0
    %v1372 = vsel %vm638, %v622, 0
    %v1375 = vsel %vm638, %v623, 0
    %v1378 = vsel %vm638, %v624, 0
    %v1381 = vsel %vm638, %v625, 0
    %v1384 = vsel %vm638, %v626, 0
    %v1387 = vsel %vm638, %v627, 0
    %v1390 = vsel %vm638, %v628, 0
    %v1393 = vsel %vm638, %v629, 0
    %v1396 = vsel %vm638, %v630, 0
    %v1399 = vsel %vm638, %v631, 0
    %v1402 = vsel %vm638, %v632, 0
    %v1405 = vsel %vm638, %v633, 0
    %vm1407 = vcmask 1042432
    %v1408 = vsel %vm1407, %v636, 0
    %v1410 = vsel %vm1407, %v637, 0
    %1412 = vmatpush.msra.mxu0 0.0
    %1413 = vmatpush.msra.mxu0 0.0
    %1414 = vmatpush.msra.mxu0 0.0
    %1415 = vmatpush.msra.mxu0 0.0
    %1416 = vmatpush.msra.mxu0 0.0
    %1417 = vmatpush.msra.mxu0 0.0
    %1418 = vmatpush.msra.mxu0 0.0
    %1419 = vmatpush.msra.mxu0 0.0
    %1420 = vmatpush.msra.mxu0 0.0
    %1421 = vmatpush.msra.mxu0 0.0
    %1422 = vmatpush.msra.mxu0 0.0
    %1423 = vmatpush.msra.mxu0 0.0
    %1424 = vmatpush.msra.mxu0 0.0
    %1425 = vmatpush.msra.mxu0 0.0
    %1426 = vmatpush.msra.mxu0 0.0
    %1427 = vmatpush.msra.mxu0 %v1408
    %1428 = vmatmul.f32.gmra.mxu0 %v640
    %v1429 = vpop.f32.mrf.mxu0
    %v1430 = vadd.f32 %v67, %v1429
    %1431 = vmatmul.f32.gmra.mxu0 %v643
    %v1432 = vpop.f32.mrf.mxu0
    %v1433 = vadd.f32 %v67, %v1432
    %1434 = vmatmul.f32.gmra.mxu0 %v646
    %v1435 = vpop.f32.mrf.mxu0
    %v1436 = vadd.f32 %v67, %v1435
    %1437 = vmatmul.f32.gmra.mxu0 %v649
    %v1438 = vpop.f32.mrf.mxu0
    %v1439 = vadd.f32 %v67, %v1438
    %1440 = vmatmul.f32.gmra.mxu0 %v652
    %v1441 = vpop.f32.mrf.mxu0
    %v1442 = vadd.f32 %v67, %v1441
    %1443 = vmatmul.f32.gmra.mxu0 %v655
    %v1444 = vpop.f32.mrf.mxu0
    %v1445 = vadd.f32 %v67, %v1444
    %1446 = vmatmul.f32.gmra.mxu0 %v658
    %v1447 = vpop.f32.mrf.mxu0
    %v1448 = vadd.f32 %v67, %v1447
    %1449 = vmatmul.f32.gmra.mxu0 %v661
    %v1450 = vpop.f32.mrf.mxu0
    %v1451 = vadd.f32 %v67, %v1450
    %1452 = vmatmul.f32.gmra.mxu0 %v664
    %v1453 = vpop.f32.mrf.mxu0
    %v1454 = vadd.f32 %v67, %v1453
    %1455 = vmatmul.f32.gmra.mxu0 %v667
    %v1456 = vpop.f32.mrf.mxu0
    %v1457 = vadd.f32 %v67, %v1456
    %1458 = vmatmul.f32.gmra.mxu0 %v670
    %v1459 = vpop.f32.mrf.mxu0
    %v1460 = vadd.f32 %v67, %v1459
    %1461 = vmatmul.f32.gmra.mxu0 %v673
    %v1462 = vpop.f32.mrf.mxu0
    %v1463 = vadd.f32 %v67, %v1462
    %1464 = vmatmul.f32.gmra.mxu0 %v676
    %v1465 = vpop.f32.mrf.mxu0
    %v1466 = vadd.f32 %v67, %v1465
    %1467 = vmatmul.f32.gmra.mxu0 %v679
    %v1468 = vpop.f32.mrf.mxu0
    %v1469 = vadd.f32 %v67, %v1468
    %1470 = vmatmul.f32.gmra.mxu0 %v682
    %v1471 = vpop.f32.mrf.mxu0
    %v1472 = vadd.f32 %v67, %v1471
    %1473 = vmatmul.f32.gmra.mxu0 %v685
    %v1474 = vpop.f32.mrf.mxu0
    %v1475 = vadd.f32 %v67, %v1474
    %1476 = vmatmul.f32.gmra.mxu0 %v688
    %v1477 = vpop.f32.mrf.mxu0
    %v1478 = vadd.f32 %v67, %v1477
    %1479 = vmatmul.f32.gmra.mxu0 %v691
    %v1480 = vpop.f32.mrf.mxu0
    %v1481 = vadd.f32 %v67, %v1480
    %1482 = vmatmul.f32.gmra.mxu0 %v694
    %v1483 = vpop.f32.mrf.mxu0
    %v1484 = vadd.f32 %v67, %v1483
    %1485 = vmatmul.f32.gmra.mxu0 %v697
    %v1486 = vpop.f32.mrf.mxu0
    %v1487 = vadd.f32 %v67, %v1486
    %1488 = vmatmul.f32.gmra.mxu0 %v700
    %v1489 = vpop.f32.mrf.mxu0
    %v1490 = vadd.f32 %v67, %v1489
    %1491 = vmatmul.f32.gmra.mxu0 %v703
    %v1492 = vpop.f32.mrf.mxu0
    %v1493 = vadd.f32 %v67, %v1492
    %1494 = vmatmul.f32.gmra.mxu0 %v706
    %v1495 = vpop.f32.mrf.mxu0
    %v1496 = vadd.f32 %v67, %v1495
    %1497 = vmatmul.f32.gmra.mxu0 %v709
    %v1498 = vpop.f32.mrf.mxu0
    %v1499 = vadd.f32 %v67, %v1498
    %1500 = vmatmul.f32.gmra.mxu0 %v712
    %v1501 = vpop.f32.mrf.mxu0
    %v1502 = vadd.f32 %v67, %v1501
    %1503 = vmatmul.f32.gmra.mxu0 %v715
    %v1504 = vpop.f32.mrf.mxu0
    %v1505 = vadd.f32 %v67, %v1504
    %1506 = vmatmul.f32.gmra.mxu0 %v718
    %v1507 = vpop.f32.mrf.mxu0
    %v1508 = vadd.f32 %v67, %v1507
    %1509 = vmatmul.f32.gmra.mxu0 %v721
    %v1510 = vpop.f32.mrf.mxu0
    %v1511 = vadd.f32 %v67, %v1510
    %1512 = vmatmul.f32.gmra.mxu0 %v724
    %v1513 = vpop.f32.mrf.mxu0
    %v1514 = vadd.f32 %v67, %v1513
    %1515 = vmatmul.f32.gmra.mxu0 %v727
    %v1516 = vpop.f32.mrf.mxu0
    %v1517 = vadd.f32 %v67, %v1516
    %1518 = vmatmul.f32.gmra.mxu0 %v730
    %v1519 = vpop.f32.mrf.mxu0
    %v1520 = vadd.f32 %v67, %v1519
    %1521 = vmatmul.f32.gmra.mxu0 %v733
    %v1522 = vpop.f32.mrf.mxu0
    %v1523 = vadd.f32 %v67, %v1522
    %1524 = vmatmul.f32.gmra.mxu0 %v736
    %v1525 = vpop.f32.mrf.mxu0
    %v1526 = vadd.f32 %v67, %v1525
    %1527 = vmatmul.f32.gmra.mxu0 %v739
    %v1528 = vpop.f32.mrf.mxu0
    %v1529 = vadd.f32 %v67, %v1528
    %1530 = vmatmul.f32.gmra.mxu0 %v742
    %v1531 = vpop.f32.mrf.mxu0
    %v1532 = vadd.f32 %v67, %v1531
    %1533 = vmatmul.f32.gmra.mxu0 %v745
    %v1534 = vpop.f32.mrf.mxu0
    %v1535 = vadd.f32 %v67, %v1534
    %1536 = vmatmul.f32.gmra.mxu0 %v748
    %v1537 = vpop.f32.mrf.mxu0
    %v1538 = vadd.f32 %v67, %v1537
    %1539 = vmatmul.f32.gmra.mxu0 %v751
    %v1540 = vpop.f32.mrf.mxu0
    %v1541 = vadd.f32 %v67, %v1540
    %1542 = vmatmul.f32.gmra.mxu0 %v754
    %v1543 = vpop.f32.mrf.mxu0
    %v1544 = vadd.f32 %v67, %v1543
    %1545 = vmatmul.f32.gmra.mxu0 %v757
    %v1546 = vpop.f32.mrf.mxu0
    %v1547 = vadd.f32 %v67, %v1546
    %1548 = vmatmul.f32.gmra.mxu0 %v760
    %v1549 = vpop.f32.mrf.mxu0
    %v1550 = vadd.f32 %v67, %v1549
    %1551 = vmatmul.f32.gmra.mxu0 %v763
    %v1552 = vpop.f32.mrf.mxu0
    %v1553 = vadd.f32 %v67, %v1552
    %1554 = vmatmul.f32.gmra.mxu0 %v766
    %v1555 = vpop.f32.mrf.mxu0
    %v1556 = vadd.f32 %v67, %v1555
    %1557 = vmatmul.f32.gmra.mxu0 %v769
    %v1558 = vpop.f32.mrf.mxu0
    %v1559 = vadd.f32 %v67, %v1558
    %1560 = vmatmul.f32.gmra.mxu0 %v772
    %v1561 = vpop.f32.mrf.mxu0
    %v1562 = vadd.f32 %v67, %v1561
    %1563 = vmatmul.f32.gmra.mxu0 %v775
    %v1564 = vpop.f32.mrf.mxu0
    %v1565 = vadd.f32 %v67, %v1564
    %1566 = vmatmul.f32.gmra.mxu0 %v778
    %v1567 = vpop.f32.mrf.mxu0
    %v1568 = vadd.f32 %v67, %v1567
    %1569 = vmatmul.f32.gmra.mxu0 %v781
    %v1570 = vpop.f32.mrf.mxu0
    %v1571 = vadd.f32 %v67, %v1570
    %1572 = vmatmul.f32.gmra.mxu0 %v784
    %v1573 = vpop.f32.mrf.mxu0
    %v1574 = vadd.f32 %v67, %v1573
    %1575 = vmatmul.f32.gmra.mxu0 %v787
    %v1576 = vpop.f32.mrf.mxu0
    %v1577 = vadd.f32 %v67, %v1576
    %1578 = vmatmul.f32.gmra.mxu0 %v790
    %v1579 = vpop.f32.mrf.mxu0
    %v1580 = vadd.f32 %v67, %v1579
    %1581 = vmatmul.f32.gmra.mxu0 %v793
    %v1582 = vpop.f32.mrf.mxu0
    %v1583 = vadd.f32 %v67, %v1582
    %1584 = vmatmul.f32.gmra.mxu0 %v796
    %v1585 = vpop.f32.mrf.mxu0
    %v1586 = vadd.f32 %v67, %v1585
    %1587 = vmatmul.f32.gmra.mxu0 %v799
    %v1588 = vpop.f32.mrf.mxu0
    %v1589 = vadd.f32 %v67, %v1588
    %1590 = vmatmul.f32.gmra.mxu0 %v802
    %v1591 = vpop.f32.mrf.mxu0
    %v1592 = vadd.f32 %v67, %v1591
    %1593 = vmatmul.f32.gmra.mxu0 %v805
    %v1594 = vpop.f32.mrf.mxu0
    %v1595 = vadd.f32 %v67, %v1594
    %1596 = vmatmul.f32.gmra.mxu0 %v808
    %v1597 = vpop.f32.mrf.mxu0
    %v1598 = vadd.f32 %v67, %v1597
    %1599 = vmatmul.f32.gmra.mxu0 %v811
    %v1600 = vpop.f32.mrf.mxu0
    %v1601 = vadd.f32 %v67, %v1600
    %1602 = vmatmul.f32.gmra.mxu0 %v814
    %v1603 = vpop.f32.mrf.mxu0
    %v1604 = vadd.f32 %v67, %v1603
    %1605 = vmatmul.f32.gmra.mxu0 %v817
    %v1606 = vpop.f32.mrf.mxu0
    %v1607 = vadd.f32 %v67, %v1606
    %1608 = vmatmul.f32.gmra.mxu0 %v820
    %v1609 = vpop.f32.mrf.mxu0
    %v1610 = vadd.f32 %v67, %v1609
    %1611 = vmatmul.f32.gmra.mxu0 %v823
    %v1612 = vpop.f32.mrf.mxu0
    %v1613 = vadd.f32 %v67, %v1612
    %1614 = vmatmul.f32.gmra.mxu0 %v826
    %v1615 = vpop.f32.mrf.mxu0
    %v1616 = vadd.f32 %v67, %v1615
    %1617 = vmatmul.f32.gmra.mxu0 %v829
    %v1618 = vpop.f32.mrf.mxu0
    %v1619 = vadd.f32 %v67, %v1618
    %1620 = vmatmul.f32.gmra.mxu0 %v832
    %v1621 = vpop.f32.mrf.mxu0
    %v1622 = vadd.f32 %v67, %v1621
    %1623 = vmatmul.f32.gmra.mxu0 %v835
    %v1624 = vpop.f32.mrf.mxu0
    %v1625 = vadd.f32 %v67, %v1624
    %1626 = vmatmul.f32.gmra.mxu0 %v838
    %v1627 = vpop.f32.mrf.mxu0
    %v1628 = vadd.f32 %v67, %v1627
    %1629 = vmatmul.f32.gmra.mxu0 %v841
    %v1630 = vpop.f32.mrf.mxu0
    %v1631 = vadd.f32 %v67, %v1630
    %1632 = vmatmul.f32.gmra.mxu0 %v844
    %v1633 = vpop.f32.mrf.mxu0
    %v1634 = vadd.f32 %v67, %v1633
    %1635 = vmatmul.f32.gmra.mxu0 %v847
    %v1636 = vpop.f32.mrf.mxu0
    %v1637 = vadd.f32 %v67, %v1636
    %1638 = vmatmul.f32.gmra.mxu0 %v850
    %v1639 = vpop.f32.mrf.mxu0
    %v1640 = vadd.f32 %v67, %v1639
    %1641 = vmatmul.f32.gmra.mxu0 %v853
    %v1642 = vpop.f32.mrf.mxu0
    %v1643 = vadd.f32 %v67, %v1642
    %1644 = vmatmul.f32.gmra.mxu0 %v856
    %v1645 = vpop.f32.mrf.mxu0
    %v1646 = vadd.f32 %v67, %v1645
    %1647 = vmatmul.f32.gmra.mxu0 %v859
    %v1648 = vpop.f32.mrf.mxu0
    %v1649 = vadd.f32 %v67, %v1648
    %1650 = vmatmul.f32.gmra.mxu0 %v862
    %v1651 = vpop.f32.mrf.mxu0
    %v1652 = vadd.f32 %v67, %v1651
    %1653 = vmatmul.f32.gmra.mxu0 %v865
    %v1654 = vpop.f32.mrf.mxu0
    %v1655 = vadd.f32 %v67, %v1654
    %1656 = vmatmul.f32.gmra.mxu0 %v868
    %v1657 = vpop.f32.mrf.mxu0
    %v1658 = vadd.f32 %v67, %v1657
    %1659 = vmatmul.f32.gmra.mxu0 %v871
    %v1660 = vpop.f32.mrf.mxu0
    %v1661 = vadd.f32 %v67, %v1660
    %1662 = vmatmul.f32.gmra.mxu0 %v874
    %v1663 = vpop.f32.mrf.mxu0
    %v1664 = vadd.f32 %v67, %v1663
    %1665 = vmatmul.f32.gmra.mxu0 %v877
    %v1666 = vpop.f32.mrf.mxu0
    %v1667 = vadd.f32 %v67, %v1666
    %1668 = vmatmul.f32.gmra.mxu0 %v880
    %v1669 = vpop.f32.mrf.mxu0
    %v1670 = vadd.f32 %v67, %v1669
    %1671 = vmatmul.f32.gmra.mxu0 %v883
    %v1672 = vpop.f32.mrf.mxu0
    %v1673 = vadd.f32 %v67, %v1672
    %1674 = vmatmul.f32.gmra.mxu0 %v886
    %v1675 = vpop.f32.mrf.mxu0
    %v1676 = vadd.f32 %v67, %v1675
    %1677 = vmatmul.f32.gmra.mxu0 %v889
    %v1678 = vpop.f32.mrf.mxu0
    %v1679 = vadd.f32 %v67, %v1678
    %1680 = vmatmul.f32.gmra.mxu0 %v892
    %v1681 = vpop.f32.mrf.mxu0
    %v1682 = vadd.f32 %v67, %v1681
    %1683 = vmatmul.f32.gmra.mxu0 %v895
    %v1684 = vpop.f32.mrf.mxu0
    %v1685 = vadd.f32 %v67, %v1684
    %1686 = vmatmul.f32.gmra.mxu0 %v898
    %v1687 = vpop.f32.mrf.mxu0
    %v1688 = vadd.f32 %v67, %v1687
    %1689 = vmatmul.f32.gmra.mxu0 %v901
    %v1690 = vpop.f32.mrf.mxu0
    %v1691 = vadd.f32 %v67, %v1690
    %1692 = vmatmul.f32.gmra.mxu0 %v904
    %v1693 = vpop.f32.mrf.mxu0
    %v1694 = vadd.f32 %v67, %v1693
    %1695 = vmatmul.f32.gmra.mxu0 %v907
    %v1696 = vpop.f32.mrf.mxu0
    %v1697 = vadd.f32 %v67, %v1696
    %1698 = vmatmul.f32.gmra.mxu0 %v910
    %v1699 = vpop.f32.mrf.mxu0
    %v1700 = vadd.f32 %v67, %v1699
    %1701 = vmatmul.f32.gmra.mxu0 %v913
    %v1702 = vpop.f32.mrf.mxu0
    %v1703 = vadd.f32 %v67, %v1702
    %1704 = vmatmul.f32.gmra.mxu0 %v916
    %v1705 = vpop.f32.mrf.mxu0
    %v1706 = vadd.f32 %v67, %v1705
    %1707 = vmatmul.f32.gmra.mxu0 %v919
    %v1708 = vpop.f32.mrf.mxu0
    %v1709 = vadd.f32 %v67, %v1708
    %1710 = vmatmul.f32.gmra.mxu0 %v922
    %v1711 = vpop.f32.mrf.mxu0
    %v1712 = vadd.f32 %v67, %v1711
    %1713 = vmatmul.f32.gmra.mxu0 %v925
    %v1714 = vpop.f32.mrf.mxu0
    %v1715 = vadd.f32 %v67, %v1714
    %1716 = vmatmul.f32.gmra.mxu0 %v928
    %v1717 = vpop.f32.mrf.mxu0
    %v1718 = vadd.f32 %v67, %v1717
    %1719 = vmatmul.f32.gmra.mxu0 %v931
    %v1720 = vpop.f32.mrf.mxu0
    %v1721 = vadd.f32 %v67, %v1720
    %1722 = vmatmul.f32.gmra.mxu0 %v934
    %v1723 = vpop.f32.mrf.mxu0
    %v1724 = vadd.f32 %v67, %v1723
    %1725 = vmatmul.f32.gmra.mxu0 %v937
    %v1726 = vpop.f32.mrf.mxu0
    %v1727 = vadd.f32 %v67, %v1726
    %1728 = vmatmul.f32.gmra.mxu0 %v940
    %v1729 = vpop.f32.mrf.mxu0
    %v1730 = vadd.f32 %v67, %v1729
    %1731 = vmatmul.f32.gmra.mxu0 %v943
    %v1732 = vpop.f32.mrf.mxu0
    %v1733 = vadd.f32 %v67, %v1732
    %1734 = vmatmul.f32.gmra.mxu0 %v946
    %v1735 = vpop.f32.mrf.mxu0
    %v1736 = vadd.f32 %v67, %v1735
    %1737 = vmatmul.f32.gmra.mxu0 %v949
    %v1738 = vpop.f32.mrf.mxu0
    %v1739 = vadd.f32 %v67, %v1738
    %1740 = vmatmul.f32.gmra.mxu0 %v952
    %v1741 = vpop.f32.mrf.mxu0
    %v1742 = vadd.f32 %v67, %v1741
    %1743 = vmatmul.f32.gmra.mxu0 %v955
    %v1744 = vpop.f32.mrf.mxu0
    %v1745 = vadd.f32 %v67, %v1744
    %1746 = vmatmul.f32.gmra.mxu0 %v958
    %v1747 = vpop.f32.mrf.mxu0
    %v1748 = vadd.f32 %v67, %v1747
    %1749 = vmatmul.f32.gmra.mxu0 %v961
    %v1750 = vpop.f32.mrf.mxu0
    %v1751 = vadd.f32 %v67, %v1750
    %1752 = vmatmul.f32.gmra.mxu0 %v964
    %v1753 = vpop.f32.mrf.mxu0
    %v1754 = vadd.f32 %v67, %v1753
    %1755 = vmatmul.f32.gmra.mxu0 %v967
    %v1756 = vpop.f32.mrf.mxu0
    %v1757 = vadd.f32 %v67, %v1756
    %1758 = vmatmul.f32.gmra.mxu0 %v970
    %v1759 = vpop.f32.mrf.mxu0
    %v1760 = vadd.f32 %v67, %v1759
    %1761 = vmatmul.f32.gmra.mxu0 %v973
    %v1762 = vpop.f32.mrf.mxu0
    %v1763 = vadd.f32 %v67, %v1762
    %1764 = vmatmul.f32.gmra.mxu0 %v976
    %v1765 = vpop.f32.mrf.mxu0
    %v1766 = vadd.f32 %v67, %v1765
    %1767 = vmatmul.f32.gmra.mxu0 %v979
    %v1768 = vpop.f32.mrf.mxu0
    %v1769 = vadd.f32 %v67, %v1768
    %1770 = vmatmul.f32.gmra.mxu0 %v982
    %v1771 = vpop.f32.mrf.mxu0
    %v1772 = vadd.f32 %v67, %v1771
    %1773 = vmatmul.f32.gmra.mxu0 %v985
    %v1774 = vpop.f32.mrf.mxu0
    %v1775 = vadd.f32 %v67, %v1774
    %1776 = vmatmul.f32.gmra.mxu0 %v988
    %v1777 = vpop.f32.mrf.mxu0
    %v1778 = vadd.f32 %v67, %v1777
    %1779 = vmatmul.f32.gmra.mxu0 %v991
    %v1780 = vpop.f32.mrf.mxu0
    %v1781 = vadd.f32 %v67, %v1780
    %1782 = vmatmul.f32.gmra.mxu0 %v994
    %v1783 = vpop.f32.mrf.mxu0
    %v1784 = vadd.f32 %v67, %v1783
    %1785 = vmatmul.f32.gmra.mxu0 %v997
    %v1786 = vpop.f32.mrf.mxu0
    %v1787 = vadd.f32 %v67, %v1786
    %1788 = vmatmul.f32.gmra.mxu0 %v1000
    %v1789 = vpop.f32.mrf.mxu0
    %v1790 = vadd.f32 %v67, %v1789
    %1791 = vmatmul.f32.gmra.mxu0 %v1003
    %v1792 = vpop.f32.mrf.mxu0
    %v1793 = vadd.f32 %v67, %v1792
    %1794 = vmatmul.f32.gmra.mxu0 %v1006
    %v1795 = vpop.f32.mrf.mxu0
    %v1796 = vadd.f32 %v67, %v1795
    %1797 = vmatmul.f32.gmra.mxu0 %v1009
    %v1798 = vpop.f32.mrf.mxu0
    %v1799 = vadd.f32 %v67, %v1798
    %1800 = vmatmul.f32.gmra.mxu0 %v1012
    %v1801 = vpop.f32.mrf.mxu0
    %v1802 = vadd.f32 %v67, %v1801
    %1803 = vmatmul.f32.gmra.mxu0 %v1015
    %v1804 = vpop.f32.mrf.mxu0
    %v1805 = vadd.f32 %v67, %v1804
    %1806 = vmatmul.f32.gmra.mxu0 %v1018
    %v1807 = vpop.f32.mrf.mxu0
    %v1808 = vadd.f32 %v67, %v1807
    %1809 = vmatmul.f32.gmra.mxu0 %v1021
    %v1810 = vpop.f32.mrf.mxu0
    %v1811 = vadd.f32 %v67, %v1810
    %1812 = vmatmul.f32.gmra.mxu0 %v1024
    %v1813 = vpop.f32.mrf.mxu0
    %v1814 = vadd.f32 %v67, %v1813
    %1815 = vmatmul.f32.gmra.mxu0 %v1027
    %v1816 = vpop.f32.mrf.mxu0
    %v1817 = vadd.f32 %v67, %v1816
    %1818 = vmatmul.f32.gmra.mxu0 %v1030
    %v1819 = vpop.f32.mrf.mxu0
    %v1820 = vadd.f32 %v67, %v1819
    %1821 = vmatmul.f32.gmra.mxu0 %v1033
    %v1822 = vpop.f32.mrf.mxu0
    %v1823 = vadd.f32 %v67, %v1822
    %1824 = vmatmul.f32.gmra.mxu0 %v1036
    %v1825 = vpop.f32.mrf.mxu0
    %v1826 = vadd.f32 %v67, %v1825
    %1827 = vmatmul.f32.gmra.mxu0 %v1039
    %v1828 = vpop.f32.mrf.mxu0
    %v1829 = vadd.f32 %v67, %v1828
    %1830 = vmatmul.f32.gmra.mxu0 %v1042
    %v1831 = vpop.f32.mrf.mxu0
    %v1832 = vadd.f32 %v67, %v1831
    %1833 = vmatmul.f32.gmra.mxu0 %v1045
    %v1834 = vpop.f32.mrf.mxu0
    %v1835 = vadd.f32 %v67, %v1834
    %1836 = vmatmul.f32.gmra.mxu0 %v1048
    %v1837 = vpop.f32.mrf.mxu0
    %v1838 = vadd.f32 %v67, %v1837
    %1839 = vmatmul.f32.gmra.mxu0 %v1051
    %v1840 = vpop.f32.mrf.mxu0
    %v1841 = vadd.f32 %v67, %v1840
    %1842 = vmatmul.f32.gmra.mxu0 %v1054
    %v1843 = vpop.f32.mrf.mxu0
    %v1844 = vadd.f32 %v67, %v1843
    %1845 = vmatmul.f32.gmra.mxu0 %v1057
    %v1846 = vpop.f32.mrf.mxu0
    %v1847 = vadd.f32 %v67, %v1846
    %1848 = vmatmul.f32.gmra.mxu0 %v1060
    %v1849 = vpop.f32.mrf.mxu0
    %v1850 = vadd.f32 %v67, %v1849
    %1851 = vmatmul.f32.gmra.mxu0 %v1063
    %v1852 = vpop.f32.mrf.mxu0
    %v1853 = vadd.f32 %v67, %v1852
    %1854 = vmatmul.f32.gmra.mxu0 %v1066
    %v1855 = vpop.f32.mrf.mxu0
    %v1856 = vadd.f32 %v67, %v1855
    %1857 = vmatmul.f32.gmra.mxu0 %v1069
    %v1858 = vpop.f32.mrf.mxu0
    %v1859 = vadd.f32 %v67, %v1858
    %1860 = vmatmul.f32.gmra.mxu0 %v1072
    %v1861 = vpop.f32.mrf.mxu0
    %v1862 = vadd.f32 %v67, %v1861
    %1863 = vmatmul.f32.gmra.mxu0 %v1075
    %v1864 = vpop.f32.mrf.mxu0
    %v1865 = vadd.f32 %v67, %v1864
    %1866 = vmatmul.f32.gmra.mxu0 %v1078
    %v1867 = vpop.f32.mrf.mxu0
    %v1868 = vadd.f32 %v67, %v1867
    %1869 = vmatmul.f32.gmra.mxu0 %v1081
    %v1870 = vpop.f32.mrf.mxu0
    %v1871 = vadd.f32 %v67, %v1870
    %1872 = vmatmul.f32.gmra.mxu0 %v1084
    %v1873 = vpop.f32.mrf.mxu0
    %v1874 = vadd.f32 %v67, %v1873
    %1875 = vmatmul.f32.gmra.mxu0 %v1087
    %v1876 = vpop.f32.mrf.mxu0
    %v1877 = vadd.f32 %v67, %v1876
    %1878 = vmatmul.f32.gmra.mxu0 %v1090
    %v1879 = vpop.f32.mrf.mxu0
    %v1880 = vadd.f32 %v67, %v1879
    %1881 = vmatmul.f32.gmra.mxu0 %v1093
    %v1882 = vpop.f32.mrf.mxu0
    %v1883 = vadd.f32 %v67, %v1882
    %1884 = vmatmul.f32.gmra.mxu0 %v1096
    %v1885 = vpop.f32.mrf.mxu0
    %v1886 = vadd.f32 %v67, %v1885
    %1887 = vmatmul.f32.gmra.mxu0 %v1099
    %v1888 = vpop.f32.mrf.mxu0
    %v1889 = vadd.f32 %v67, %v1888
    %1890 = vmatmul.f32.gmra.mxu0 %v1102
    %v1891 = vpop.f32.mrf.mxu0
    %v1892 = vadd.f32 %v67, %v1891
    %1893 = vmatmul.f32.gmra.mxu0 %v1105
    %v1894 = vpop.f32.mrf.mxu0
    %v1895 = vadd.f32 %v67, %v1894
    %1896 = vmatmul.f32.gmra.mxu0 %v1108
    %v1897 = vpop.f32.mrf.mxu0
    %v1898 = vadd.f32 %v67, %v1897
    %1899 = vmatmul.f32.gmra.mxu0 %v1111
    %v1900 = vpop.f32.mrf.mxu0
    %v1901 = vadd.f32 %v67, %v1900
    %1902 = vmatmul.f32.gmra.mxu0 %v1114
    %v1903 = vpop.f32.mrf.mxu0
    %v1904 = vadd.f32 %v67, %v1903
    %1905 = vmatmul.f32.gmra.mxu0 %v1117
    %v1906 = vpop.f32.mrf.mxu0
    %v1907 = vadd.f32 %v67, %v1906
    %1908 = vmatmul.f32.gmra.mxu0 %v1120
    %v1909 = vpop.f32.mrf.mxu0
    %v1910 = vadd.f32 %v67, %v1909
    %1911 = vmatmul.f32.gmra.mxu0 %v1123
    %v1912 = vpop.f32.mrf.mxu0
    %v1913 = vadd.f32 %v67, %v1912
    %1914 = vmatmul.f32.gmra.mxu0 %v1126
    %v1915 = vpop.f32.mrf.mxu0
    %v1916 = vadd.f32 %v67, %v1915
    %1917 = vmatmul.f32.gmra.mxu0 %v1129
    %v1918 = vpop.f32.mrf.mxu0
    %v1919 = vadd.f32 %v67, %v1918
    %1920 = vmatmul.f32.gmra.mxu0 %v1132
    %v1921 = vpop.f32.mrf.mxu0
    %v1922 = vadd.f32 %v67, %v1921
    %1923 = vmatmul.f32.gmra.mxu0 %v1135
    %v1924 = vpop.f32.mrf.mxu0
    %v1925 = vadd.f32 %v67, %v1924
    %1926 = vmatmul.f32.gmra.mxu0 %v1138
    %v1927 = vpop.f32.mrf.mxu0
    %v1928 = vadd.f32 %v67, %v1927
    %1929 = vmatmul.f32.gmra.mxu0 %v1141
    %v1930 = vpop.f32.mrf.mxu0
    %v1931 = vadd.f32 %v67, %v1930
    %1932 = vmatmul.f32.gmra.mxu0 %v1144
    %v1933 = vpop.f32.mrf.mxu0
    %v1934 = vadd.f32 %v67, %v1933
    %1935 = vmatmul.f32.gmra.mxu0 %v1147
    %v1936 = vpop.f32.mrf.mxu0
    %v1937 = vadd.f32 %v67, %v1936
    %1938 = vmatmul.f32.gmra.mxu0 %v1150
    %v1939 = vpop.f32.mrf.mxu0
    %v1940 = vadd.f32 %v67, %v1939
    %1941 = vmatmul.f32.gmra.mxu0 %v1153
    %v1942 = vpop.f32.mrf.mxu0
    %v1943 = vadd.f32 %v67, %v1942
    %1944 = vmatmul.f32.gmra.mxu0 %v1156
    %v1945 = vpop.f32.mrf.mxu0
    %v1946 = vadd.f32 %v67, %v1945
    %1947 = vmatmul.f32.gmra.mxu0 %v1159
    %v1948 = vpop.f32.mrf.mxu0
    %v1949 = vadd.f32 %v67, %v1948
    %1950 = vmatmul.f32.gmra.mxu0 %v1162
    %v1951 = vpop.f32.mrf.mxu0
    %v1952 = vadd.f32 %v67, %v1951
    %1953 = vmatmul.f32.gmra.mxu0 %v1165
    %v1954 = vpop.f32.mrf.mxu0
    %v1955 = vadd.f32 %v67, %v1954
    %1956 = vmatmul.f32.gmra.mxu0 %v1168
    %v1957 = vpop.f32.mrf.mxu0
    %v1958 = vadd.f32 %v67, %v1957
    %1959 = vmatmul.f32.gmra.mxu0 %v1171
    %v1960 = vpop.f32.mrf.mxu0
    %v1961 = vadd.f32 %v67, %v1960
    %1962 = vmatmul.f32.gmra.mxu0 %v1174
    %v1963 = vpop.f32.mrf.mxu0
    %v1964 = vadd.f32 %v67, %v1963
    %1965 = vmatmul.f32.gmra.mxu0 %v1177
    %v1966 = vpop.f32.mrf.mxu0
    %v1967 = vadd.f32 %v67, %v1966
    %1968 = vmatmul.f32.gmra.mxu0 %v1180
    %v1969 = vpop.f32.mrf.mxu0
    %v1970 = vadd.f32 %v67, %v1969
    %1971 = vmatmul.f32.gmra.mxu0 %v1183
    %v1972 = vpop.f32.mrf.mxu0
    %v1973 = vadd.f32 %v67, %v1972
    %1974 = vmatmul.f32.gmra.mxu0 %v1186
    %v1975 = vpop.f32.mrf.mxu0
    %v1976 = vadd.f32 %v67, %v1975
    %1977 = vmatmul.f32.gmra.mxu0 %v1189
    %v1978 = vpop.f32.mrf.mxu0
    %v1979 = vadd.f32 %v67, %v1978
    %1980 = vmatmul.f32.gmra.mxu0 %v1192
    %v1981 = vpop.f32.mrf.mxu0
    %v1982 = vadd.f32 %v67, %v1981
    %1983 = vmatmul.f32.gmra.mxu0 %v1195
    %v1984 = vpop.f32.mrf.mxu0
    %v1985 = vadd.f32 %v67, %v1984
    %1986 = vmatmul.f32.gmra.mxu0 %v1198
    %v1987 = vpop.f32.mrf.mxu0
    %v1988 = vadd.f32 %v67, %v1987
    %1989 = vmatmul.f32.gmra.mxu0 %v1201
    %v1990 = vpop.f32.mrf.mxu0
    %v1991 = vadd.f32 %v67, %v1990
    %1992 = vmatmul.f32.gmra.mxu0 %v1204
    %v1993 = vpop.f32.mrf.mxu0
    %v1994 = vadd.f32 %v67, %v1993
    %1995 = vmatmul.f32.gmra.mxu0 %v1207
    %v1996 = vpop.f32.mrf.mxu0
    %v1997 = vadd.f32 %v67, %v1996
    %1998 = vmatmul.f32.gmra.mxu0 %v1210
    %v1999 = vpop.f32.mrf.mxu0
    %v2000 = vadd.f32 %v67, %v1999
    %2001 = vmatmul.f32.gmra.mxu0 %v1213
    %v2002 = vpop.f32.mrf.mxu0
    %v2003 = vadd.f32 %v67, %v2002
    %2004 = vmatmul.f32.gmra.mxu0 %v1216
    %v2005 = vpop.f32.mrf.mxu0
    %v2006 = vadd.f32 %v67, %v2005
    %2007 = vmatmul.f32.gmra.mxu0 %v1219
    %v2008 = vpop.f32.mrf.mxu0
    %v2009 = vadd.f32 %v67, %v2008
    %2010 = vmatmul.f32.gmra.mxu0 %v1222
    %v2011 = vpop.f32.mrf.mxu0
    %v2012 = vadd.f32 %v67, %v2011
    %2013 = vmatmul.f32.gmra.mxu0 %v1225
    %v2014 = vpop.f32.mrf.mxu0
    %v2015 = vadd.f32 %v67, %v2014
    %2016 = vmatmul.f32.gmra.mxu0 %v1228
    %v2017 = vpop.f32.mrf.mxu0
    %v2018 = vadd.f32 %v67, %v2017
    %2019 = vmatmul.f32.gmra.mxu0 %v1231
    %v2020 = vpop.f32.mrf.mxu0
    %v2021 = vadd.f32 %v67, %v2020
    %2022 = vmatmul.f32.gmra.mxu0 %v1234
    %v2023 = vpop.f32.mrf.mxu0
    %v2024 = vadd.f32 %v67, %v2023
    %2025 = vmatmul.f32.gmra.mxu0 %v1237
    %v2026 = vpop.f32.mrf.mxu0
    %v2027 = vadd.f32 %v67, %v2026
    %2028 = vmatmul.f32.gmra.mxu0 %v1240
    %v2029 = vpop.f32.mrf.mxu0
    %v2030 = vadd.f32 %v67, %v2029
    %2031 = vmatmul.f32.gmra.mxu0 %v1243
    %v2032 = vpop.f32.mrf.mxu0
    %v2033 = vadd.f32 %v67, %v2032
    %2034 = vmatmul.f32.gmra.mxu0 %v1246
    %v2035 = vpop.f32.mrf.mxu0
    %v2036 = vadd.f32 %v67, %v2035
    %2037 = vmatmul.f32.gmra.mxu0 %v1249
    %v2038 = vpop.f32.mrf.mxu0
    %v2039 = vadd.f32 %v67, %v2038
    %2040 = vmatmul.f32.gmra.mxu0 %v1252
    %v2041 = vpop.f32.mrf.mxu0
    %v2042 = vadd.f32 %v67, %v2041
    %2043 = vmatmul.f32.gmra.mxu0 %v1255
    %v2044 = vpop.f32.mrf.mxu0
    %v2045 = vadd.f32 %v67, %v2044
    %2046 = vmatmul.f32.gmra.mxu0 %v1258
    %v2047 = vpop.f32.mrf.mxu0
    %v2048 = vadd.f32 %v67, %v2047
    %2049 = vmatmul.f32.gmra.mxu0 %v1261
    %v2050 = vpop.f32.mrf.mxu0
    %v2051 = vadd.f32 %v67, %v2050
    %2052 = vmatmul.f32.gmra.mxu0 %v1264
    %v2053 = vpop.f32.mrf.mxu0
    %v2054 = vadd.f32 %v67, %v2053
    %2055 = vmatmul.f32.gmra.mxu0 %v1267
    %v2056 = vpop.f32.mrf.mxu0
    %v2057 = vadd.f32 %v67, %v2056
    %2058 = vmatmul.f32.gmra.mxu0 %v1270
    %v2059 = vpop.f32.mrf.mxu0
    %v2060 = vadd.f32 %v67, %v2059
    %2061 = vmatmul.f32.gmra.mxu0 %v1273
    %v2062 = vpop.f32.mrf.mxu0
    %v2063 = vadd.f32 %v67, %v2062
    %2064 = vmatmul.f32.gmra.mxu0 %v1276
    %v2065 = vpop.f32.mrf.mxu0
    %v2066 = vadd.f32 %v67, %v2065
    %2067 = vmatmul.f32.gmra.mxu0 %v1279
    %v2068 = vpop.f32.mrf.mxu0
    %v2069 = vadd.f32 %v67, %v2068
    %2070 = vmatmul.f32.gmra.mxu0 %v1282
    %v2071 = vpop.f32.mrf.mxu0
    %v2072 = vadd.f32 %v67, %v2071
    %2073 = vmatmul.f32.gmra.mxu0 %v1285
    %v2074 = vpop.f32.mrf.mxu0
    %v2075 = vadd.f32 %v67, %v2074
    %2076 = vmatmul.f32.gmra.mxu0 %v1288
    %v2077 = vpop.f32.mrf.mxu0
    %v2078 = vadd.f32 %v67, %v2077
    %2079 = vmatmul.f32.gmra.mxu0 %v1291
    %v2080 = vpop.f32.mrf.mxu0
    %v2081 = vadd.f32 %v67, %v2080
    %2082 = vmatmul.f32.gmra.mxu0 %v1294
    %v2083 = vpop.f32.mrf.mxu0
    %v2084 = vadd.f32 %v67, %v2083
    %2085 = vmatmul.f32.gmra.mxu0 %v1297
    %v2086 = vpop.f32.mrf.mxu0
    %v2087 = vadd.f32 %v67, %v2086
    %2088 = vmatmul.f32.gmra.mxu0 %v1300
    %v2089 = vpop.f32.mrf.mxu0
    %v2090 = vadd.f32 %v67, %v2089
    %2091 = vmatmul.f32.gmra.mxu0 %v1303
    %v2092 = vpop.f32.mrf.mxu0
    %v2093 = vadd.f32 %v67, %v2092
    %2094 = vmatmul.f32.gmra.mxu0 %v1306
    %v2095 = vpop.f32.mrf.mxu0
    %v2096 = vadd.f32 %v67, %v2095
    %2097 = vmatmul.f32.gmra.mxu0 %v1309
    %v2098 = vpop.f32.mrf.mxu0
    %v2099 = vadd.f32 %v67, %v2098
    %2100 = vmatmul.f32.gmra.mxu0 %v1312
    %v2101 = vpop.f32.mrf.mxu0
    %v2102 = vadd.f32 %v67, %v2101
    %2103 = vmatmul.f32.gmra.mxu0 %v1315
    %v2104 = vpop.f32.mrf.mxu0
    %v2105 = vadd.f32 %v67, %v2104
    %2106 = vmatmul.f32.gmra.mxu0 %v1318
    %v2107 = vpop.f32.mrf.mxu0
    %v2108 = vadd.f32 %v67, %v2107
    %2109 = vmatmul.f32.gmra.mxu0 %v1321
    %v2110 = vpop.f32.mrf.mxu0
    %v2111 = vadd.f32 %v67, %v2110
    %2112 = vmatmul.f32.gmra.mxu0 %v1324
    %v2113 = vpop.f32.mrf.mxu0
    %v2114 = vadd.f32 %v67, %v2113
    %2115 = vmatmul.f32.gmra.mxu0 %v1327
    %v2116 = vpop.f32.mrf.mxu0
    %v2117 = vadd.f32 %v67, %v2116
    %2118 = vmatmul.f32.gmra.mxu0 %v1330
    %v2119 = vpop.f32.mrf.mxu0
    %v2120 = vadd.f32 %v67, %v2119
    %2121 = vmatmul.f32.gmra.mxu0 %v1333
    %v2122 = vpop.f32.mrf.mxu0
    %v2123 = vadd.f32 %v67, %v2122
    %2124 = vmatmul.f32.gmra.mxu0 %v1336
    %v2125 = vpop.f32.mrf.mxu0
    %v2126 = vadd.f32 %v67, %v2125
    %2127 = vmatmul.f32.gmra.mxu0 %v1339
    %v2128 = vpop.f32.mrf.mxu0
    %v2129 = vadd.f32 %v67, %v2128
    %2130 = vmatmul.f32.gmra.mxu0 %v1342
    %v2131 = vpop.f32.mrf.mxu0
    %v2132 = vadd.f32 %v67, %v2131
    %2133 = vmatmul.f32.gmra.mxu0 %v1345
    %v2134 = vpop.f32.mrf.mxu0
    %v2135 = vadd.f32 %v67, %v2134
    %2136 = vmatmul.f32.gmra.mxu0 %v1348
    %v2137 = vpop.f32.mrf.mxu0
    %v2138 = vadd.f32 %v67, %v2137
    %2139 = vmatmul.f32.gmra.mxu0 %v1351
    %v2140 = vpop.f32.mrf.mxu0
    %v2141 = vadd.f32 %v67, %v2140
    %2142 = vmatmul.f32.gmra.mxu0 %v1354
    %v2143 = vpop.f32.mrf.mxu0
    %v2144 = vadd.f32 %v67, %v2143
    %2145 = vmatmul.f32.gmra.mxu0 %v1357
    %v2146 = vpop.f32.mrf.mxu0
    %v2147 = vadd.f32 %v67, %v2146
    %2148 = vmatmul.f32.gmra.mxu0 %v1360
    %v2149 = vpop.f32.mrf.mxu0
    %v2150 = vadd.f32 %v67, %v2149
    %2151 = vmatmul.f32.gmra.mxu0 %v1363
    %v2152 = vpop.f32.mrf.mxu0
    %v2153 = vadd.f32 %v67, %v2152
    %2154 = vmatmul.f32.gmra.mxu0 %v1366
    %v2155 = vpop.f32.mrf.mxu0
    %v2156 = vadd.f32 %v67, %v2155
    %2157 = vmatmul.f32.gmra.mxu0 %v1369
    %v2158 = vpop.f32.mrf.mxu0
    %v2159 = vadd.f32 %v67, %v2158
    %2160 = vmatmul.f32.gmra.mxu0 %v1372
    %v2161 = vpop.f32.mrf.mxu0
    %v2162 = vadd.f32 %v67, %v2161
    %2163 = vmatmul.f32.gmra.mxu0 %v1375
    %v2164 = vpop.f32.mrf.mxu0
    %v2165 = vadd.f32 %v67, %v2164
    %2166 = vmatmul.f32.gmra.mxu0 %v1378
    %v2167 = vpop.f32.mrf.mxu0
    %v2168 = vadd.f32 %v67, %v2167
    %2169 = vmatmul.f32.gmra.mxu0 %v1381
    %v2170 = vpop.f32.mrf.mxu0
    %v2171 = vadd.f32 %v67, %v2170
    %2172 = vmatmul.f32.gmra.mxu0 %v1384
    %v2173 = vpop.f32.mrf.mxu0
    %v2174 = vadd.f32 %v67, %v2173
    %2175 = vmatmul.f32.gmra.mxu0 %v1387
    %v2176 = vpop.f32.mrf.mxu0
    %v2177 = vadd.f32 %v67, %v2176
    %2178 = vmatmul.f32.gmra.mxu0 %v1390
    %v2179 = vpop.f32.mrf.mxu0
    %v2180 = vadd.f32 %v67, %v2179
    %2181 = vmatmul.f32.gmra.mxu0 %v1393
    %v2182 = vpop.f32.mrf.mxu0
    %v2183 = vadd.f32 %v67, %v2182
    %2184 = vmatmul.f32.gmra.mxu0 %v1396
    %v2185 = vpop.f32.mrf.mxu0
    %v2186 = vadd.f32 %v67, %v2185
    %2187 = vmatmul.f32.gmra.mxu0 %v1399
    %v2188 = vpop.f32.mrf.mxu0
    %v2189 = vadd.f32 %v67, %v2188
    %2190 = vmatmul.f32.gmra.mxu0 %v1402
    %v2191 = vpop.f32.mrf.mxu0
    %v2192 = vadd.f32 %v67, %v2191
    %2193 = vmatmul.f32.gmra.mxu0 %v1405
    %v2194 = vpop.f32.mrf.mxu0
    %v2195 = vadd.f32 %v67, %v2194
    %2196 = vdwg.mxu0
    %2197 = vmatpush.msra.mxu0 0.0
    %2198 = vmatpush.msra.mxu0 0.0
    %2199 = vmatpush.msra.mxu0 0.0
    %2200 = vmatpush.msra.mxu0 0.0
    %2201 = vmatpush.msra.mxu0 0.0
    %2202 = vmatpush.msra.mxu0 0.0
    %2203 = vmatpush.msra.mxu0 0.0
    %2204 = vmatpush.msra.mxu0 0.0
    %2205 = vmatpush.msra.mxu0 0.0
    %2206 = vmatpush.msra.mxu0 0.0
    %2207 = vmatpush.msra.mxu0 0.0
    %2208 = vmatpush.msra.mxu0 0.0
    %2209 = vmatpush.msra.mxu0 0.0
    %2210 = vmatpush.msra.mxu0 0.0
    %2211 = vmatpush.msra.mxu0 0.0
    %2212 = vmatpush.msra.mxu0 %v1410
    %2213 = vmatmul.f32.gmra.mxu0 %v640
    %v2214 = vpop.f32.mrf.mxu0
    %v2215 = vadd.f32 %v68, %v2214
    %2216 = vmatmul.f32.gmra.mxu0 %v643
    %v2217 = vpop.f32.mrf.mxu0
    %v2218 = vadd.f32 %v68, %v2217
    %2219 = vmatmul.f32.gmra.mxu0 %v646
    %v2220 = vpop.f32.mrf.mxu0
    %v2221 = vadd.f32 %v68, %v2220
    %2222 = vmatmul.f32.gmra.mxu0 %v649
    %v2223 = vpop.f32.mrf.mxu0
    %v2224 = vadd.f32 %v68, %v2223
    %2225 = vmatmul.f32.gmra.mxu0 %v652
    %v2226 = vpop.f32.mrf.mxu0
    %v2227 = vadd.f32 %v68, %v2226
    %2228 = vmatmul.f32.gmra.mxu0 %v655
    %v2229 = vpop.f32.mrf.mxu0
    %v2230 = vadd.f32 %v68, %v2229
    %2231 = vmatmul.f32.gmra.mxu0 %v658
    %v2232 = vpop.f32.mrf.mxu0
    %v2233 = vadd.f32 %v68, %v2232
    %2234 = vmatmul.f32.gmra.mxu0 %v661
    %v2235 = vpop.f32.mrf.mxu0
    %v2236 = vadd.f32 %v68, %v2235
    %2237 = vmatmul.f32.gmra.mxu0 %v664
    %v2238 = vpop.f32.mrf.mxu0
    %v2239 = vadd.f32 %v68, %v2238
    %2240 = vmatmul.f32.gmra.mxu0 %v667
    %v2241 = vpop.f32.mrf.mxu0
    %v2242 = vadd.f32 %v68, %v2241
    %2243 = vmatmul.f32.gmra.mxu0 %v670
    %v2244 = vpop.f32.mrf.mxu0
    %v2245 = vadd.f32 %v68, %v2244
    %2246 = vmatmul.f32.gmra.mxu0 %v673
    %v2247 = vpop.f32.mrf.mxu0
    %v2248 = vadd.f32 %v68, %v2247
    %2249 = vmatmul.f32.gmra.mxu0 %v676
    %v2250 = vpop.f32.mrf.mxu0
    %v2251 = vadd.f32 %v68, %v2250
    %2252 = vmatmul.f32.gmra.mxu0 %v679
    %v2253 = vpop.f32.mrf.mxu0
    %v2254 = vadd.f32 %v68, %v2253
    %2255 = vmatmul.f32.gmra.mxu0 %v682
    %v2256 = vpop.f32.mrf.mxu0
    %v2257 = vadd.f32 %v68, %v2256
    %2258 = vmatmul.f32.gmra.mxu0 %v685
    %v2259 = vpop.f32.mrf.mxu0
    %v2260 = vadd.f32 %v68, %v2259
    %2261 = vmatmul.f32.gmra.mxu0 %v688
    %v2262 = vpop.f32.mrf.mxu0
    %v2263 = vadd.f32 %v68, %v2262
    %2264 = vmatmul.f32.gmra.mxu0 %v691
    %v2265 = vpop.f32.mrf.mxu0
    %v2266 = vadd.f32 %v68, %v2265
    %2267 = vmatmul.f32.gmra.mxu0 %v694
    %v2268 = vpop.f32.mrf.mxu0
    %v2269 = vadd.f32 %v68, %v2268
    %2270 = vmatmul.f32.gmra.mxu0 %v697
    %v2271 = vpop.f32.mrf.mxu0
    %v2272 = vadd.f32 %v68, %v2271
    %2273 = vmatmul.f32.gmra.mxu0 %v700
    %v2274 = vpop.f32.mrf.mxu0
    %v2275 = vadd.f32 %v68, %v2274
    %2276 = vmatmul.f32.gmra.mxu0 %v703
    %v2277 = vpop.f32.mrf.mxu0
    %v2278 = vadd.f32 %v68, %v2277
    %2279 = vmatmul.f32.gmra.mxu0 %v706
    %v2280 = vpop.f32.mrf.mxu0
    %v2281 = vadd.f32 %v68, %v2280
    %2282 = vmatmul.f32.gmra.mxu0 %v709
    %v2283 = vpop.f32.mrf.mxu0
    %v2284 = vadd.f32 %v68, %v2283
    %2285 = vmatmul.f32.gmra.mxu0 %v712
    %v2286 = vpop.f32.mrf.mxu0
    %v2287 = vadd.f32 %v68, %v2286
    %2288 = vmatmul.f32.gmra.mxu0 %v715
    %v2289 = vpop.f32.mrf.mxu0
    %v2290 = vadd.f32 %v68, %v2289
    %2291 = vmatmul.f32.gmra.mxu0 %v718
    %v2292 = vpop.f32.mrf.mxu0
    %v2293 = vadd.f32 %v68, %v2292
    %2294 = vmatmul.f32.gmra.mxu0 %v721
    %v2295 = vpop.f32.mrf.mxu0
    %v2296 = vadd.f32 %v68, %v2295
    %2297 = vmatmul.f32.gmra.mxu0 %v724
    %v2298 = vpop.f32.mrf.mxu0
    %v2299 = vadd.f32 %v68, %v2298
    %2300 = vmatmul.f32.gmra.mxu0 %v727
    %v2301 = vpop.f32.mrf.mxu0
    %v2302 = vadd.f32 %v68, %v2301
    %2303 = vmatmul.f32.gmra.mxu0 %v730
    %v2304 = vpop.f32.mrf.mxu0
    %v2305 = vadd.f32 %v68, %v2304
    %2306 = vmatmul.f32.gmra.mxu0 %v733
    %v2307 = vpop.f32.mrf.mxu0
    %v2308 = vadd.f32 %v68, %v2307
    %2309 = vmatmul.f32.gmra.mxu0 %v736
    %v2310 = vpop.f32.mrf.mxu0
    %v2311 = vadd.f32 %v68, %v2310
    %2312 = vmatmul.f32.gmra.mxu0 %v739
    %v2313 = vpop.f32.mrf.mxu0
    %v2314 = vadd.f32 %v68, %v2313
    %2315 = vmatmul.f32.gmra.mxu0 %v742
    %v2316 = vpop.f32.mrf.mxu0
    %v2317 = vadd.f32 %v68, %v2316
    %2318 = vmatmul.f32.gmra.mxu0 %v745
    %v2319 = vpop.f32.mrf.mxu0
    %v2320 = vadd.f32 %v68, %v2319
    %2321 = vmatmul.f32.gmra.mxu0 %v748
    %v2322 = vpop.f32.mrf.mxu0
    %v2323 = vadd.f32 %v68, %v2322
    %2324 = vmatmul.f32.gmra.mxu0 %v751
    %v2325 = vpop.f32.mrf.mxu0
    %v2326 = vadd.f32 %v68, %v2325
    %2327 = vmatmul.f32.gmra.mxu0 %v754
    %v2328 = vpop.f32.mrf.mxu0
    %v2329 = vadd.f32 %v68, %v2328
    %2330 = vmatmul.f32.gmra.mxu0 %v757
    %v2331 = vpop.f32.mrf.mxu0
    %v2332 = vadd.f32 %v68, %v2331
    %2333 = vmatmul.f32.gmra.mxu0 %v760
    %v2334 = vpop.f32.mrf.mxu0
    %v2335 = vadd.f32 %v68, %v2334
    %2336 = vmatmul.f32.gmra.mxu0 %v763
    %v2337 = vpop.f32.mrf.mxu0
    %v2338 = vadd.f32 %v68, %v2337
    %2339 = vmatmul.f32.gmra.mxu0 %v766
    %v2340 = vpop.f32.mrf.mxu0
    %v2341 = vadd.f32 %v68, %v2340
    %2342 = vmatmul.f32.gmra.mxu0 %v769
    %v2343 = vpop.f32.mrf.mxu0
    %v2344 = vadd.f32 %v68, %v2343
    %2345 = vmatmul.f32.gmra.mxu0 %v772
    %v2346 = vpop.f32.mrf.mxu0
    %v2347 = vadd.f32 %v68, %v2346
    %2348 = vmatmul.f32.gmra.mxu0 %v775
    %v2349 = vpop.f32.mrf.mxu0
    %v2350 = vadd.f32 %v68, %v2349
    %2351 = vmatmul.f32.gmra.mxu0 %v778
    %v2352 = vpop.f32.mrf.mxu0
    %v2353 = vadd.f32 %v68, %v2352
    %2354 = vmatmul.f32.gmra.mxu0 %v781
    %v2355 = vpop.f32.mrf.mxu0
    %v2356 = vadd.f32 %v68, %v2355
    %2357 = vmatmul.f32.gmra.mxu0 %v784
    %v2358 = vpop.f32.mrf.mxu0
    %v2359 = vadd.f32 %v68, %v2358
    %2360 = vmatmul.f32.gmra.mxu0 %v787
    %v2361 = vpop.f32.mrf.mxu0
    %v2362 = vadd.f32 %v68, %v2361
    %2363 = vmatmul.f32.gmra.mxu0 %v790
    %v2364 = vpop.f32.mrf.mxu0
    %v2365 = vadd.f32 %v68, %v2364
    %2366 = vmatmul.f32.gmra.mxu0 %v793
    %v2367 = vpop.f32.mrf.mxu0
    %v2368 = vadd.f32 %v68, %v2367
    %2369 = vmatmul.f32.gmra.mxu0 %v796
    %v2370 = vpop.f32.mrf.mxu0
    %v2371 = vadd.f32 %v68, %v2370
    %2372 = vmatmul.f32.gmra.mxu0 %v799
    %v2373 = vpop.f32.mrf.mxu0
    %v2374 = vadd.f32 %v68, %v2373
    %2375 = vmatmul.f32.gmra.mxu0 %v802
    %v2376 = vpop.f32.mrf.mxu0
    %v2377 = vadd.f32 %v68, %v2376
    %2378 = vmatmul.f32.gmra.mxu0 %v805
    %v2379 = vpop.f32.mrf.mxu0
    %v2380 = vadd.f32 %v68, %v2379
    %2381 = vmatmul.f32.gmra.mxu0 %v808
    %v2382 = vpop.f32.mrf.mxu0
    %v2383 = vadd.f32 %v68, %v2382
    %2384 = vmatmul.f32.gmra.mxu0 %v811
    %v2385 = vpop.f32.mrf.mxu0
    %v2386 = vadd.f32 %v68, %v2385
    %2387 = vmatmul.f32.gmra.mxu0 %v814
    %v2388 = vpop.f32.mrf.mxu0
    %v2389 = vadd.f32 %v68, %v2388
    %2390 = vmatmul.f32.gmra.mxu0 %v817
    %v2391 = vpop.f32.mrf.mxu0
    %v2392 = vadd.f32 %v68, %v2391
    %2393 = vmatmul.f32.gmra.mxu0 %v820
    %v2394 = vpop.f32.mrf.mxu0
    %v2395 = vadd.f32 %v68, %v2394
    %2396 = vmatmul.f32.gmra.mxu0 %v823
    %v2397 = vpop.f32.mrf.mxu0
    %v2398 = vadd.f32 %v68, %v2397
    %2399 = vmatmul.f32.gmra.mxu0 %v826
    %v2400 = vpop.f32.mrf.mxu0
    %v2401 = vadd.f32 %v68, %v2400
    %2402 = vmatmul.f32.gmra.mxu0 %v829
    %v2403 = vpop.f32.mrf.mxu0
    %v2404 = vadd.f32 %v68, %v2403
    %2405 = vmatmul.f32.gmra.mxu0 %v832
    %v2406 = vpop.f32.mrf.mxu0
    %v2407 = vadd.f32 %v68, %v2406
    %2408 = vmatmul.f32.gmra.mxu0 %v835
    %v2409 = vpop.f32.mrf.mxu0
    %v2410 = vadd.f32 %v68, %v2409
    %2411 = vmatmul.f32.gmra.mxu0 %v838
    %v2412 = vpop.f32.mrf.mxu0
    %v2413 = vadd.f32 %v68, %v2412
    %2414 = vmatmul.f32.gmra.mxu0 %v841
    %v2415 = vpop.f32.mrf.mxu0
    %v2416 = vadd.f32 %v68, %v2415
    %2417 = vmatmul.f32.gmra.mxu0 %v844
    %v2418 = vpop.f32.mrf.mxu0
    %v2419 = vadd.f32 %v68, %v2418
    %2420 = vmatmul.f32.gmra.mxu0 %v847
    %v2421 = vpop.f32.mrf.mxu0
    %v2422 = vadd.f32 %v68, %v2421
    %2423 = vmatmul.f32.gmra.mxu0 %v850
    %v2424 = vpop.f32.mrf.mxu0
    %v2425 = vadd.f32 %v68, %v2424
    %2426 = vmatmul.f32.gmra.mxu0 %v853
    %v2427 = vpop.f32.mrf.mxu0
    %v2428 = vadd.f32 %v68, %v2427
    %2429 = vmatmul.f32.gmra.mxu0 %v856
    %v2430 = vpop.f32.mrf.mxu0
    %v2431 = vadd.f32 %v68, %v2430
    %2432 = vmatmul.f32.gmra.mxu0 %v859
    %v2433 = vpop.f32.mrf.mxu0
    %v2434 = vadd.f32 %v68, %v2433
    %2435 = vmatmul.f32.gmra.mxu0 %v862
    %v2436 = vpop.f32.mrf.mxu0
    %v2437 = vadd.f32 %v68, %v2436
    %2438 = vmatmul.f32.gmra.mxu0 %v865
    %v2439 = vpop.f32.mrf.mxu0
    %v2440 = vadd.f32 %v68, %v2439
    %2441 = vmatmul.f32.gmra.mxu0 %v868
    %v2442 = vpop.f32.mrf.mxu0
    %v2443 = vadd.f32 %v68, %v2442
    %2444 = vmatmul.f32.gmra.mxu0 %v871
    %v2445 = vpop.f32.mrf.mxu0
    %v2446 = vadd.f32 %v68, %v2445
    %2447 = vmatmul.f32.gmra.mxu0 %v874
    %v2448 = vpop.f32.mrf.mxu0
    %v2449 = vadd.f32 %v68, %v2448
    %2450 = vmatmul.f32.gmra.mxu0 %v877
    %v2451 = vpop.f32.mrf.mxu0
    %v2452 = vadd.f32 %v68, %v2451
    %2453 = vmatmul.f32.gmra.mxu0 %v880
    %v2454 = vpop.f32.mrf.mxu0
    %v2455 = vadd.f32 %v68, %v2454
    %2456 = vmatmul.f32.gmra.mxu0 %v883
    %v2457 = vpop.f32.mrf.mxu0
    %v2458 = vadd.f32 %v68, %v2457
    %2459 = vmatmul.f32.gmra.mxu0 %v886
    %v2460 = vpop.f32.mrf.mxu0
    %v2461 = vadd.f32 %v68, %v2460
    %2462 = vmatmul.f32.gmra.mxu0 %v889
    %v2463 = vpop.f32.mrf.mxu0
    %v2464 = vadd.f32 %v68, %v2463
    %2465 = vmatmul.f32.gmra.mxu0 %v892
    %v2466 = vpop.f32.mrf.mxu0
    %v2467 = vadd.f32 %v68, %v2466
    %2468 = vmatmul.f32.gmra.mxu0 %v895
    %v2469 = vpop.f32.mrf.mxu0
    %v2470 = vadd.f32 %v68, %v2469
    %2471 = vmatmul.f32.gmra.mxu0 %v898
    %v2472 = vpop.f32.mrf.mxu0
    %v2473 = vadd.f32 %v68, %v2472
    %2474 = vmatmul.f32.gmra.mxu0 %v901
    %v2475 = vpop.f32.mrf.mxu0
    %v2476 = vadd.f32 %v68, %v2475
    %2477 = vmatmul.f32.gmra.mxu0 %v904
    %v2478 = vpop.f32.mrf.mxu0
    %v2479 = vadd.f32 %v68, %v2478
    %2480 = vmatmul.f32.gmra.mxu0 %v907
    %v2481 = vpop.f32.mrf.mxu0
    %v2482 = vadd.f32 %v68, %v2481
    %2483 = vmatmul.f32.gmra.mxu0 %v910
    %v2484 = vpop.f32.mrf.mxu0
    %v2485 = vadd.f32 %v68, %v2484
    %2486 = vmatmul.f32.gmra.mxu0 %v913
    %v2487 = vpop.f32.mrf.mxu0
    %v2488 = vadd.f32 %v68, %v2487
    %2489 = vmatmul.f32.gmra.mxu0 %v916
    %v2490 = vpop.f32.mrf.mxu0
    %v2491 = vadd.f32 %v68, %v2490
    %2492 = vmatmul.f32.gmra.mxu0 %v919
    %v2493 = vpop.f32.mrf.mxu0
    %v2494 = vadd.f32 %v68, %v2493
    %2495 = vmatmul.f32.gmra.mxu0 %v922
    %v2496 = vpop.f32.mrf.mxu0
    %v2497 = vadd.f32 %v68, %v2496
    %2498 = vmatmul.f32.gmra.mxu0 %v925
    %v2499 = vpop.f32.mrf.mxu0
    %v2500 = vadd.f32 %v68, %v2499
    %2501 = vmatmul.f32.gmra.mxu0 %v928
    %v2502 = vpop.f32.mrf.mxu0
    %v2503 = vadd.f32 %v68, %v2502
    %2504 = vmatmul.f32.gmra.mxu0 %v931
    %v2505 = vpop.f32.mrf.mxu0
    %v2506 = vadd.f32 %v68, %v2505
    %2507 = vmatmul.f32.gmra.mxu0 %v934
    %v2508 = vpop.f32.mrf.mxu0
    %v2509 = vadd.f32 %v68, %v2508
    %2510 = vmatmul.f32.gmra.mxu0 %v937
    %v2511 = vpop.f32.mrf.mxu0
    %v2512 = vadd.f32 %v68, %v2511
    %2513 = vmatmul.f32.gmra.mxu0 %v940
    %v2514 = vpop.f32.mrf.mxu0
    %v2515 = vadd.f32 %v68, %v2514
    %2516 = vmatmul.f32.gmra.mxu0 %v943
    %v2517 = vpop.f32.mrf.mxu0
    %v2518 = vadd.f32 %v68, %v2517
    %2519 = vmatmul.f32.gmra.mxu0 %v946
    %v2520 = vpop.f32.mrf.mxu0
    %v2521 = vadd.f32 %v68, %v2520
    %2522 = vmatmul.f32.gmra.mxu0 %v949
    %v2523 = vpop.f32.mrf.mxu0
    %v2524 = vadd.f32 %v68, %v2523
    %2525 = vmatmul.f32.gmra.mxu0 %v952
    %v2526 = vpop.f32.mrf.mxu0
    %v2527 = vadd.f32 %v68, %v2526
    %2528 = vmatmul.f32.gmra.mxu0 %v955
    %v2529 = vpop.f32.mrf.mxu0
    %v2530 = vadd.f32 %v68, %v2529
    %2531 = vmatmul.f32.gmra.mxu0 %v958
    %v2532 = vpop.f32.mrf.mxu0
    %v2533 = vadd.f32 %v68, %v2532
    %2534 = vmatmul.f32.gmra.mxu0 %v961
    %v2535 = vpop.f32.mrf.mxu0
    %v2536 = vadd.f32 %v68, %v2535
    %2537 = vmatmul.f32.gmra.mxu0 %v964
    %v2538 = vpop.f32.mrf.mxu0
    %v2539 = vadd.f32 %v68, %v2538
    %2540 = vmatmul.f32.gmra.mxu0 %v967
    %v2541 = vpop.f32.mrf.mxu0
    %v2542 = vadd.f32 %v68, %v2541
    %2543 = vmatmul.f32.gmra.mxu0 %v970
    %v2544 = vpop.f32.mrf.mxu0
    %v2545 = vadd.f32 %v68, %v2544
    %2546 = vmatmul.f32.gmra.mxu0 %v973
    %v2547 = vpop.f32.mrf.mxu0
    %v2548 = vadd.f32 %v68, %v2547
    %2549 = vmatmul.f32.gmra.mxu0 %v976
    %v2550 = vpop.f32.mrf.mxu0
    %v2551 = vadd.f32 %v68, %v2550
    %2552 = vmatmul.f32.gmra.mxu0 %v979
    %v2553 = vpop.f32.mrf.mxu0
    %v2554 = vadd.f32 %v68, %v2553
    %2555 = vmatmul.f32.gmra.mxu0 %v982
    %v2556 = vpop.f32.mrf.mxu0
    %v2557 = vadd.f32 %v68, %v2556
    %2558 = vmatmul.f32.gmra.mxu0 %v985
    %v2559 = vpop.f32.mrf.mxu0
    %v2560 = vadd.f32 %v68, %v2559
    %2561 = vmatmul.f32.gmra.mxu0 %v988
    %v2562 = vpop.f32.mrf.mxu0
    %v2563 = vadd.f32 %v68, %v2562
    %2564 = vmatmul.f32.gmra.mxu0 %v991
    %v2565 = vpop.f32.mrf.mxu0
    %v2566 = vadd.f32 %v68, %v2565
    %2567 = vmatmul.f32.gmra.mxu0 %v994
    %v2568 = vpop.f32.mrf.mxu0
    %v2569 = vadd.f32 %v68, %v2568
    %2570 = vmatmul.f32.gmra.mxu0 %v997
    %v2571 = vpop.f32.mrf.mxu0
    %v2572 = vadd.f32 %v68, %v2571
    %2573 = vmatmul.f32.gmra.mxu0 %v1000
    %v2574 = vpop.f32.mrf.mxu0
    %v2575 = vadd.f32 %v68, %v2574
    %2576 = vmatmul.f32.gmra.mxu0 %v1003
    %v2577 = vpop.f32.mrf.mxu0
    %v2578 = vadd.f32 %v68, %v2577
    %2579 = vmatmul.f32.gmra.mxu0 %v1006
    %v2580 = vpop.f32.mrf.mxu0
    %v2581 = vadd.f32 %v68, %v2580
    %2582 = vmatmul.f32.gmra.mxu0 %v1009
    %v2583 = vpop.f32.mrf.mxu0
    %v2584 = vadd.f32 %v68, %v2583
    %2585 = vmatmul.f32.gmra.mxu0 %v1012
    %v2586 = vpop.f32.mrf.mxu0
    %v2587 = vadd.f32 %v68, %v2586
    %2588 = vmatmul.f32.gmra.mxu0 %v1015
    %v2589 = vpop.f32.mrf.mxu0
    %v2590 = vadd.f32 %v68, %v2589
    %2591 = vmatmul.f32.gmra.mxu0 %v1018
    %v2592 = vpop.f32.mrf.mxu0
    %v2593 = vadd.f32 %v68, %v2592
    %2594 = vmatmul.f32.gmra.mxu0 %v1021
    %v2595 = vpop.f32.mrf.mxu0
    %v2596 = vadd.f32 %v68, %v2595
    %2597 = vmatmul.f32.gmra.mxu0 %v1024
    %v2598 = vpop.f32.mrf.mxu0
    %v2599 = vadd.f32 %v68, %v2598
    %2600 = vmatmul.f32.gmra.mxu0 %v1027
    %v2601 = vpop.f32.mrf.mxu0
    %v2602 = vadd.f32 %v68, %v2601
    %2603 = vmatmul.f32.gmra.mxu0 %v1030
    %v2604 = vpop.f32.mrf.mxu0
    %v2605 = vadd.f32 %v68, %v2604
    %2606 = vmatmul.f32.gmra.mxu0 %v1033
    %v2607 = vpop.f32.mrf.mxu0
    %v2608 = vadd.f32 %v68, %v2607
    %2609 = vmatmul.f32.gmra.mxu0 %v1036
    %v2610 = vpop.f32.mrf.mxu0
    %v2611 = vadd.f32 %v68, %v2610
    %2612 = vmatmul.f32.gmra.mxu0 %v1039
    %v2613 = vpop.f32.mrf.mxu0
    %v2614 = vadd.f32 %v68, %v2613
    %2615 = vmatmul.f32.gmra.mxu0 %v1042
    %v2616 = vpop.f32.mrf.mxu0
    %v2617 = vadd.f32 %v68, %v2616
    %2618 = vmatmul.f32.gmra.mxu0 %v1045
    %v2619 = vpop.f32.mrf.mxu0
    %v2620 = vadd.f32 %v68, %v2619
    %2621 = vmatmul.f32.gmra.mxu0 %v1048
    %v2622 = vpop.f32.mrf.mxu0
    %v2623 = vadd.f32 %v68, %v2622
    %2624 = vmatmul.f32.gmra.mxu0 %v1051
    %v2625 = vpop.f32.mrf.mxu0
    %v2626 = vadd.f32 %v68, %v2625
    %2627 = vmatmul.f32.gmra.mxu0 %v1054
    %v2628 = vpop.f32.mrf.mxu0
    %v2629 = vadd.f32 %v68, %v2628
    %2630 = vmatmul.f32.gmra.mxu0 %v1057
    %v2631 = vpop.f32.mrf.mxu0
    %v2632 = vadd.f32 %v68, %v2631
    %2633 = vmatmul.f32.gmra.mxu0 %v1060
    %v2634 = vpop.f32.mrf.mxu0
    %v2635 = vadd.f32 %v68, %v2634
    %2636 = vmatmul.f32.gmra.mxu0 %v1063
    %v2637 = vpop.f32.mrf.mxu0
    %v2638 = vadd.f32 %v68, %v2637
    %2639 = vmatmul.f32.gmra.mxu0 %v1066
    %v2640 = vpop.f32.mrf.mxu0
    %v2641 = vadd.f32 %v68, %v2640
    %2642 = vmatmul.f32.gmra.mxu0 %v1069
    %v2643 = vpop.f32.mrf.mxu0
    %v2644 = vadd.f32 %v68, %v2643
    %2645 = vmatmul.f32.gmra.mxu0 %v1072
    %v2646 = vpop.f32.mrf.mxu0
    %v2647 = vadd.f32 %v68, %v2646
    %2648 = vmatmul.f32.gmra.mxu0 %v1075
    %v2649 = vpop.f32.mrf.mxu0
    %v2650 = vadd.f32 %v68, %v2649
    %2651 = vmatmul.f32.gmra.mxu0 %v1078
    %v2652 = vpop.f32.mrf.mxu0
    %v2653 = vadd.f32 %v68, %v2652
    %2654 = vmatmul.f32.gmra.mxu0 %v1081
    %v2655 = vpop.f32.mrf.mxu0
    %v2656 = vadd.f32 %v68, %v2655
    %2657 = vmatmul.f32.gmra.mxu0 %v1084
    %v2658 = vpop.f32.mrf.mxu0
    %v2659 = vadd.f32 %v68, %v2658
    %2660 = vmatmul.f32.gmra.mxu0 %v1087
    %v2661 = vpop.f32.mrf.mxu0
    %v2662 = vadd.f32 %v68, %v2661
    %2663 = vmatmul.f32.gmra.mxu0 %v1090
    %v2664 = vpop.f32.mrf.mxu0
    %v2665 = vadd.f32 %v68, %v2664
    %2666 = vmatmul.f32.gmra.mxu0 %v1093
    %v2667 = vpop.f32.mrf.mxu0
    %v2668 = vadd.f32 %v68, %v2667
    %2669 = vmatmul.f32.gmra.mxu0 %v1096
    %v2670 = vpop.f32.mrf.mxu0
    %v2671 = vadd.f32 %v68, %v2670
    %2672 = vmatmul.f32.gmra.mxu0 %v1099
    %v2673 = vpop.f32.mrf.mxu0
    %v2674 = vadd.f32 %v68, %v2673
    %2675 = vmatmul.f32.gmra.mxu0 %v1102
    %v2676 = vpop.f32.mrf.mxu0
    %v2677 = vadd.f32 %v68, %v2676
    %2678 = vmatmul.f32.gmra.mxu0 %v1105
    %v2679 = vpop.f32.mrf.mxu0
    %v2680 = vadd.f32 %v68, %v2679
    %2681 = vmatmul.f32.gmra.mxu0 %v1108
    %v2682 = vpop.f32.mrf.mxu0
    %v2683 = vadd.f32 %v68, %v2682
    %2684 = vmatmul.f32.gmra.mxu0 %v1111
    %v2685 = vpop.f32.mrf.mxu0
    %v2686 = vadd.f32 %v68, %v2685
    %2687 = vmatmul.f32.gmra.mxu0 %v1114
    %v2688 = vpop.f32.mrf.mxu0
    %v2689 = vadd.f32 %v68, %v2688
    %2690 = vmatmul.f32.gmra.mxu0 %v1117
    %v2691 = vpop.f32.mrf.mxu0
    %v2692 = vadd.f32 %v68, %v2691
    %2693 = vmatmul.f32.gmra.mxu0 %v1120
    %v2694 = vpop.f32.mrf.mxu0
    %v2695 = vadd.f32 %v68, %v2694
    %2696 = vmatmul.f32.gmra.mxu0 %v1123
    %v2697 = vpop.f32.mrf.mxu0
    %v2698 = vadd.f32 %v68, %v2697
    %2699 = vmatmul.f32.gmra.mxu0 %v1126
    %v2700 = vpop.f32.mrf.mxu0
    %v2701 = vadd.f32 %v68, %v2700
    %2702 = vmatmul.f32.gmra.mxu0 %v1129
    %v2703 = vpop.f32.mrf.mxu0
    %v2704 = vadd.f32 %v68, %v2703
    %2705 = vmatmul.f32.gmra.mxu0 %v1132
    %v2706 = vpop.f32.mrf.mxu0
    %v2707 = vadd.f32 %v68, %v2706
    %2708 = vmatmul.f32.gmra.mxu0 %v1135
    %v2709 = vpop.f32.mrf.mxu0
    %v2710 = vadd.f32 %v68, %v2709
    %2711 = vmatmul.f32.gmra.mxu0 %v1138
    %v2712 = vpop.f32.mrf.mxu0
    %v2713 = vadd.f32 %v68, %v2712
    %2714 = vmatmul.f32.gmra.mxu0 %v1141
    %v2715 = vpop.f32.mrf.mxu0
    %v2716 = vadd.f32 %v68, %v2715
    %2717 = vmatmul.f32.gmra.mxu0 %v1144
    %v2718 = vpop.f32.mrf.mxu0
    %v2719 = vadd.f32 %v68, %v2718
    %2720 = vmatmul.f32.gmra.mxu0 %v1147
    %v2721 = vpop.f32.mrf.mxu0
    %v2722 = vadd.f32 %v68, %v2721
    %2723 = vmatmul.f32.gmra.mxu0 %v1150
    %v2724 = vpop.f32.mrf.mxu0
    %v2725 = vadd.f32 %v68, %v2724
    %2726 = vmatmul.f32.gmra.mxu0 %v1153
    %v2727 = vpop.f32.mrf.mxu0
    %v2728 = vadd.f32 %v68, %v2727
    %2729 = vmatmul.f32.gmra.mxu0 %v1156
    %v2730 = vpop.f32.mrf.mxu0
    %v2731 = vadd.f32 %v68, %v2730
    %2732 = vmatmul.f32.gmra.mxu0 %v1159
    %v2733 = vpop.f32.mrf.mxu0
    %v2734 = vadd.f32 %v68, %v2733
    %2735 = vmatmul.f32.gmra.mxu0 %v1162
    %v2736 = vpop.f32.mrf.mxu0
    %v2737 = vadd.f32 %v68, %v2736
    %2738 = vmatmul.f32.gmra.mxu0 %v1165
    %v2739 = vpop.f32.mrf.mxu0
    %v2740 = vadd.f32 %v68, %v2739
    %2741 = vmatmul.f32.gmra.mxu0 %v1168
    %v2742 = vpop.f32.mrf.mxu0
    %v2743 = vadd.f32 %v68, %v2742
    %2744 = vmatmul.f32.gmra.mxu0 %v1171
    %v2745 = vpop.f32.mrf.mxu0
    %v2746 = vadd.f32 %v68, %v2745
    %2747 = vmatmul.f32.gmra.mxu0 %v1174
    %v2748 = vpop.f32.mrf.mxu0
    %v2749 = vadd.f32 %v68, %v2748
    %2750 = vmatmul.f32.gmra.mxu0 %v1177
    %v2751 = vpop.f32.mrf.mxu0
    %v2752 = vadd.f32 %v68, %v2751
    %2753 = vmatmul.f32.gmra.mxu0 %v1180
    %v2754 = vpop.f32.mrf.mxu0
    %v2755 = vadd.f32 %v68, %v2754
    %2756 = vmatmul.f32.gmra.mxu0 %v1183
    %v2757 = vpop.f32.mrf.mxu0
    %v2758 = vadd.f32 %v68, %v2757
    %2759 = vmatmul.f32.gmra.mxu0 %v1186
    %v2760 = vpop.f32.mrf.mxu0
    %v2761 = vadd.f32 %v68, %v2760
    %2762 = vmatmul.f32.gmra.mxu0 %v1189
    %v2763 = vpop.f32.mrf.mxu0
    %v2764 = vadd.f32 %v68, %v2763
    %2765 = vmatmul.f32.gmra.mxu0 %v1192
    %v2766 = vpop.f32.mrf.mxu0
    %v2767 = vadd.f32 %v68, %v2766
    %2768 = vmatmul.f32.gmra.mxu0 %v1195
    %v2769 = vpop.f32.mrf.mxu0
    %v2770 = vadd.f32 %v68, %v2769
    %2771 = vmatmul.f32.gmra.mxu0 %v1198
    %v2772 = vpop.f32.mrf.mxu0
    %v2773 = vadd.f32 %v68, %v2772
    %2774 = vmatmul.f32.gmra.mxu0 %v1201
    %v2775 = vpop.f32.mrf.mxu0
    %v2776 = vadd.f32 %v68, %v2775
    %2777 = vmatmul.f32.gmra.mxu0 %v1204
    %v2778 = vpop.f32.mrf.mxu0
    %v2779 = vadd.f32 %v68, %v2778
    %2780 = vmatmul.f32.gmra.mxu0 %v1207
    %v2781 = vpop.f32.mrf.mxu0
    %v2782 = vadd.f32 %v68, %v2781
    %2783 = vmatmul.f32.gmra.mxu0 %v1210
    %v2784 = vpop.f32.mrf.mxu0
    %v2785 = vadd.f32 %v68, %v2784
    %2786 = vmatmul.f32.gmra.mxu0 %v1213
    %v2787 = vpop.f32.mrf.mxu0
    %v2788 = vadd.f32 %v68, %v2787
    %2789 = vmatmul.f32.gmra.mxu0 %v1216
    %v2790 = vpop.f32.mrf.mxu0
    %v2791 = vadd.f32 %v68, %v2790
    %2792 = vmatmul.f32.gmra.mxu0 %v1219
    %v2793 = vpop.f32.mrf.mxu0
    %v2794 = vadd.f32 %v68, %v2793
    %2795 = vmatmul.f32.gmra.mxu0 %v1222
    %v2796 = vpop.f32.mrf.mxu0
    %v2797 = vadd.f32 %v68, %v2796
    %2798 = vmatmul.f32.gmra.mxu0 %v1225
    %v2799 = vpop.f32.mrf.mxu0
    %v2800 = vadd.f32 %v68, %v2799
    %2801 = vmatmul.f32.gmra.mxu0 %v1228
    %v2802 = vpop.f32.mrf.mxu0
    %v2803 = vadd.f32 %v68, %v2802
    %2804 = vmatmul.f32.gmra.mxu0 %v1231
    %v2805 = vpop.f32.mrf.mxu0
    %v2806 = vadd.f32 %v68, %v2805
    %2807 = vmatmul.f32.gmra.mxu0 %v1234
    %v2808 = vpop.f32.mrf.mxu0
    %v2809 = vadd.f32 %v68, %v2808
    %2810 = vmatmul.f32.gmra.mxu0 %v1237
    %v2811 = vpop.f32.mrf.mxu0
    %v2812 = vadd.f32 %v68, %v2811
    %2813 = vmatmul.f32.gmra.mxu0 %v1240
    %v2814 = vpop.f32.mrf.mxu0
    %v2815 = vadd.f32 %v68, %v2814
    %2816 = vmatmul.f32.gmra.mxu0 %v1243
    %v2817 = vpop.f32.mrf.mxu0
    %v2818 = vadd.f32 %v68, %v2817
    %2819 = vmatmul.f32.gmra.mxu0 %v1246
    %v2820 = vpop.f32.mrf.mxu0
    %v2821 = vadd.f32 %v68, %v2820
    %2822 = vmatmul.f32.gmra.mxu0 %v1249
    %v2823 = vpop.f32.mrf.mxu0
    %v2824 = vadd.f32 %v68, %v2823
    %2825 = vmatmul.f32.gmra.mxu0 %v1252
    %v2826 = vpop.f32.mrf.mxu0
    %v2827 = vadd.f32 %v68, %v2826
    %2828 = vmatmul.f32.gmra.mxu0 %v1255
    %v2829 = vpop.f32.mrf.mxu0
    %v2830 = vadd.f32 %v68, %v2829
    %2831 = vmatmul.f32.gmra.mxu0 %v1258
    %v2832 = vpop.f32.mrf.mxu0
    %v2833 = vadd.f32 %v68, %v2832
    %2834 = vmatmul.f32.gmra.mxu0 %v1261
    %v2835 = vpop.f32.mrf.mxu0
    %v2836 = vadd.f32 %v68, %v2835
    %2837 = vmatmul.f32.gmra.mxu0 %v1264
    %v2838 = vpop.f32.mrf.mxu0
    %v2839 = vadd.f32 %v68, %v2838
    %2840 = vmatmul.f32.gmra.mxu0 %v1267
    %v2841 = vpop.f32.mrf.mxu0
    %v2842 = vadd.f32 %v68, %v2841
    %2843 = vmatmul.f32.gmra.mxu0 %v1270
    %v2844 = vpop.f32.mrf.mxu0
    %v2845 = vadd.f32 %v68, %v2844
    %2846 = vmatmul.f32.gmra.mxu0 %v1273
    %v2847 = vpop.f32.mrf.mxu0
    %v2848 = vadd.f32 %v68, %v2847
    %2849 = vmatmul.f32.gmra.mxu0 %v1276
    %v2850 = vpop.f32.mrf.mxu0
    %v2851 = vadd.f32 %v68, %v2850
    %2852 = vmatmul.f32.gmra.mxu0 %v1279
    %v2853 = vpop.f32.mrf.mxu0
    %v2854 = vadd.f32 %v68, %v2853
    %2855 = vmatmul.f32.gmra.mxu0 %v1282
    %v2856 = vpop.f32.mrf.mxu0
    %v2857 = vadd.f32 %v68, %v2856
    %2858 = vmatmul.f32.gmra.mxu0 %v1285
    %v2859 = vpop.f32.mrf.mxu0
    %v2860 = vadd.f32 %v68, %v2859
    %2861 = vmatmul.f32.gmra.mxu0 %v1288
    %v2862 = vpop.f32.mrf.mxu0
    %v2863 = vadd.f32 %v68, %v2862
    %2864 = vmatmul.f32.gmra.mxu0 %v1291
    %v2865 = vpop.f32.mrf.mxu0
    %v2866 = vadd.f32 %v68, %v2865
    %2867 = vmatmul.f32.gmra.mxu0 %v1294
    %v2868 = vpop.f32.mrf.mxu0
    %v2869 = vadd.f32 %v68, %v2868
    %2870 = vmatmul.f32.gmra.mxu0 %v1297
    %v2871 = vpop.f32.mrf.mxu0
    %v2872 = vadd.f32 %v68, %v2871
    %2873 = vmatmul.f32.gmra.mxu0 %v1300
    %v2874 = vpop.f32.mrf.mxu0
    %v2875 = vadd.f32 %v68, %v2874
    %2876 = vmatmul.f32.gmra.mxu0 %v1303
    %v2877 = vpop.f32.mrf.mxu0
    %v2878 = vadd.f32 %v68, %v2877
    %2879 = vmatmul.f32.gmra.mxu0 %v1306
    %v2880 = vpop.f32.mrf.mxu0
    %v2881 = vadd.f32 %v68, %v2880
    %2882 = vmatmul.f32.gmra.mxu0 %v1309
    %v2883 = vpop.f32.mrf.mxu0
    %v2884 = vadd.f32 %v68, %v2883
    %2885 = vmatmul.f32.gmra.mxu0 %v1312
    %v2886 = vpop.f32.mrf.mxu0
    %v2887 = vadd.f32 %v68, %v2886
    %2888 = vmatmul.f32.gmra.mxu0 %v1315
    %v2889 = vpop.f32.mrf.mxu0
    %v2890 = vadd.f32 %v68, %v2889
    %2891 = vmatmul.f32.gmra.mxu0 %v1318
    %v2892 = vpop.f32.mrf.mxu0
    %v2893 = vadd.f32 %v68, %v2892
    %2894 = vmatmul.f32.gmra.mxu0 %v1321
    %v2895 = vpop.f32.mrf.mxu0
    %v2896 = vadd.f32 %v68, %v2895
    %2897 = vmatmul.f32.gmra.mxu0 %v1324
    %v2898 = vpop.f32.mrf.mxu0
    %v2899 = vadd.f32 %v68, %v2898
    %2900 = vmatmul.f32.gmra.mxu0 %v1327
    %v2901 = vpop.f32.mrf.mxu0
    %v2902 = vadd.f32 %v68, %v2901
    %2903 = vmatmul.f32.gmra.mxu0 %v1330
    %v2904 = vpop.f32.mrf.mxu0
    %v2905 = vadd.f32 %v68, %v2904
    %2906 = vmatmul.f32.gmra.mxu0 %v1333
    %v2907 = vpop.f32.mrf.mxu0
    %v2908 = vadd.f32 %v68, %v2907
    %2909 = vmatmul.f32.gmra.mxu0 %v1336
    %v2910 = vpop.f32.mrf.mxu0
    %v2911 = vadd.f32 %v68, %v2910
    %2912 = vmatmul.f32.gmra.mxu0 %v1339
    %v2913 = vpop.f32.mrf.mxu0
    %v2914 = vadd.f32 %v68, %v2913
    %2915 = vmatmul.f32.gmra.mxu0 %v1342
    %v2916 = vpop.f32.mrf.mxu0
    %v2917 = vadd.f32 %v68, %v2916
    %2918 = vmatmul.f32.gmra.mxu0 %v1345
    %v2919 = vpop.f32.mrf.mxu0
    %v2920 = vadd.f32 %v68, %v2919
    %2921 = vmatmul.f32.gmra.mxu0 %v1348
    %v2922 = vpop.f32.mrf.mxu0
    %v2923 = vadd.f32 %v68, %v2922
    %2924 = vmatmul.f32.gmra.mxu0 %v1351
    %v2925 = vpop.f32.mrf.mxu0
    %v2926 = vadd.f32 %v68, %v2925
    %2927 = vmatmul.f32.gmra.mxu0 %v1354
    %v2928 = vpop.f32.mrf.mxu0
    %v2929 = vadd.f32 %v68, %v2928
    %2930 = vmatmul.f32.gmra.mxu0 %v1357
    %v2931 = vpop.f32.mrf.mxu0
    %v2932 = vadd.f32 %v68, %v2931
    %2933 = vmatmul.f32.gmra.mxu0 %v1360
    %v2934 = vpop.f32.mrf.mxu0
    %v2935 = vadd.f32 %v68, %v2934
    %2936 = vmatmul.f32.gmra.mxu0 %v1363
    %v2937 = vpop.f32.mrf.mxu0
    %v2938 = vadd.f32 %v68, %v2937
    %2939 = vmatmul.f32.gmra.mxu0 %v1366
    %v2940 = vpop.f32.mrf.mxu0
    %v2941 = vadd.f32 %v68, %v2940
    %2942 = vmatmul.f32.gmra.mxu0 %v1369
    %v2943 = vpop.f32.mrf.mxu0
    %v2944 = vadd.f32 %v68, %v2943
    %2945 = vmatmul.f32.gmra.mxu0 %v1372
    %v2946 = vpop.f32.mrf.mxu0
    %v2947 = vadd.f32 %v68, %v2946
    %2948 = vmatmul.f32.gmra.mxu0 %v1375
    %v2949 = vpop.f32.mrf.mxu0
    %v2950 = vadd.f32 %v68, %v2949
    %2951 = vmatmul.f32.gmra.mxu0 %v1378
    %v2952 = vpop.f32.mrf.mxu0
    %v2953 = vadd.f32 %v68, %v2952
    %2954 = vmatmul.f32.gmra.mxu0 %v1381
    %v2955 = vpop.f32.mrf.mxu0
    %v2956 = vadd.f32 %v68, %v2955
    %2957 = vmatmul.f32.gmra.mxu0 %v1384
    %v2958 = vpop.f32.mrf.mxu0
    %v2959 = vadd.f32 %v68, %v2958
    %2960 = vmatmul.f32.gmra.mxu0 %v1387
    %v2961 = vpop.f32.mrf.mxu0
    %v2962 = vadd.f32 %v68, %v2961
    %2963 = vmatmul.f32.gmra.mxu0 %v1390
    %v2964 = vpop.f32.mrf.mxu0
    %v2965 = vadd.f32 %v68, %v2964
    %2966 = vmatmul.f32.gmra.mxu0 %v1393
    %v2967 = vpop.f32.mrf.mxu0
    %v2968 = vadd.f32 %v68, %v2967
    %2969 = vmatmul.f32.gmra.mxu0 %v1396
    %v2970 = vpop.f32.mrf.mxu0
    %v2971 = vadd.f32 %v68, %v2970
    %2972 = vmatmul.f32.gmra.mxu0 %v1399
    %v2973 = vpop.f32.mrf.mxu0
    %v2974 = vadd.f32 %v68, %v2973
    %2975 = vmatmul.f32.gmra.mxu0 %v1402
    %v2976 = vpop.f32.mrf.mxu0
    %v2977 = vadd.f32 %v68, %v2976
    %2978 = vmatmul.f32.gmra.mxu0 %v1405
    %v2979 = vpop.f32.mrf.mxu0
    %v2980 = vadd.f32 %v68, %v2979
    %2981 = vdwg.mxu0
    %2982 = vst [vmem:[#allocation8] sm:$0xff] %v1430
    %2983 = vst [vmem:[#allocation8 + $0x8] sm:$0xff] %v2215
    %2984 = vst [vmem:[#allocation8 + $0x10] sm:$0xff] %v1433
    %2985 = vst [vmem:[#allocation8 + $0x18] sm:$0xff] %v2218
    %2986 = vst [vmem:[#allocation8 + $0x20] sm:$0xff] %v1436
    %2987 = vst [vmem:[#allocation8 + $0x28] sm:$0xff] %v2221
    %2988 = vst [vmem:[#allocation8 + $0x30] sm:$0xff] %v1439
    %2989 = vst [vmem:[#allocation8 + $0x38] sm:$0xff] %v2224
    %2990 = vst [vmem:[#allocation8 + $0x40] sm:$0xff] %v1442
    %2991 = vst [vmem:[#allocation8 + $0x48] sm:$0xff] %v2227
    %2992 = vst [vmem:[#allocation8 + $0x50] sm:$0xff] %v1445
    %2993 = vst [vmem:[#allocation8 + $0x58] sm:$0xff] %v2230
    %2994 = vst [vmem:[#allocation8 + $0x60] sm:$0xff] %v1448
    %2995 = vst [vmem:[#allocation8 + $0x68] sm:$0xff] %v2233
    %2996 = vst [vmem:[#allocation8 + $0x70] sm:$0xff] %v1451
    %2997 = vst [vmem:[#allocation8 + $0x78] sm:$0xff] %v2236
    %2998 = vst [vmem:[#allocation8 + $0x80] sm:$0xff] %v1454
    %2999 = vst [vmem:[#allocation8 + $0x88] sm:$0xff] %v2239
    %3000 = vst [vmem:[#allocation8 + $0x90] sm:$0xff] %v1457
    %3001 = vst [vmem:[#allocation8 + $0x98] sm:$0xff] %v2242
    %3002 = vst [vmem:[#allocation8 + $0xa0] sm:$0xff] %v1460
    %3003 = vst [vmem:[#allocation8 + $0xa8] sm:$0xff] %v2245
    %3004 = vst [vmem:[#allocation8 + $0xb0] sm:$0xff] %v1463
    %3005 = vst [vmem:[#allocation8 + $0xb8] sm:$0xff] %v2248
    %3006 = vst [vmem:[#allocation8 + $0xc0] sm:$0xff] %v1466
    %3007 = vst [vmem:[#allocation8 + $0xc8] sm:$0xff] %v2251
    %3008 = vst [vmem:[#allocation8 + $0xd0] sm:$0xff] %v1469
    %3009 = vst [vmem:[#allocation8 + $0xd8] sm:$0xff] %v2254
    %3010 = vst [vmem:[#allocation8 + $0xe0] sm:$0xff] %v1472
    %3011 = vst [vmem:[#allocation8 + $0xe8] sm:$0xff] %v2257
    %3012 = vst [vmem:[#allocation8 + $0xf0] sm:$0xff] %v1475
    %3013 = vst [vmem:[#allocation8 + $0xf8] sm:$0xff] %v2260
    %3014 = vst [vmem:[#allocation8 + $0x100] sm:$0xff] %v1478
    %3015 = vst [vmem:[#allocation8 + $0x108] sm:$0xff] %v2263
    %3016 = vst [vmem:[#allocation8 + $0x110] sm:$0xff] %v1481
    %3017 = vst [vmem:[#allocation8 + $0x118] sm:$0xff] %v2266
    %3018 = vst [vmem:[#allocation8 + $0x120] sm:$0xff] %v1484
    %3019 = vst [vmem:[#allocation8 + $0x128] sm:$0xff] %v2269
    %3020 = vst [vmem:[#allocation8 + $0x130] sm:$0xff] %v1487
    %3021 = vst [vmem:[#allocation8 + $0x138] sm:$0xff] %v2272
    %3022 = vst [vmem:[#allocation8 + $0x140] sm:$0xff] %v1490
    %3023 = vst [vmem:[#allocation8 + $0x148] sm:$0xff] %v2275
    %3024 = vst [vmem:[#allocation8 + $0x150] sm:$0xff] %v1493
    %3025 = vst [vmem:[#allocation8 + $0x158] sm:$0xff] %v2278
    %3026 = vst [vmem:[#allocation8 + $0x160] sm:$0xff] %v1496
    %3027 = vst [vmem:[#allocation8 + $0x168] sm:$0xff] %v2281
    %3028 = vst [vmem:[#allocation8 + $0x170] sm:$0xff] %v1499
    %3029 = vst [vmem:[#allocation8 + $0x178] sm:$0xff] %v2284
    %3030 = vst [vmem:[#allocation8 + $0x180] sm:$0xff] %v1502
    %3031 = vst [vmem:[#allocation8 + $0x188] sm:$0xff] %v2287
    %3032 = vst [vmem:[#allocation8 + $0x190] sm:$0xff] %v1505
    %3033 = vst [vmem:[#allocation8 + $0x198] sm:$0xff] %v2290
    %3034 = vst [vmem:[#allocation8 + $0x1a0] sm:$0xff] %v1508
    %3035 = vst [vmem:[#allocation8 + $0x1a8] sm:$0xff] %v2293
    %3036 = vst [vmem:[#allocation8 + $0x1b0] sm:$0xff] %v1511
    %3037 = vst [vmem:[#allocation8 + $0x1b8] sm:$0xff] %v2296
    %3038 = vst [vmem:[#allocation8 + $0x1c0] sm:$0xff] %v1514
    %3039 = vst [vmem:[#allocation8 + $0x1c8] sm:$0xff] %v2299
    %3040 = vst [vmem:[#allocation8 + $0x1d0] sm:$0xff] %v1517
    %3041 = vst [vmem:[#allocation8 + $0x1d8] sm:$0xff] %v2302
    %3042 = vst [vmem:[#allocation8 + $0x1e0] sm:$0xff] %v1520
    %3043 = vst [vmem:[#allocation8 + $0x1e8] sm:$0xff] %v2305
    %3044 = vst [vmem:[#allocation8 + $0x1f0] sm:$0xff] %v1523
    %3045 = vst [vmem:[#allocation8 + $0x1f8] sm:$0xff] %v2308
    %3046 = vst [vmem:[#allocation8 + $0x200] sm:$0xff] %v1526
    %3047 = vst [vmem:[#allocation8 + $0x208] sm:$0xff] %v2311
    %3048 = vst [vmem:[#allocation8 + $0x210] sm:$0xff] %v1529
    %3049 = vst [vmem:[#allocation8 + $0x218] sm:$0xff] %v2314
    %3050 = vst [vmem:[#allocation8 + $0x220] sm:$0xff] %v1532
    %3051 = vst [vmem:[#allocation8 + $0x228] sm:$0xff] %v2317
    %3052 = vst [vmem:[#allocation8 + $0x230] sm:$0xff] %v1535
    %3053 = vst [vmem:[#allocation8 + $0x238] sm:$0xff] %v2320
    %3054 = vst [vmem:[#allocation8 + $0x240] sm:$0xff] %v1538
    %3055 = vst [vmem:[#allocation8 + $0x248] sm:$0xff] %v2323
    %3056 = vst [vmem:[#allocation8 + $0x250] sm:$0xff] %v1541
    %3057 = vst [vmem:[#allocation8 + $0x258] sm:$0xff] %v2326
    %3058 = vst [vmem:[#allocation8 + $0x260] sm:$0xff] %v1544
    %3059 = vst [vmem:[#allocation8 + $0x268] sm:$0xff] %v2329
    %3060 = vst [vmem:[#allocation8 + $0x270] sm:$0xff] %v1547
    %3061 = vst [vmem:[#allocation8 + $0x278] sm:$0xff] %v2332
    %3062 = vst [vmem:[#allocation8 + $0x280] sm:$0xff] %v1550
    %3063 = vst [vmem:[#allocation8 + $0x288] sm:$0xff] %v2335
    %3064 = vst [vmem:[#allocation8 + $0x290] sm:$0xff] %v1553
    %3065 = vst [vmem:[#allocation8 + $0x298] sm:$0xff] %v2338
    %3066 = vst [vmem:[#allocation8 + $0x2a0] sm:$0xff] %v1556
    %3067 = vst [vmem:[#allocation8 + $0x2a8] sm:$0xff] %v2341
    %3068 = vst [vmem:[#allocation8 + $0x2b0] sm:$0xff] %v1559
    %3069 = vst [vmem:[#allocation8 + $0x2b8] sm:$0xff] %v2344
    %3070 = vst [vmem:[#allocation8 + $0x2c0] sm:$0xff] %v1562
    %3071 = vst [vmem:[#allocation8 + $0x2c8] sm:$0xff] %v2347
    %3072 = vst [vmem:[#allocation8 + $0x2d0] sm:$0xff] %v1565
    %3073 = vst [vmem:[#allocation8 + $0x2d8] sm:$0xff] %v2350
    %3074 = vst [vmem:[#allocation8 + $0x2e0] sm:$0xff] %v1568
    %3075 = vst [vmem:[#allocation8 + $0x2e8] sm:$0xff] %v2353
    %3076 = vst [vmem:[#allocation8 + $0x2f0] sm:$0xff] %v1571
    %3077 = vst [vmem:[#allocation8 + $0x2f8] sm:$0xff] %v2356
    %3078 = vst [vmem:[#allocation8 + $0x300] sm:$0xff] %v1574
    %3079 = vst [vmem:[#allocation8 + $0x308] sm:$0xff] %v2359
    %3080 = vst [vmem:[#allocation8 + $0x310] sm:$0xff] %v1577
    %3081 = vst [vmem:[#allocation8 + $0x318] sm:$0xff] %v2362
    %3082 = vst [vmem:[#allocation8 + $0x320] sm:$0xff] %v1580
    %3083 = vst [vmem:[#allocation8 + $0x328] sm:$0xff] %v2365
    %3084 = vst [vmem:[#allocation8 + $0x330] sm:$0xff] %v1583
    %3085 = vst [vmem:[#allocation8 + $0x338] sm:$0xff] %v2368
    %3086 = vst [vmem:[#allocation8 + $0x340] sm:$0xff] %v1586
    %3087 = vst [vmem:[#allocation8 + $0x348] sm:$0xff] %v2371
    %3088 = vst [vmem:[#allocation8 + $0x350] sm:$0xff] %v1589
    %3089 = vst [vmem:[#allocation8 + $0x358] sm:$0xff] %v2374
    %3090 = vst [vmem:[#allocation8 + $0x360] sm:$0xff] %v1592
    %3091 = vst [vmem:[#allocation8 + $0x368] sm:$0xff] %v2377
    %3092 = vst [vmem:[#allocation8 + $0x370] sm:$0xff] %v1595
    %3093 = vst [vmem:[#allocation8 + $0x378] sm:$0xff] %v2380
    %3094 = vst [vmem:[#allocation8 + $0x380] sm:$0xff] %v1598
    %3095 = vst [vmem:[#allocation8 + $0x388] sm:$0xff] %v2383
    %3096 = vst [vmem:[#allocation8 + $0x390] sm:$0xff] %v1601
    %3097 = vst [vmem:[#allocation8 + $0x398] sm:$0xff] %v2386
    %3098 = vst [vmem:[#allocation8 + $0x3a0] sm:$0xff] %v1604
    %3099 = vst [vmem:[#allocation8 + $0x3a8] sm:$0xff] %v2389
    %3100 = vst [vmem:[#allocation8 + $0x3b0] sm:$0xff] %v1607
    %3101 = vst [vmem:[#allocation8 + $0x3b8] sm:$0xff] %v2392
    %3102 = vst [vmem:[#allocation8 + $0x3c0] sm:$0xff] %v1610
    %3103 = vst [vmem:[#allocation8 + $0x3c8] sm:$0xff] %v2395
    %3104 = vst [vmem:[#allocation8 + $0x3d0] sm:$0xff] %v1613
    %3105 = vst [vmem:[#allocation8 + $0x3d8] sm:$0xff] %v2398
    %3106 = vst [vmem:[#allocation8 + $0x3e0] sm:$0xff] %v1616
    %3107 = vst [vmem:[#allocation8 + $0x3e8] sm:$0xff] %v2401
    %3108 = vst [vmem:[#allocation8 + $0x3f0] sm:$0xff] %v1619
    %3109 = vst [vmem:[#allocation8 + $0x3f8] sm:$0xff] %v2404
    %3110 = vst [vmem:[#allocation8 + $0x400] sm:$0xff] %v1622
    %3111 = vst [vmem:[#allocation8 + $0x408] sm:$0xff] %v2407
    %3112 = vst [vmem:[#allocation8 + $0x410] sm:$0xff] %v1625
    %3113 = vst [vmem:[#allocation8 + $0x418] sm:$0xff] %v2410
    %3114 = vst [vmem:[#allocation8 + $0x420] sm:$0xff] %v1628
    %3115 = vst [vmem:[#allocation8 + $0x428] sm:$0xff] %v2413
    %3116 = vst [vmem:[#allocation8 + $0x430] sm:$0xff] %v1631
    %3117 = vst [vmem:[#allocation8 + $0x438] sm:$0xff] %v2416
    %3118 = vst [vmem:[#allocation8 + $0x440] sm:$0xff] %v1634
    %3119 = vst [vmem:[#allocation8 + $0x448] sm:$0xff] %v2419
    %3120 = vst [vmem:[#allocation8 + $0x450] sm:$0xff] %v1637
    %3121 = vst [vmem:[#allocation8 + $0x458] sm:$0xff] %v2422
    %3122 = vst [vmem:[#allocation8 + $0x460] sm:$0xff] %v1640
    %3123 = vst [vmem:[#allocation8 + $0x468] sm:$0xff] %v2425
    %3124 = vst [vmem:[#allocation8 + $0x470] sm:$0xff] %v1643
    %3125 = vst [vmem:[#allocation8 + $0x478] sm:$0xff] %v2428
    %3126 = vst [vmem:[#allocation8 + $0x480] sm:$0xff] %v1646
    %3127 = vst [vmem:[#allocation8 + $0x488] sm:$0xff] %v2431
    %3128 = vst [vmem:[#allocation8 + $0x490] sm:$0xff] %v1649
    %3129 = vst [vmem:[#allocation8 + $0x498] sm:$0xff] %v2434
    %3130 = vst [vmem:[#allocation8 + $0x4a0] sm:$0xff] %v1652
    %3131 = vst [vmem:[#allocation8 + $0x4a8] sm:$0xff] %v2437
    %3132 = vst [vmem:[#allocation8 + $0x4b0] sm:$0xff] %v1655
    %3133 = vst [vmem:[#allocation8 + $0x4b8] sm:$0xff] %v2440
    %3134 = vst [vmem:[#allocation8 + $0x4c0] sm:$0xff] %v1658
    %3135 = vst [vmem:[#allocation8 + $0x4c8] sm:$0xff] %v2443
    %3136 = vst [vmem:[#allocation8 + $0x4d0] sm:$0xff] %v1661
    %3137 = vst [vmem:[#allocation8 + $0x4d8] sm:$0xff] %v2446
    %3138 = vst [vmem:[#allocation8 + $0x4e0] sm:$0xff] %v1664
    %3139 = vst [vmem:[#allocation8 + $0x4e8] sm:$0xff] %v2449
    %3140 = vst [vmem:[#allocation8 + $0x4f0] sm:$0xff] %v1667
    %3141 = vst [vmem:[#allocation8 + $0x4f8] sm:$0xff] %v2452
    %3142 = vst [vmem:[#allocation8 + $0x500] sm:$0xff] %v1670
    %3143 = vst [vmem:[#allocation8 + $0x508] sm:$0xff] %v2455
    %3144 = vst [vmem:[#allocation8 + $0x510] sm:$0xff] %v1673
    %3145 = vst [vmem:[#allocation8 + $0x518] sm:$0xff] %v2458
    %3146 = vst [vmem:[#allocation8 + $0x520] sm:$0xff] %v1676
    %3147 = vst [vmem:[#allocation8 + $0x528] sm:$0xff] %v2461
    %3148 = vst [vmem:[#allocation8 + $0x530] sm:$0xff] %v1679
    %3149 = vst [vmem:[#allocation8 + $0x538] sm:$0xff] %v2464
    %3150 = vst [vmem:[#allocation8 + $0x540] sm:$0xff] %v1682
    %3151 = vst [vmem:[#allocation8 + $0x548] sm:$0xff] %v2467
    %3152 = vst [vmem:[#allocation8 + $0x550] sm:$0xff] %v1685
    %3153 = vst [vmem:[#allocation8 + $0x558] sm:$0xff] %v2470
    %3154 = vst [vmem:[#allocation8 + $0x560] sm:$0xff] %v1688
    %3155 = vst [vmem:[#allocation8 + $0x568] sm:$0xff] %v2473
    %3156 = vst [vmem:[#allocation8 + $0x570] sm:$0xff] %v1691
    %3157 = vst [vmem:[#allocation8 + $0x578] sm:$0xff] %v2476
    %3158 = vst [vmem:[#allocation8 + $0x580] sm:$0xff] %v1694
    %3159 = vst [vmem:[#allocation8 + $0x588] sm:$0xff] %v2479
    %3160 = vst [vmem:[#allocation8 + $0x590] sm:$0xff] %v1697
    %3161 = vst [vmem:[#allocation8 + $0x598] sm:$0xff] %v2482
    %3162 = vst [vmem:[#allocation8 + $0x5a0] sm:$0xff] %v1700
    %3163 = vst [vmem:[#allocation8 + $0x5a8] sm:$0xff] %v2485
    %3164 = vst [vmem:[#allocation8 + $0x5b0] sm:$0xff] %v1703
    %3165 = vst [vmem:[#allocation8 + $0x5b8] sm:$0xff] %v2488
    %3166 = vst [vmem:[#allocation8 + $0x5c0] sm:$0xff] %v1706
    %3167 = vst [vmem:[#allocation8 + $0x5c8] sm:$0xff] %v2491
    %3168 = vst [vmem:[#allocation8 + $0x5d0] sm:$0xff] %v1709
    %3169 = vst [vmem:[#allocation8 + $0x5d8] sm:$0xff] %v2494
    %3170 = vst [vmem:[#allocation8 + $0x5e0] sm:$0xff] %v1712
    %3171 = vst [vmem:[#allocation8 + $0x5e8] sm:$0xff] %v2497
    %3172 = vst [vmem:[#allocation8 + $0x5f0] sm:$0xff] %v1715
    %3173 = vst [vmem:[#allocation8 + $0x5f8] sm:$0xff] %v2500
    %3174 = vst [vmem:[#allocation8 + $0x600] sm:$0xff] %v1718
    %3175 = vst [vmem:[#allocation8 + $0x608] sm:$0xff] %v2503
    %3176 = vst [vmem:[#allocation8 + $0x610] sm:$0xff] %v1721
    %3177 = vst [vmem:[#allocation8 + $0x618] sm:$0xff] %v2506
    %3178 = vst [vmem:[#allocation8 + $0x620] sm:$0xff] %v1724
    %3179 = vst [vmem:[#allocation8 + $0x628] sm:$0xff] %v2509
    %3180 = vst [vmem:[#allocation8 + $0x630] sm:$0xff] %v1727
    %3181 = vst [vmem:[#allocation8 + $0x638] sm:$0xff] %v2512
    %3182 = vst [vmem:[#allocation8 + $0x640] sm:$0xff] %v1730
    %3183 = vst [vmem:[#allocation8 + $0x648] sm:$0xff] %v2515
    %3184 = vst [vmem:[#allocation8 + $0x650] sm:$0xff] %v1733
    %3185 = vst [vmem:[#allocation8 + $0x658] sm:$0xff] %v2518
    %3186 = vst [vmem:[#allocation8 + $0x660] sm:$0xff] %v1736
    %3187 = vst [vmem:[#allocation8 + $0x668] sm:$0xff] %v2521
    %3188 = vst [vmem:[#allocation8 + $0x670] sm:$0xff] %v1739
    %3189 = vst [vmem:[#allocation8 + $0x678] sm:$0xff] %v2524
    %3190 = vst [vmem:[#allocation8 + $0x680] sm:$0xff] %v1742
    %3191 = vst [vmem:[#allocation8 + $0x688] sm:$0xff] %v2527
    %3192 = vst [vmem:[#allocation8 + $0x690] sm:$0xff] %v1745
    %3193 = vst [vmem:[#allocation8 + $0x698] sm:$0xff] %v2530
    %3194 = vst [vmem:[#allocation8 + $0x6a0] sm:$0xff] %v1748
    %3195 = vst [vmem:[#allocation8 + $0x6a8] sm:$0xff] %v2533
    %3196 = vst [vmem:[#allocation8 + $0x6b0] sm:$0xff] %v1751
    %3197 = vst [vmem:[#allocation8 + $0x6b8] sm:$0xff] %v2536
    %3198 = vst [vmem:[#allocation8 + $0x6c0] sm:$0xff] %v1754
    %3199 = vst [vmem:[#allocation8 + $0x6c8] sm:$0xff] %v2539
    %3200 = vst [vmem:[#allocation8 + $0x6d0] sm:$0xff] %v1757
    %3201 = vst [vmem:[#allocation8 + $0x6d8] sm:$0xff] %v2542
    %3202 = vst [vmem:[#allocation8 + $0x6e0] sm:$0xff] %v1760
    %3203 = vst [vmem:[#allocation8 + $0x6e8] sm:$0xff] %v2545
    %3204 = vst [vmem:[#allocation8 + $0x6f0] sm:$0xff] %v1763
    %3205 = vst [vmem:[#allocation8 + $0x6f8] sm:$0xff] %v2548
    %3206 = vst [vmem:[#allocation8 + $0x700] sm:$0xff] %v1766
    %3207 = vst [vmem:[#allocation8 + $0x708] sm:$0xff] %v2551
    %3208 = vst [vmem:[#allocation8 + $0x710] sm:$0xff] %v1769
    %3209 = vst [vmem:[#allocation8 + $0x718] sm:$0xff] %v2554
    %3210 = vst [vmem:[#allocation8 + $0x720] sm:$0xff] %v1772
    %3211 = vst [vmem:[#allocation8 + $0x728] sm:$0xff] %v2557
    %3212 = vst [vmem:[#allocation8 + $0x730] sm:$0xff] %v1775
    %3213 = vst [vmem:[#allocation8 + $0x738] sm:$0xff] %v2560
    %3214 = vst [vmem:[#allocation8 + $0x740] sm:$0xff] %v1778
    %3215 = vst [vmem:[#allocation8 + $0x748] sm:$0xff] %v2563
    %3216 = vst [vmem:[#allocation8 + $0x750] sm:$0xff] %v1781
    %3217 = vst [vmem:[#allocation8 + $0x758] sm:$0xff] %v2566
    %3218 = vst [vmem:[#allocation8 + $0x760] sm:$0xff] %v1784
    %3219 = vst [vmem:[#allocation8 + $0x768] sm:$0xff] %v2569
    %3220 = vst [vmem:[#allocation8 + $0x770] sm:$0xff] %v1787
    %3221 = vst [vmem:[#allocation8 + $0x778] sm:$0xff] %v2572
    %3222 = vst [vmem:[#allocation8 + $0x780] sm:$0xff] %v1790
    %3223 = vst [vmem:[#allocation8 + $0x788] sm:$0xff] %v2575
    %3224 = vst [vmem:[#allocation8 + $0x790] sm:$0xff] %v1793
    %3225 = vst [vmem:[#allocation8 + $0x798] sm:$0xff] %v2578
    %3226 = vst [vmem:[#allocation8 + $0x7a0] sm:$0xff] %v1796
    %3227 = vst [vmem:[#allocation8 + $0x7a8] sm:$0xff] %v2581
    %3228 = vst [vmem:[#allocation8 + $0x7b0] sm:$0xff] %v1799
    %3229 = vst [vmem:[#allocation8 + $0x7b8] sm:$0xff] %v2584
    %3230 = vst [vmem:[#allocation8 + $0x7c0] sm:$0xff] %v1802
    %3231 = vst [vmem:[#allocation8 + $0x7c8] sm:$0xff] %v2587
    %3232 = vst [vmem:[#allocation8 + $0x7d0] sm:$0xff] %v1805
    %3233 = vst [vmem:[#allocation8 + $0x7d8] sm:$0xff] %v2590
    %3234 = vst [vmem:[#allocation8 + $0x7e0] sm:$0xff] %v1808
    %3235 = vst [vmem:[#allocation8 + $0x7e8] sm:$0xff] %v2593
    %3236 = vst [vmem:[#allocation8 + $0x7f0] sm:$0xff] %v1811
    %3237 = vst [vmem:[#allocation8 + $0x7f8] sm:$0xff] %v2596
    %3238 = vst [vmem:[#allocation8 + $0x800] sm:$0xff] %v1814
    %3239 = vst [vmem:[#allocation8 + $0x808] sm:$0xff] %v2599
    %3240 = vst [vmem:[#allocation8 + $0x810] sm:$0xff] %v1817
    %3241 = vst [vmem:[#allocation8 + $0x818] sm:$0xff] %v2602
    %3242 = vst [vmem:[#allocation8 + $0x820] sm:$0xff] %v1820
    %3243 = vst [vmem:[#allocation8 + $0x828] sm:$0xff] %v2605
    %3244 = vst [vmem:[#allocation8 + $0x830] sm:$0xff] %v1823
    %3245 = vst [vmem:[#allocation8 + $0x838] sm:$0xff] %v2608
    %3246 = vst [vmem:[#allocation8 + $0x840] sm:$0xff] %v1826
    %3247 = vst [vmem:[#allocation8 + $0x848] sm:$0xff] %v2611
    %3248 = vst [vmem:[#allocation8 + $0x850] sm:$0xff] %v1829
    %3249 = vst [vmem:[#allocation8 + $0x858] sm:$0xff] %v2614
    %3250 = vst [vmem:[#allocation8 + $0x860] sm:$0xff] %v1832
    %3251 = vst [vmem:[#allocation8 + $0x868] sm:$0xff] %v2617
    %3252 = vst [vmem:[#allocation8 + $0x870] sm:$0xff] %v1835
    %3253 = vst [vmem:[#allocation8 + $0x878] sm:$0xff] %v2620
    %3254 = vst [vmem:[#allocation8 + $0x880] sm:$0xff] %v1838
    %3255 = vst [vmem:[#allocation8 + $0x888] sm:$0xff] %v2623
    %3256 = vst [vmem:[#allocation8 + $0x890] sm:$0xff] %v1841
    %3257 = vst [vmem:[#allocation8 + $0x898] sm:$0xff] %v2626
    %3258 = vst [vmem:[#allocation8 + $0x8a0] sm:$0xff] %v1844
    %3259 = vst [vmem:[#allocation8 + $0x8a8] sm:$0xff] %v2629
    %3260 = vst [vmem:[#allocation8 + $0x8b0] sm:$0xff] %v1847
    %3261 = vst [vmem:[#allocation8 + $0x8b8] sm:$0xff] %v2632
    %3262 = vst [vmem:[#allocation8 + $0x8c0] sm:$0xff] %v1850
    %3263 = vst [vmem:[#allocation8 + $0x8c8] sm:$0xff] %v2635
    %3264 = vst [vmem:[#allocation8 + $0x8d0] sm:$0xff] %v1853
    %3265 = vst [vmem:[#allocation8 + $0x8d8] sm:$0xff] %v2638
    %3266 = vst [vmem:[#allocation8 + $0x8e0] sm:$0xff] %v1856
    %3267 = vst [vmem:[#allocation8 + $0x8e8] sm:$0xff] %v2641
    %3268 = vst [vmem:[#allocation8 + $0x8f0] sm:$0xff] %v1859
    %3269 = vst [vmem:[#allocation8 + $0x8f8] sm:$0xff] %v2644
    %3270 = vst [vmem:[#allocation8 + $0x900] sm:$0xff] %v1862
    %3271 = vst [vmem:[#allocation8 + $0x908] sm:$0xff] %v2647
    %3272 = vst [vmem:[#allocation8 + $0x910] sm:$0xff] %v1865
    %3273 = vst [vmem:[#allocation8 + $0x918] sm:$0xff] %v2650
    %3274 = vst [vmem:[#allocation8 + $0x920] sm:$0xff] %v1868
    %3275 = vst [vmem:[#allocation8 + $0x928] sm:$0xff] %v2653
    %3276 = vst [vmem:[#allocation8 + $0x930] sm:$0xff] %v1871
    %3277 = vst [vmem:[#allocation8 + $0x938] sm:$0xff] %v2656
    %3278 = vst [vmem:[#allocation8 + $0x940] sm:$0xff] %v1874
    %3279 = vst [vmem:[#allocation8 + $0x948] sm:$0xff] %v2659
    %3280 = vst [vmem:[#allocation8 + $0x950] sm:$0xff] %v1877
    %3281 = vst [vmem:[#allocation8 + $0x958] sm:$0xff] %v2662
    %3282 = vst [vmem:[#allocation8 + $0x960] sm:$0xff] %v1880
    %3283 = vst [vmem:[#allocation8 + $0x968] sm:$0xff] %v2665
    %3284 = vst [vmem:[#allocation8 + $0x970] sm:$0xff] %v1883
    %3285 = vst [vmem:[#allocation8 + $0x978] sm:$0xff] %v2668
    %3286 = vst [vmem:[#allocation8 + $0x980] sm:$0xff] %v1886
    %3287 = vst [vmem:[#allocation8 + $0x988] sm:$0xff] %v2671
    %3288 = vst [vmem:[#allocation8 + $0x990] sm:$0xff] %v1889
    %3289 = vst [vmem:[#allocation8 + $0x998] sm:$0xff] %v2674
    %3290 = vst [vmem:[#allocation8 + $0x9a0] sm:$0xff] %v1892
    %3291 = vst [vmem:[#allocation8 + $0x9a8] sm:$0xff] %v2677
    %3292 = vst [vmem:[#allocation8 + $0x9b0] sm:$0xff] %v1895
    %3293 = vst [vmem:[#allocation8 + $0x9b8] sm:$0xff] %v2680
    %3294 = vst [vmem:[#allocation8 + $0x9c0] sm:$0xff] %v1898
    %3295 = vst [vmem:[#allocation8 + $0x9c8] sm:$0xff] %v2683
    %3296 = vst [vmem:[#allocation8 + $0x9d0] sm:$0xff] %v1901
    %3297 = vst [vmem:[#allocation8 + $0x9d8] sm:$0xff] %v2686
    %3298 = vst [vmem:[#allocation8 + $0x9e0] sm:$0xff] %v1904
    %3299 = vst [vmem:[#allocation8 + $0x9e8] sm:$0xff] %v2689
    %3300 = vst [vmem:[#allocation8 + $0x9f0] sm:$0xff] %v1907
    %3301 = vst [vmem:[#allocation8 + $0x9f8] sm:$0xff] %v2692
    %3302 = vst [vmem:[#allocation8 + $0xa00] sm:$0xff] %v1910
    %3303 = vst [vmem:[#allocation8 + $0xa08] sm:$0xff] %v2695
    %3304 = vst [vmem:[#allocation8 + $0xa10] sm:$0xff] %v1913
    %3305 = vst [vmem:[#allocation8 + $0xa18] sm:$0xff] %v2698
    %3306 = vst [vmem:[#allocation8 + $0xa20] sm:$0xff] %v1916
    %3307 = vst [vmem:[#allocation8 + $0xa28] sm:$0xff] %v2701
    %3308 = vst [vmem:[#allocation8 + $0xa30] sm:$0xff] %v1919
    %3309 = vst [vmem:[#allocation8 + $0xa38] sm:$0xff] %v2704
    %3310 = vst [vmem:[#allocation8 + $0xa40] sm:$0xff] %v1922
    %3311 = vst [vmem:[#allocation8 + $0xa48] sm:$0xff] %v2707
    %3312 = vst [vmem:[#allocation8 + $0xa50] sm:$0xff] %v1925
    %3313 = vst [vmem:[#allocation8 + $0xa58] sm:$0xff] %v2710
    %3314 = vst [vmem:[#allocation8 + $0xa60] sm:$0xff] %v1928
    %3315 = vst [vmem:[#allocation8 + $0xa68] sm:$0xff] %v2713
    %3316 = vst [vmem:[#allocation8 + $0xa70] sm:$0xff] %v1931
    %3317 = vst [vmem:[#allocation8 + $0xa78] sm:$0xff] %v2716
    %3318 = vst [vmem:[#allocation8 + $0xa80] sm:$0xff] %v1934
    %3319 = vst [vmem:[#allocation8 + $0xa88] sm:$0xff] %v2719
    %3320 = vst [vmem:[#allocation8 + $0xa90] sm:$0xff] %v1937
    %3321 = vst [vmem:[#allocation8 + $0xa98] sm:$0xff] %v2722
    %3322 = vst [vmem:[#allocation8 + $0xaa0] sm:$0xff] %v1940
    %3323 = vst [vmem:[#allocation8 + $0xaa8] sm:$0xff] %v2725
    %3324 = vst [vmem:[#allocation8 + $0xab0] sm:$0xff] %v1943
    %3325 = vst [vmem:[#allocation8 + $0xab8] sm:$0xff] %v2728
    %3326 = vst [vmem:[#allocation8 + $0xac0] sm:$0xff] %v1946
    %3327 = vst [vmem:[#allocation8 + $0xac8] sm:$0xff] %v2731
    %3328 = vst [vmem:[#allocation8 + $0xad0] sm:$0xff] %v1949
    %3329 = vst [vmem:[#allocation8 + $0xad8] sm:$0xff] %v2734
    %3330 = vst [vmem:[#allocation8 + $0xae0] sm:$0xff] %v1952
    %3331 = vst [vmem:[#allocation8 + $0xae8] sm:$0xff] %v2737
    %3332 = vst [vmem:[#allocation8 + $0xaf0] sm:$0xff] %v1955
    %3333 = vst [vmem:[#allocation8 + $0xaf8] sm:$0xff] %v2740
    %3334 = vst [vmem:[#allocation8 + $0xb00] sm:$0xff] %v1958
    %3335 = vst [vmem:[#allocation8 + $0xb08] sm:$0xff] %v2743
    %3336 = vst [vmem:[#allocation8 + $0xb10] sm:$0xff] %v1961
    %3337 = vst [vmem:[#allocation8 + $0xb18] sm:$0xff] %v2746
    %3338 = vst [vmem:[#allocation8 + $0xb20] sm:$0xff] %v1964
    %3339 = vst [vmem:[#allocation8 + $0xb28] sm:$0xff] %v2749
    %3340 = vst [vmem:[#allocation8 + $0xb30] sm:$0xff] %v1967
    %3341 = vst [vmem:[#allocation8 + $0xb38] sm:$0xff] %v2752
    %3342 = vst [vmem:[#allocation8 + $0xb40] sm:$0xff] %v1970
    %3343 = vst [vmem:[#allocation8 + $0xb48] sm:$0xff] %v2755
    %3344 = vst [vmem:[#allocation8 + $0xb50] sm:$0xff] %v1973
    %3345 = vst [vmem:[#allocation8 + $0xb58] sm:$0xff] %v2758
    %3346 = vst [vmem:[#allocation8 + $0xb60] sm:$0xff] %v1976
    %3347 = vst [vmem:[#allocation8 + $0xb68] sm:$0xff] %v2761
    %3348 = vst [vmem:[#allocation8 + $0xb70] sm:$0xff] %v1979
    %3349 = vst [vmem:[#allocation8 + $0xb78] sm:$0xff] %v2764
    %3350 = vst [vmem:[#allocation8 + $0xb80] sm:$0xff] %v1982
    %3351 = vst [vmem:[#allocation8 + $0xb88] sm:$0xff] %v2767
    %3352 = vst [vmem:[#allocation8 + $0xb90] sm:$0xff] %v1985
    %3353 = vst [vmem:[#allocation8 + $0xb98] sm:$0xff] %v2770
    %3354 = vst [vmem:[#allocation8 + $0xba0] sm:$0xff] %v1988
    %3355 = vst [vmem:[#allocation8 + $0xba8] sm:$0xff] %v2773
    %3356 = vst [vmem:[#allocation8 + $0xbb0] sm:$0xff] %v1991
    %3357 = vst [vmem:[#allocation8 + $0xbb8] sm:$0xff] %v2776
    %3358 = vst [vmem:[#allocation8 + $0xbc0] sm:$0xff] %v1994
    %3359 = vst [vmem:[#allocation8 + $0xbc8] sm:$0xff] %v2779
    %3360 = vst [vmem:[#allocation8 + $0xbd0] sm:$0xff] %v1997
    %3361 = vst [vmem:[#allocation8 + $0xbd8] sm:$0xff] %v2782
    %3362 = vst [vmem:[#allocation8 + $0xbe0] sm:$0xff] %v2000
    %3363 = vst [vmem:[#allocation8 + $0xbe8] sm:$0xff] %v2785
    %3364 = vst [vmem:[#allocation8 + $0xbf0] sm:$0xff] %v2003
    %3365 = vst [vmem:[#allocation8 + $0xbf8] sm:$0xff] %v2788
    %3366 = vst [vmem:[#allocation8 + $0xc00] sm:$0xff] %v2006
    %3367 = vst [vmem:[#allocation8 + $0xc08] sm:$0xff] %v2791
    %3368 = vst [vmem:[#allocation8 + $0xc10] sm:$0xff] %v2009
    %3369 = vst [vmem:[#allocation8 + $0xc18] sm:$0xff] %v2794
    %3370 = vst [vmem:[#allocation8 + $0xc20] sm:$0xff] %v2012
    %3371 = vst [vmem:[#allocation8 + $0xc28] sm:$0xff] %v2797
    %3372 = vst [vmem:[#allocation8 + $0xc30] sm:$0xff] %v2015
    %3373 = vst [vmem:[#allocation8 + $0xc38] sm:$0xff] %v2800
    %3374 = vst [vmem:[#allocation8 + $0xc40] sm:$0xff] %v2018
    %3375 = vst [vmem:[#allocation8 + $0xc48] sm:$0xff] %v2803
    %3376 = vst [vmem:[#allocation8 + $0xc50] sm:$0xff] %v2021
    %3377 = vst [vmem:[#allocation8 + $0xc58] sm:$0xff] %v2806
    %3378 = vst [vmem:[#allocation8 + $0xc60] sm:$0xff] %v2024
    %3379 = vst [vmem:[#allocation8 + $0xc68] sm:$0xff] %v2809
    %3380 = vst [vmem:[#allocation8 + $0xc70] sm:$0xff] %v2027
    %3381 = vst [vmem:[#allocation8 + $0xc78] sm:$0xff] %v2812
    %3382 = vst [vmem:[#allocation8 + $0xc80] sm:$0xff] %v2030
    %3383 = vst [vmem:[#allocation8 + $0xc88] sm:$0xff] %v2815
    %3384 = vst [vmem:[#allocation8 + $0xc90] sm:$0xff] %v2033
    %3385 = vst [vmem:[#allocation8 + $0xc98] sm:$0xff] %v2818
    %3386 = vst [vmem:[#allocation8 + $0xca0] sm:$0xff] %v2036
    %3387 = vst [vmem:[#allocation8 + $0xca8] sm:$0xff] %v2821
    %3388 = vst [vmem:[#allocation8 + $0xcb0] sm:$0xff] %v2039
    %3389 = vst [vmem:[#allocation8 + $0xcb8] sm:$0xff] %v2824
    %3390 = vst [vmem:[#allocation8 + $0xcc0] sm:$0xff] %v2042
    %3391 = vst [vmem:[#allocation8 + $0xcc8] sm:$0xff] %v2827
    %3392 = vst [vmem:[#allocation8 + $0xcd0] sm:$0xff] %v2045
    %3393 = vst [vmem:[#allocation8 + $0xcd8] sm:$0xff] %v2830
    %3394 = vst [vmem:[#allocation8 + $0xce0] sm:$0xff] %v2048
    %3395 = vst [vmem:[#allocation8 + $0xce8] sm:$0xff] %v2833
    %3396 = vst [vmem:[#allocation8 + $0xcf0] sm:$0xff] %v2051
    %3397 = vst [vmem:[#allocation8 + $0xcf8] sm:$0xff] %v2836
    %3398 = vst [vmem:[#allocation8 + $0xd00] sm:$0xff] %v2054
    %3399 = vst [vmem:[#allocation8 + $0xd08] sm:$0xff] %v2839
    %3400 = vst [vmem:[#allocation8 + $0xd10] sm:$0xff] %v2057
    %3401 = vst [vmem:[#allocation8 + $0xd18] sm:$0xff] %v2842
    %3402 = vst [vmem:[#allocation8 + $0xd20] sm:$0xff] %v2060
    %3403 = vst [vmem:[#allocation8 + $0xd28] sm:$0xff] %v2845
    %3404 = vst [vmem:[#allocation8 + $0xd30] sm:$0xff] %v2063
    %3405 = vst [vmem:[#allocation8 + $0xd38] sm:$0xff] %v2848
    %3406 = vst [vmem:[#allocation8 + $0xd40] sm:$0xff] %v2066
    %3407 = vst [vmem:[#allocation8 + $0xd48] sm:$0xff] %v2851
    %3408 = vst [vmem:[#allocation8 + $0xd50] sm:$0xff] %v2069
    %3409 = vst [vmem:[#allocation8 + $0xd58] sm:$0xff] %v2854
    %3410 = vst [vmem:[#allocation8 + $0xd60] sm:$0xff] %v2072
    %3411 = vst [vmem:[#allocation8 + $0xd68] sm:$0xff] %v2857
    %3412 = vst [vmem:[#allocation8 + $0xd70] sm:$0xff] %v2075
    %3413 = vst [vmem:[#allocation8 + $0xd78] sm:$0xff] %v2860
    %3414 = vst [vmem:[#allocation8 + $0xd80] sm:$0xff] %v2078
    %3415 = vst [vmem:[#allocation8 + $0xd88] sm:$0xff] %v2863
    %3416 = vst [vmem:[#allocation8 + $0xd90] sm:$0xff] %v2081
    %3417 = vst [vmem:[#allocation8 + $0xd98] sm:$0xff] %v2866
    %3418 = vst [vmem:[#allocation8 + $0xda0] sm:$0xff] %v2084
    %3419 = vst [vmem:[#allocation8 + $0xda8] sm:$0xff] %v2869
    %3420 = vst [vmem:[#allocation8 + $0xdb0] sm:$0xff] %v2087
    %3421 = vst [vmem:[#allocation8 + $0xdb8] sm:$0xff] %v2872
    %3422 = vst [vmem:[#allocation8 + $0xdc0] sm:$0xff] %v2090
    %3423 = vst [vmem:[#allocation8 + $0xdc8] sm:$0xff] %v2875
    %3424 = vst [vmem:[#allocation8 + $0xdd0] sm:$0xff] %v2093
    %3425 = vst [vmem:[#allocation8 + $0xdd8] sm:$0xff] %v2878
    %3426 = vst [vmem:[#allocation8 + $0xde0] sm:$0xff] %v2096
    %3427 = vst [vmem:[#allocation8 + $0xde8] sm:$0xff] %v2881
    %3428 = vst [vmem:[#allocation8 + $0xdf0] sm:$0xff] %v2099
    %3429 = vst [vmem:[#allocation8 + $0xdf8] sm:$0xff] %v2884
    %3430 = vst [vmem:[#allocation8 + $0xe00] sm:$0xff] %v2102
    %3431 = vst [vmem:[#allocation8 + $0xe08] sm:$0xff] %v2887
    %3432 = vst [vmem:[#allocation8 + $0xe10] sm:$0xff] %v2105
    %3433 = vst [vmem:[#allocation8 + $0xe18] sm:$0xff] %v2890
    %3434 = vst [vmem:[#allocation8 + $0xe20] sm:$0xff] %v2108
    %3435 = vst [vmem:[#allocation8 + $0xe28] sm:$0xff] %v2893
    %3436 = vst [vmem:[#allocation8 + $0xe30] sm:$0xff] %v2111
    %3437 = vst [vmem:[#allocation8 + $0xe38] sm:$0xff] %v2896
    %3438 = vst [vmem:[#allocation8 + $0xe40] sm:$0xff] %v2114
    %3439 = vst [vmem:[#allocation8 + $0xe48] sm:$0xff] %v2899
    %3440 = vst [vmem:[#allocation8 + $0xe50] sm:$0xff] %v2117
    %3441 = vst [vmem:[#allocation8 + $0xe58] sm:$0xff] %v2902
    %3442 = vst [vmem:[#allocation8 + $0xe60] sm:$0xff] %v2120
    %3443 = vst [vmem:[#allocation8 + $0xe68] sm:$0xff] %v2905
    %3444 = vst [vmem:[#allocation8 + $0xe70] sm:$0xff] %v2123
    %3445 = vst [vmem:[#allocation8 + $0xe78] sm:$0xff] %v2908
    %3446 = vst [vmem:[#allocation8 + $0xe80] sm:$0xff] %v2126
    %3447 = vst [vmem:[#allocation8 + $0xe88] sm:$0xff] %v2911
    %3448 = vst [vmem:[#allocation8 + $0xe90] sm:$0xff] %v2129
    %3449 = vst [vmem:[#allocation8 + $0xe98] sm:$0xff] %v2914
    %3450 = vst [vmem:[#allocation8 + $0xea0] sm:$0xff] %v2132
    %3451 = vst [vmem:[#allocation8 + $0xea8] sm:$0xff] %v2917
    %3452 = vst [vmem:[#allocation8 + $0xeb0] sm:$0xff] %v2135
    %3453 = vst [vmem:[#allocation8 + $0xeb8] sm:$0xff] %v2920
    %3454 = vst [vmem:[#allocation8 + $0xec0] sm:$0xff] %v2138
    %3455 = vst [vmem:[#allocation8 + $0xec8] sm:$0xff] %v2923
    %3456 = vst [vmem:[#allocation8 + $0xed0] sm:$0xff] %v2141
    %3457 = vst [vmem:[#allocation8 + $0xed8] sm:$0xff] %v2926
    %3458 = vst [vmem:[#allocation8 + $0xee0] sm:$0xff] %v2144
    %3459 = vst [vmem:[#allocation8 + $0xee8] sm:$0xff] %v2929
    %3460 = vst [vmem:[#allocation8 + $0xef0] sm:$0xff] %v2147
    %3461 = vst [vmem:[#allocation8 + $0xef8] sm:$0xff] %v2932
    %3462 = vst [vmem:[#allocation8 + $0xf00] sm:$0xff] %v2150
    %3463 = vst [vmem:[#allocation8 + $0xf08] sm:$0xff] %v2935
    %3464 = vst [vmem:[#allocation8 + $0xf10] sm:$0xff] %v2153
    %3465 = vst [vmem:[#allocation8 + $0xf18] sm:$0xff] %v2938
    %3466 = vst [vmem:[#allocation8 + $0xf20] sm:$0xff] %v2156
    %3467 = vst [vmem:[#allocation8 + $0xf28] sm:$0xff] %v2941
    %3468 = vst [vmem:[#allocation8 + $0xf30] sm:$0xff] %v2159
    %3469 = vst [vmem:[#allocation8 + $0xf38] sm:$0xff] %v2944
    %3470 = vst [vmem:[#allocation8 + $0xf40] sm:$0xff] %v2162
    %3471 = vst [vmem:[#allocation8 + $0xf48] sm:$0xff] %v2947
    %3472 = vst [vmem:[#allocation8 + $0xf50] sm:$0xff] %v2165
    %3473 = vst [vmem:[#allocation8 + $0xf58] sm:$0xff] %v2950
    %3474 = vst [vmem:[#allocation8 + $0xf60] sm:$0xff] %v2168
    %3475 = vst [vmem:[#allocation8 + $0xf68] sm:$0xff] %v2953
    %3476 = vst [vmem:[#allocation8 + $0xf70] sm:$0xff] %v2171
    %3477 = vst [vmem:[#allocation8 + $0xf78] sm:$0xff] %v2956
    %3478 = vst [vmem:[#allocation8 + $0xf80] sm:$0xff] %v2174
    %3479 = vst [vmem:[#allocation8 + $0xf88] sm:$0xff] %v2959
    %3480 = vst [vmem:[#allocation8 + $0xf90] sm:$0xff] %v2177
    %3481 = vst [vmem:[#allocation8 + $0xf98] sm:$0xff] %v2962
    %3482 = vst [vmem:[#allocation8 + $0xfa0] sm:$0xff] %v2180
    %3483 = vst [vmem:[#allocation8 + $0xfa8] sm:$0xff] %v2965
    %3484 = vst [vmem:[#allocation8 + $0xfb0] sm:$0xff] %v2183
    %3485 = vst [vmem:[#allocation8 + $0xfb8] sm:$0xff] %v2968
    %3486 = vst [vmem:[#allocation8 + $0xfc0] sm:$0xff] %v2186
    %3487 = vst [vmem:[#allocation8 + $0xfc8] sm:$0xff] %v2971
    %3488 = vst [vmem:[#allocation8 + $0xfd0] sm:$0xff] %v2189
    %3489 = vst [vmem:[#allocation8 + $0xfd8] sm:$0xff] %v2974
    %3490 = vst [vmem:[#allocation8 + $0xfe0] sm:$0xff] %v2192
    %3491 = vst [vmem:[#allocation8 + $0xfe8] sm:$0xff] %v2977
    %3492 = vst [vmem:[#allocation8 + $0xff0] sm:$0xff] %v2195
    %3493 = vst [vmem:[#allocation8 + $0xff8] sm:$0xff] %v2980
    // Predicated region
    $region26: #{tpu_custom_call.1} parent=1 // pred_check
      _
    $region27: #{tpu_custom_call.1} parent=1 // pred_check_branch
      %3495 = sbr.rel (0) target = $region29
    $region28: #{tpu_custom_call.1} parent=1 // pred_region
      %3497 = vsyncadd [#allocation4], 0
      %s3498 = sshll.u32 [#allocation8], 4
      %s3499 = int_to_ptr.vmem [resolvable:$true] %s3498
      %s3500 = sshll.u32 %s3, 4
      %s3501 = int_to_ptr.hbm [resolvable:$true] %s3500
      %3506 = dma.vmem_to_hbm [thread:$0]  %s3499, 65536, %s3501, [#allocation4], 256, 256, 16
    $region29: #{tpu_custom_call.1} parent=1 // pred_fallthru
      _
    // Predicated region
    $region30: #{tpu_custom_call.1} parent=1 // pred_check
      _
    $region31: #{tpu_custom_call.1} parent=1 // pred_check_branch
      %3508 = sbr.rel (0) target = $region33
    $region32: #{tpu_custom_call.1} parent=1 // pred_region
      %3510 = dma.done [#allocation4], 65536
    $region33: #{tpu_custom_call.1} parent=1 // pred_fallthru
      _
    %3511 = vsyncpa [#allocation3], 1
    %3512 = vsyncpa [#allocation6], 1
    %3513 = vsyncpa [#allocation4], 1

</llo_original>
